<compile_context>
chip_gen: v6e
topology: v6e:2x2x1
jax: 0.10.0
libtpu: 0.0.40
codegen_flags: <defaults>
</compile_context>

<pallas_src>
import functools

import jax
import jax.numpy as jnp
from jax import lax
from jax.experimental import pallas as pl
from jax.experimental.pallas import tpu as pltpu


K = 5          # cv2 depthwise kernel size
P = K // 2     # 'same' padding


def _silu(v):
    # v * sigmoid(v); approx reciprocal goes to the EUP (off the VALU slot).
    return v * pl.reciprocal(1.0 + jnp.exp(-v), approx=True)


def _round_up(x, m):
    return ((x + m - 1) // m) * m


# ---------------------------------------------------------------------------
# VMEM accounting + tile selection
# ---------------------------------------------------------------------------
def _vmem_estimate(th, w, c1, c_, out_bytes):
    """Rough per-step VMEM bytes (incl. pipeline double-buffers, (8,128) pad)."""
    rows = th + 2 * P
    wp = _round_up(w + 2 * P, 8)
    lane = lambda c: _round_up(c, 128)
    in_win = 2 * _round_up(rows * w, 8) * lane(c1) * 2            # bf16 window x2
    out_bf = 2 * th * _round_up(w, 8) * lane(2 * c_) * out_bytes  # output x2
    xp_s = rows * wp * lane(c_) * 4                               # padded x1 scratch
    x1_v = _round_up(rows * w, 8) * lane(c_) * 4                  # live cv1 result
    wts = 2 * (_round_up(c1, 8) * lane(c_) * 2
               + (_round_up(K * K, 8) + 16) * lane(c_) * 4)
    return in_win + out_bf + xp_s + x1_v + wts


def _vmem_capacity_bytes():
    try:
        return int(pltpu.get_tpu_info().vmem_capacity_bytes)
    except Exception:
        return 64 * 1024 * 1024   # conservative fallback (v7x per-core VMEM)


def _pick_row_tile(b, h, w, c1, c_, out_bytes, budget):
    """Largest divisor of H whose working set fits the VMEM budget."""
    best = 1
    for th in range(1, h + 1):
        if h % th == 0 and _vmem_estimate(th, w, c1, c_, out_bytes) <= budget:
            best = th
    # v7x megacore balance: for a single image prefer an even number of row
    # tiles so both TensorCores get work (don't shrink the tile by >2x).
    if b == 1 and (h // best) % 2 == 1:
        for th in range(best - 1, max(best // 2, 0), -1):
            if (h % th == 0 and (h // th) % 2 == 0
                    and _vmem_estimate(th, w, c1, c_, out_bytes) <= budget):
                return th
    return best


def _pick_row_block(th, w, c_):
    """Largest row block whose f32 accumulator (~4 vregs) stays register-resident."""
    limit = 16 * 1024
    best = 1
    for rb in range(1, th + 1):
        if th % rb == 0 and rb * w * c_ * 4 <= limit:
            best = rb
    return best


# ---------------------------------------------------------------------------
# Fused GSConv kernel: one (batch, row-tile) per grid step.
#   x_ref : (1, 1, rows*W, C1) bf16  haloed input row window (auto-pipelined)
#   w1    : (C1, c_)   bf16  1x1 conv weight, BN scale folded, evens-then-odds
#   b1    : (1, c_)    f32   folded BN shift
#   w2    : (K*K, c_)  f32   depthwise weight, BN scale folded, same perm
#   b2    : (1, c_)    f32
#   o_ref : (1, TH, W, 2c_)  output tile, already in GSConv-shuffled order
#   xp_s  : VMEM (rows, Wp, c_) f32  zero-padded x1 tile
# ---------------------------------------------------------------------------
def gsconv_kernel(x_ref, w1_ref, b1_ref, w2_ref, b2_ref, o_ref, xp_s,
                  *, W, TH, c_, nH, RB, Wp):
    i = pl.program_id(1)
    rows = TH + 2 * P
    ce = (c_ + 1) // 2
    fl = c_ - ce

    # ---- cv1: 1x1 conv (BN folded) + bias + SiLU on the window (MXU) -------
    xwin = x_ref[0, 0]                                     # (rows*W, C1) bf16
    y1 = jnp.dot(xwin, w1_ref[...], preferred_element_type=jnp.float32)
    x1 = _silu(y1 + b1_ref[...])                           # (rows*W, c_) f32

    # ---- build the zero-padded x1 tile in VMEM scratch ----------------------
    # W-halo columns (never touched by the interior store below).
    xp_s[:, :P, :] = jnp.zeros((rows, P, c_), jnp.float32)
    xp_s[:, P + W:, :] = jnp.zeros((rows, Wp - (P + W), c_), jnp.float32)
    # Bulk interior store (replaces the old per-row masked scatter).
    xp_s[:, P:P + W, :] = x1.reshape(rows, W, c_)
    # Rows outside the image must be exactly zero (cv1(0) != 0 because of the
    # bias): only the first / last row tile ever contains such rows.
    @pl.when(i == 0)
    def _():
        xp_s[:P, P:P + W, :] = jnp.zeros((P, W, c_), jnp.float32)

    @pl.when(i == nH - 1)
    def _():
        xp_s[P + TH:, P:P + W, :] = jnp.zeros((P, W, c_), jnp.float32)

    # ---- cv2: 5x5 depthwise (BN folded) + SiLU + shuffle + store ------------
    w2 = w2_ref[...]                                       # (K*K, c_)
    b2 = b2_ref[...]                                       # (1, c_)
    nblk = TH // RB

    def row_block(blk, carry):
        r0 = blk * RB
        if RB % 8 == 0:
            r0 = pl.multiple_of(r0, 8)
        acc = jnp.zeros((RB, W, c_), jnp.float32)
        for ki in range(K):                                # 5 row taps
            band = xp_s[pl.ds(r0 + ki, RB), :, :]          # (RB, Wp, c_)
            for kj in range(K):                            # 5 column taps
                acc = acc + band[:, kj:kj + W, :] * w2[ki * K + kj]
        x2b = _silu(acc + b2)                              # (RB, W, c_)
        x1b = xp_s[pl.ds(r0 + P, RB), P:P + W, :]          # matching x1 rows

        # GSConv shuffle: weights were pre-permuted evens-then-odds, so the
        # shuffled output is a concat of 4 contiguous channel slices.
        if c_ % 2 == 0:
            seg2, seg4 = x2b[..., :fl], x2b[..., fl:]
        else:
            seg2, seg4 = x2b[..., ce:], x2b[..., :ce]
        out = jnp.concatenate([x1b[..., :ce], seg2, x1b[..., ce:], seg4],
                              axis=-1)                     # (RB, W, 2c_)
        o_ref[0, pl.ds(r0, RB), :, :] = out.astype(o_ref.dtype)
        return carry

    lax.fori_loop(0, nblk, row_block, None,
                  unroll=True if nblk <= 8 else 2)


# ---------------------------------------------------------------------------
# Parameter prep: fold BN scale into weights, pre-permute output channels
# (evens then odds) so the GSConv shuffle becomes contiguous slices.
# ---------------------------------------------------------------------------
def prepare_params(params):
    c_ = params["w1"].shape[1]
    perm = jnp.asarray(list(range(0, c_, 2)) + list(range(1, c_, 2)))
    w1 = (params["w1"] * params["scale1"][None, :])[:, perm]
    w2 = (params["w2"] * params["scale2"][None, None, :])[:, :, perm]
    return {
        "w1": w1.astype(jnp.bfloat16),
        "b1": params["bias1"][perm][None, :].astype(jnp.float32),
        "w2": w2.reshape(K * K, c_).astype(jnp.float32),
        "b2": params["bias2"][perm][None, :].astype(jnp.float32),
    }


# ---------------------------------------------------------------------------
# Wrapper: full GSConv forward (k=1, s=1 cv1; 5x5 depthwise cv2; shuffle)
# ---------------------------------------------------------------------------
def gsconv_forward(x_nchw, params, out_dtype=jnp.bfloat16, row_tile=None):
    B, C1, H, W = x_nchw.shape
    kp = prepare_params(params)
    c_ = kp["w2"].shape[-1]
    out_bytes = jnp.dtype(out_dtype).itemsize

    capacity = _vmem_capacity_bytes()
    budget = int(0.4 * capacity)
    if row_tile is None:
        TH = _pick_row_tile(B, H, W, C1, c_, out_bytes, budget)
    else:
        assert H % row_tile == 0, (H, row_tile)
        TH = row_tile
    nH = H // TH
    rows = TH + 2 * P
    Wp = _round_up(W + 2 * P, 8)
    RB = _pick_row_block(TH, W, c_)

    # NCHW -> NHWC bf16, pad rows by P, and materialize the per-tile row
    # windows (incl. the halo) so the kernel input is a plain Blocked spec that
    # the Pallas pipeline double-buffers (bulk DMA hidden behind compute).
    # XLA fuses transpose + pad + window gather into a single HBM pass.
    # TODO(synk): absorb this layout pass (and the output NHWC->NCHW transpose)
    # into the kernel's index math to save the remaining wrapper HBM passes.
    x = jnp.transpose(x_nchw, (0, 2, 3, 1)).astype(jnp.bfloat16)
    x = jnp.pad(x, ((0, 0), (P, P), (0, 0), (0, 0)))
    xw = jnp.stack([x[:, t * TH:t * TH + rows] for t in range(nH)], axis=1)
    xw = xw.reshape(B, nH, rows * W, C1)

    est = _vmem_estimate(TH, W, C1, c_, out_bytes)
    vmem_limit = int(min(0.9 * capacity, max(32 * 1024 * 1024, 2 * est)))

    kernel = functools.partial(gsconv_kernel, W=W, TH=TH, c_=c_, nH=nH,
                               RB=RB, Wp=Wp)
    out_nhwc = pl.pallas_call(
        kernel,
        out_shape=jax.ShapeDtypeStruct((B, H, W, 2 * c_), out_dtype),
        grid=(B, nH),
        in_specs=[
            pl.BlockSpec((1, 1, rows * W, C1), lambda b, i: (b, i, 0, 0)),
            pl.BlockSpec((C1, c_), lambda b, i: (0, 0)),
            pl.BlockSpec((1, c_), lambda b, i: (0, 0)),
            pl.BlockSpec((K * K, c_), lambda b, i: (0, 0)),
            pl.BlockSpec((1, c_), lambda b, i: (0, 0)),
        ],
        out_specs=pl.BlockSpec((1, TH, W, 2 * c_), lambda b, i: (b, i, 0, 0)),
        scratch_shapes=[pltpu.VMEM((rows, Wp, c_), jnp.float32)],
        compiler_params=pltpu.CompilerParams(
            dimension_semantics=("parallel", "parallel"),
            vmem_limit_bytes=vmem_limit),
    )(xw, kp["w1"], kp["b1"], kp["w2"], kp["b2"])

    # NHWC -> NCHW (channels already in GSConv-shuffled order)
    return jnp.transpose(out_nhwc, (0, 3, 1, 2))


# ---------------------------------------------------------------------------
# Pure-JAX f32 reference (raw params, original shuffle) for correctness check.
# ---------------------------------------------------------------------------
def gsconv_reference(x_nchw, params):
    B, C1, H, W = x_nchw.shape
    c_ = params["w1"].shape[1]
    silu = lambda v: v * jax.nn.sigmoid(v)
    x = jnp.transpose(x_nchw, (0, 2, 3, 1))
    x1 = silu(
        jnp.einsum("bhwc,cd->bhwd", x, params["w1"],
                   precision=jax.lax.Precision.HIGHEST)
        * params["scale1"] + params["bias1"])
    xp = jnp.pad(x1, ((0, 0), (P, P), (P, P), (0, 0)))
    acc = jnp.zeros_like(x1)
    for ki in range(K):
        for kj in range(K):
            acc = acc + xp[:, ki:ki + H, kj:kj + W, :] * params["w2"][ki, kj]
    x2 = silu(acc * params["scale2"] + params["bias2"])
    x_cat = jnp.concatenate([x1, x2], axis=-1)
    y = (x_cat.reshape(B, H, W, c_, 2).transpose(0, 1, 2, 4, 3)
         .reshape(B, H, W, 2 * c_))
    return jnp.transpose(y, (0, 3, 1, 2))


def init_params(key, c1, c2):
    c_ = c2 // 2
    eps = 1e-5
    ks = jax.random.split(key, 10)
    w1 = 0.2 * jax.random.normal(ks[0], (c1, c_), jnp.float32)
    w2 = 0.2 * jax.random.normal(ks[1], (K, K, c_), jnp.float32)
    g1 = 1.0 + 0.1 * jax.random.normal(ks[2], (c_,), jnp.float32)
    b1 = 0.1 * jax.random.normal(ks[3], (c_,), jnp.float32)
    m1 = 0.1 * jax.random.normal(ks[4], (c_,), jnp.float32)
    v1 = jnp.abs(1.0 + 0.1 * jax.random.normal(ks[5], (c_,), jnp.float32))
    g2 = 1.0 + 0.1 * jax.random.normal(ks[6], (c_,), jnp.float32)
    b2 = 0.1 * jax.random.normal(ks[7], (c_,), jnp.float32)
    m2 = 0.1 * jax.random.normal(ks[8], (c_,), jnp.float32)
    v2 = jnp.abs(1.0 + 0.1 * jax.random.normal(ks[9], (c_,), jnp.float32))
    s1 = g1 / jnp.sqrt(v1 + eps)
    s2 = g2 / jnp.sqrt(v2 + eps)
    return {
        "w1": w1, "scale1": s1, "bias1": b1 - m1 * s1,
        "w2": w2, "scale2": s2, "bias2": b2 - m2 * s2,
    }


if __name__ == "__main__":
    key = jax.random.PRNGKey(0)
    k1, k2, k3, k4 = jax.random.split(key, 4)

    # Case 1: even c_ (C2=16 -> c_=8), auto row tile, bf16 output (default).
    B, C1, C2, H, W = 2, 4, 16, 16, 16
    x = jax.random.normal(k1, (B, C1, H, W), jnp.float32)
    params = init_params(k2, C1, C2)
    ref = gsconv_reference(x, params)

    fwd = jax.jit(functools.partial(gsconv_forward, out_dtype=jnp.bfloat16))
    out = jax.block_until_ready(fwd(x, params))
    assert out.shape == (B, C2, H, W), out.shape
    err = float(jnp.max(jnp.abs(out.astype(jnp.float32) - ref)))
    assert jnp.allclose(out.astype(jnp.float32), ref, rtol=4e-2, atol=4e-2), err

    # Case 1b: forced multi-tile path (exercises edge-row zeroing), f32 output.
    fwd_mt = jax.jit(functools.partial(gsconv_forward, out_dtype=jnp.float32,
                                       row_tile=8))
    out_mt = jax.block_until_ready(fwd_mt(x, params))
    err_mt = float(jnp.max(jnp.abs(out_mt - ref)))
    assert jnp.allclose(out_mt, ref, rtol=2e-2, atol=2e-2), err_mt

    # Case 2: odd c_ (C2=6 -> c_=3) shuffle path, multi-tile.
    B2, C1b, C2b, H2, W2 = 1, 3, 6, 8, 8
    xb = jax.random.normal(k3, (B2, C1b, H2, W2), jnp.float32)
    pb = init_params(k4, C1b, C2b)
    ref_b = gsconv_reference(xb, pb)
    fwd_odd = jax.jit(functools.partial(gsconv_forward, out_dtype=jnp.float32,
                                        row_tile=4))
    out_b = jax.block_until_ready(fwd_odd(xb, pb))
    assert out_b.shape == (B2, C2b, H2, W2), out_b.shape
    err_b = float(jnp.max(jnp.abs(out_b - ref_b)))
    assert jnp.allclose(out_b, ref_b, rtol=2e-2, atol=2e-2), err_b

    print("KERNEL_OK")
</pallas_src>

<mosaic_0001>
module attributes {stable_mosaic.version = 11 : i64} {
  func.func @gsconv_kernel(%arg0: i32, %arg1: i32, %arg2: memref<1x1x320x4xbf16, #tpu.memory_space<vmem>>, %arg3: memref<4x8xbf16, #tpu.memory_space<vmem>>, %arg4: memref<1x8xf32, #tpu.memory_space<vmem>>, %arg5: memref<25x8xf32, #tpu.memory_space<vmem>>, %arg6: memref<1x8xf32, #tpu.memory_space<vmem>>, %arg7: memref<1x16x16x16xbf16, #tpu.memory_space<vmem>>, %arg8: memref<20x24x8xf32, #tpu.memory_space<vmem>>) attributes {dimension_semantics = [#tpu.dimension_semantics<parallel>, #tpu.dimension_semantics<parallel>], iteration_bounds = array<i64: 2, 1>, scalar_prefetch = 0 : i64, scratch_operands = 1 : i64, tpu.core_type = #tpu.core_type<tc>, window_params = [{transform_indices = @transform_0, window_bounds = array<i64: 1, 1, 320, 4>}, {pipeline_mode = #tpu.pipeline_mode<synchronous>, transform_indices = @transform_1, window_bounds = array<i64: 4, 8>}, {pipeline_mode = #tpu.pipeline_mode<synchronous>, transform_indices = @transform_2, window_bounds = array<i64: 1, 8>}, {pipeline_mode = #tpu.pipeline_mode<synchronous>, transform_indices = @transform_3, window_bounds = array<i64: 25, 8>}, {pipeline_mode = #tpu.pipeline_mode<synchronous>, transform_indices = @transform_4, window_bounds = array<i64: 1, 8>}, {transform_indices = @transform_5, window_bounds = array<i64: 1, 16, 16, 16>}]} {
    %c0 = arith.constant 0 : index
    %c0_0 = arith.constant 0 : index
    %c0_1 = arith.constant 0 : index
    %c0_2 = arith.constant 0 : index
    %0 = vector.load %arg2[%c0, %c0_0, %c0_1, %c0_2] : memref<1x1x320x4xbf16, #tpu.memory_space<vmem>>, vector<1x1x320x4xbf16>
    %1 = vector.shape_cast %0 : vector<1x1x320x4xbf16> to vector<320x4xbf16>
    %c0_3 = arith.constant 0 : index
    %c0_4 = arith.constant 0 : index
    %2 = vector.load %arg3[%c0_3, %c0_4] : memref<4x8xbf16, #tpu.memory_space<vmem>>, vector<4x8xbf16>
    %cst = arith.constant dense<0.000000e+00> : vector<320x8xf32>
    %3 = tpu.matmul %1, %2, %cst {dimension_numbers = #tpu.dot_dimension_numbers<[1], [0], [0], [1], [0, 0, 1, 1], [], []>} : vector<320x4xbf16>, vector<4x8xbf16>, vector<320x8xf32> -> vector<320x8xf32>
    %c0_5 = arith.constant 0 : index
    %c0_6 = arith.constant 0 : index
    %4 = vector.load %arg4[%c0_5, %c0_6] : memref<1x8xf32, #tpu.memory_space<vmem>>, vector<1x8xf32>
    %5 = vector.broadcast %4 : vector<1x8xf32> to vector<320x8xf32>
    %6 = arith.addf %3, %5 : vector<320x8xf32>
    %cst_7 = arith.constant 0.000000e+00 : f32
    %7 = vector.broadcast %cst_7 : f32 to vector<320x8xf32>
    %8 = arith.subf %7, %6 : vector<320x8xf32>
    %9 = math.exp %8 : vector<320x8xf32>
    %cst_8 = arith.constant 1.000000e+00 : f32
    %10 = vector.broadcast %cst_8 : f32 to vector<320x8xf32>
    %11 = arith.addf %10, %9 : vector<320x8xf32>
    %12 = tpu.reciprocal %11 {approx = true} : vector<320x8xf32> -> vector<320x8xf32>
    %13 = arith.mulf %6, %12 : vector<320x8xf32>
    %cst_9 = arith.constant 0.000000e+00 : f32
    %14 = vector.broadcast %cst_9 : f32 to vector<20x2x8xf32>
    %c0_10 = arith.constant 0 : index
    %c0_11 = arith.constant 0 : index
    %c0_12 = arith.constant 0 : index
    %15 = vector.load %arg8[%c0_10, %c0_11, %c0_12] : memref<20x24x8xf32, #tpu.memory_space<vmem>>, vector<20x2x8xf32>
    tpu.vector_store %arg8[%c0_10, %c0_11, %c0_12], %14 {strides = array<i32>} : memref<20x24x8xf32, #tpu.memory_space<vmem>>, vector<20x2x8xf32>,
    %cst_13 = arith.constant 0.000000e+00 : f32
    %16 = vector.broadcast %cst_13 : f32 to vector<20x6x8xf32>
    %c0_14 = arith.constant 0 : index
    %c18 = arith.constant 18 : index
    %c0_15 = arith.constant 0 : index
    %17 = vector.load %arg8[%c0_14, %c18, %c0_15] : memref<20x24x8xf32, #tpu.memory_space<vmem>>, vector<20x6x8xf32>
    tpu.vector_store %arg8[%c0_14, %c18, %c0_15], %16 {strides = array<i32>} : memref<20x24x8xf32, #tpu.memory_space<vmem>>, vector<20x6x8xf32>,
    %18 = vector.shape_cast %13 : vector<320x8xf32> to vector<20x16x8xf32>
    %c0_16 = arith.constant 0 : index
    %c2 = arith.constant 2 : index
    %c0_17 = arith.constant 0 : index
    %19 = vector.load %arg8[%c0_16, %c2, %c0_17] : memref<20x24x8xf32, #tpu.memory_space<vmem>>, vector<20x16x8xf32>
    tpu.vector_store %arg8[%c0_16, %c2, %c0_17], %18 {strides = array<i32>} : memref<20x24x8xf32, #tpu.memory_space<vmem>>, vector<20x16x8xf32>,
    %c0_i32 = arith.constant 0 : i32
    %20 = arith.cmpi eq, %arg1, %c0_i32 : i32
    %21 = arith.extui %20 : i1 to i32
    %c0_i32_18 = arith.constant 0 : i32
    %22 = arith.cmpi ne, %21, %c0_i32_18 : i32
    scf.if %22 {
      %cst_47 = arith.constant 0.000000e+00 : f32
      %244 = vector.broadcast %cst_47 : f32 to vector<2x16x8xf32>
      %c0_48 = arith.constant 0 : index
      %c2_49 = arith.constant 2 : index
      %c0_50 = arith.constant 0 : index
      %245 = vector.load %arg8[%c0_48, %c2_49, %c0_50] : memref<20x24x8xf32, #tpu.memory_space<vmem>>, vector<2x16x8xf32>
      tpu.vector_store %arg8[%c0_48, %c2_49, %c0_50], %244 {strides = array<i32>} : memref<20x24x8xf32, #tpu.memory_space<vmem>>, vector<2x16x8xf32>,
    } else {
    }
    %c0_i32_19 = arith.constant 0 : i32
    %23 = arith.cmpi eq, %arg1, %c0_i32_19 : i32
    %24 = arith.extui %23 : i1 to i32
    %c0_i32_20 = arith.constant 0 : i32
    %25 = arith.cmpi ne, %24, %c0_i32_20 : i32
    scf.if %25 {
      %cst_47 = arith.constant 0.000000e+00 : f32
      %244 = vector.broadcast %cst_47 : f32 to vector<2x16x8xf32>
      %c18_48 = arith.constant 18 : index
      %c2_49 = arith.constant 2 : index
      %c0_50 = arith.constant 0 : index
      %245 = vector.load %arg8[%c18_48, %c2_49, %c0_50] : memref<20x24x8xf32, #tpu.memory_space<vmem>>, vector<2x16x8xf32>
      tpu.vector_store %arg8[%c18_48, %c2_49, %c0_50], %244 {strides = array<i32>} : memref<20x24x8xf32, #tpu.memory_space<vmem>>, vector<2x16x8xf32>,
    } else {
    }
    %c0_21 = arith.constant 0 : index
    %c0_22 = arith.constant 0 : index
    %26 = vector.load %arg5[%c0_21, %c0_22] : memref<25x8xf32, #tpu.memory_space<vmem>>, vector<25x8xf32>
    %c0_23 = arith.constant 0 : index
    %c0_24 = arith.constant 0 : index
    %27 = vector.load %arg6[%c0_23, %c0_24] : memref<1x8xf32, #tpu.memory_space<vmem>>, vector<1x8xf32>
    %c0_i32_25 = arith.constant 0 : i32
    %c16_i32 = arith.constant 16 : i32
    %28 = arith.muli %c0_i32_25, %c16_i32 : i32
    %29 = tpu.assume_multiple %28, 8 : i32
    %cst_26 = arith.constant 0.000000e+00 : f32
    %30 = vector.broadcast %cst_26 : f32 to vector<16x16x8xf32>
    %c0_i32_27 = arith.constant 0 : i32
    %31 = arith.addi %29, %c0_i32_27 : i32
    %32 = arith.index_cast %31 : i32 to index
    %c0_28 = arith.constant 0 : index
    %c0_29 = arith.constant 0 : index
    %33 = vector.load %arg8[%32, %c0_28, %c0_29] : memref<20x24x8xf32, #tpu.memory_space<vmem>>, vector<16x24x8xf32>
    %34 = vector.extract_strided_slice %33 {offsets = [0, 0, 0], sizes = [16, 16, 8], strides = [1, 1, 1]} : vector<16x24x8xf32> to vector<16x16x8xf32>
    %35 = vector.extract_strided_slice %26 {offsets = [0, 0], sizes = [1, 8], strides = [1, 1]} : vector<25x8xf32> to vector<1x8xf32>
    %36 = vector.shape_cast %35 : vector<1x8xf32> to vector<8xf32>
    %37 = vector.shape_cast %36 : vector<8xf32> to vector<1x1x8xf32>
    %38 = vector.broadcast %37 : vector<1x1x8xf32> to vector<16x16x8xf32>
    %39 = arith.mulf %34, %38 : vector<16x16x8xf32>
    %40 = arith.addf %30, %39 : vector<16x16x8xf32>
    %41 = vector.extract_strided_slice %33 {offsets = [0, 1, 0], sizes = [16, 16, 8], strides = [1, 1, 1]} : vector<16x24x8xf32> to vector<16x16x8xf32>
    %42 = vector.extract_strided_slice %26 {offsets = [1, 0], sizes = [1, 8], strides = [1, 1]} : vector<25x8xf32> to vector<1x8xf32>
    %43 = vector.shape_cast %42 : vector<1x8xf32> to vector<8xf32>
    %44 = vector.shape_cast %43 : vector<8xf32> to vector<1x1x8xf32>
    %45 = vector.broadcast %44 : vector<1x1x8xf32> to vector<16x16x8xf32>
    %46 = arith.mulf %41, %45 : vector<16x16x8xf32>
    %47 = arith.addf %40, %46 : vector<16x16x8xf32>
    %48 = vector.extract_strided_slice %33 {offsets = [0, 2, 0], sizes = [16, 16, 8], strides = [1, 1, 1]} : vector<16x24x8xf32> to vector<16x16x8xf32>
    %49 = vector.extract_strided_slice %26 {offsets = [2, 0], sizes = [1, 8], strides = [1, 1]} : vector<25x8xf32> to vector<1x8xf32>
    %50 = vector.shape_cast %49 : vector<1x8xf32> to vector<8xf32>
    %51 = vector.shape_cast %50 : vector<8xf32> to vector<1x1x8xf32>
    %52 = vector.broadcast %51 : vector<1x1x8xf32> to vector<16x16x8xf32>
    %53 = arith.mulf %48, %52 : vector<16x16x8xf32>
    %54 = arith.addf %47, %53 : vector<16x16x8xf32>
    %55 = vector.extract_strided_slice %33 {offsets = [0, 3, 0], sizes = [16, 16, 8], strides = [1, 1, 1]} : vector<16x24x8xf32> to vector<16x16x8xf32>
    %56 = vector.extract_strided_slice %26 {offsets = [3, 0], sizes = [1, 8], strides = [1, 1]} : vector<25x8xf32> to vector<1x8xf32>
    %57 = vector.shape_cast %56 : vector<1x8xf32> to vector<8xf32>
    %58 = vector.shape_cast %57 : vector<8xf32> to vector<1x1x8xf32>
    %59 = vector.broadcast %58 : vector<1x1x8xf32> to vector<16x16x8xf32>
    %60 = arith.mulf %55, %59 : vector<16x16x8xf32>
    %61 = arith.addf %54, %60 : vector<16x16x8xf32>
    %62 = vector.extract_strided_slice %33 {offsets = [0, 4, 0], sizes = [16, 16, 8], strides = [1, 1, 1]} : vector<16x24x8xf32> to vector<16x16x8xf32>
    %63 = vector.extract_strided_slice %26 {offsets = [4, 0], sizes = [1, 8], strides = [1, 1]} : vector<25x8xf32> to vector<1x8xf32>
    %64 = vector.shape_cast %63 : vector<1x8xf32> to vector<8xf32>
    %65 = vector.shape_cast %64 : vector<8xf32> to vector<1x1x8xf32>
    %66 = vector.broadcast %65 : vector<1x1x8xf32> to vector<16x16x8xf32>
    %67 = arith.mulf %62, %66 : vector<16x16x8xf32>
    %68 = arith.addf %61, %67 : vector<16x16x8xf32>
    %c1_i32 = arith.constant 1 : i32
    %69 = arith.addi %29, %c1_i32 : i32
    %70 = arith.index_cast %69 : i32 to index
    %c0_30 = arith.constant 0 : index
    %c0_31 = arith.constant 0 : index
    %71 = vector.load %arg8[%70, %c0_30, %c0_31] : memref<20x24x8xf32, #tpu.memory_space<vmem>>, vector<16x24x8xf32>
    %72 = vector.extract_strided_slice %71 {offsets = [0, 0, 0], sizes = [16, 16, 8], strides = [1, 1, 1]} : vector<16x24x8xf32> to vector<16x16x8xf32>
    %73 = vector.extract_strided_slice %26 {offsets = [5, 0], sizes = [1, 8], strides = [1, 1]} : vector<25x8xf32> to vector<1x8xf32>
    %74 = vector.shape_cast %73 : vector<1x8xf32> to vector<8xf32>
    %75 = vector.shape_cast %74 : vector<8xf32> to vector<1x1x8xf32>
    %76 = vector.broadcast %75 : vector<1x1x8xf32> to vector<16x16x8xf32>
    %77 = arith.mulf %72, %76 : vector<16x16x8xf32>
    %78 = arith.addf %68, %77 : vector<16x16x8xf32>
    %79 = vector.extract_strided_slice %71 {offsets = [0, 1, 0], sizes = [16, 16, 8], strides = [1, 1, 1]} : vector<16x24x8xf32> to vector<16x16x8xf32>
    %80 = vector.extract_strided_slice %26 {offsets = [6, 0], sizes = [1, 8], strides = [1, 1]} : vector<25x8xf32> to vector<1x8xf32>
    %81 = vector.shape_cast %80 : vector<1x8xf32> to vector<8xf32>
    %82 = vector.shape_cast %81 : vector<8xf32> to vector<1x1x8xf32>
    %83 = vector.broadcast %82 : vector<1x1x8xf32> to vector<16x16x8xf32>
    %84 = arith.mulf %79, %83 : vector<16x16x8xf32>
    %85 = arith.addf %78, %84 : vector<16x16x8xf32>
    %86 = vector.extract_strided_slice %71 {offsets = [0, 2, 0], sizes = [16, 16, 8], strides = [1, 1, 1]} : vector<16x24x8xf32> to vector<16x16x8xf32>
    %87 = vector.extract_strided_slice %26 {offsets = [7, 0], sizes = [1, 8], strides = [1, 1]} : vector<25x8xf32> to vector<1x8xf32>
    %88 = vector.shape_cast %87 : vector<1x8xf32> to vector<8xf32>
    %89 = vector.shape_cast %88 : vector<8xf32> to vector<1x1x8xf32>
    %90 = vector.broadcast %89 : vector<1x1x8xf32> to vector<16x16x8xf32>
    %91 = arith.mulf %86, %90 : vector<16x16x8xf32>
    %92 = arith.addf %85, %91 : vector<16x16x8xf32>
    %93 = vector.extract_strided_slice %71 {offsets = [0, 3, 0], sizes = [16, 16, 8], strides = [1, 1, 1]} : vector<16x24x8xf32> to vector<16x16x8xf32>
    %94 = vector.extract_strided_slice %26 {offsets = [8, 0], sizes = [1, 8], strides = [1, 1]} : vector<25x8xf32> to vector<1x8xf32>
    %95 = vector.shape_cast %94 : vector<1x8xf32> to vector<8xf32>
    %96 = vector.shape_cast %95 : vector<8xf32> to vector<1x1x8xf32>
    %97 = vector.broadcast %96 : vector<1x1x8xf32> to vector<16x16x8xf32>
    %98 = arith.mulf %93, %97 : vector<16x16x8xf32>
    %99 = arith.addf %92, %98 : vector<16x16x8xf32>
    %100 = vector.extract_strided_slice %71 {offsets = [0, 4, 0], sizes = [16, 16, 8], strides = [1, 1, 1]} : vector<16x24x8xf32> to vector<16x16x8xf32>
    %101 = vector.extract_strided_slice %26 {offsets = [9, 0], sizes = [1, 8], strides = [1, 1]} : vector<25x8xf32> to vector<1x8xf32>
    %102 = vector.shape_cast %101 : vector<1x8xf32> to vector<8xf32>
    %103 = vector.shape_cast %102 : vector<8xf32> to vector<1x1x8xf32>
    %104 = vector.broadcast %103 : vector<1x1x8xf32> to vector<16x16x8xf32>
    %105 = arith.mulf %100, %104 : vector<16x16x8xf32>
    %106 = arith.addf %99, %105 : vector<16x16x8xf32>
    %c2_i32 = arith.constant 2 : i32
    %107 = arith.addi %29, %c2_i32 : i32
    %108 = arith.index_cast %107 : i32 to index
    %c0_32 = arith.constant 0 : index
    %c0_33 = arith.constant 0 : index
    %109 = vector.load %arg8[%108, %c0_32, %c0_33] : memref<20x24x8xf32, #tpu.memory_space<vmem>>, vector<16x24x8xf32>
    %110 = vector.extract_strided_slice %109 {offsets = [0, 0, 0], sizes = [16, 16, 8], strides = [1, 1, 1]} : vector<16x24x8xf32> to vector<16x16x8xf32>
    %111 = vector.extract_strided_slice %26 {offsets = [10, 0], sizes = [1, 8], strides = [1, 1]} : vector<25x8xf32> to vector<1x8xf32>
    %112 = vector.shape_cast %111 : vector<1x8xf32> to vector<8xf32>
    %113 = vector.shape_cast %112 : vector<8xf32> to vector<1x1x8xf32>
    %114 = vector.broadcast %113 : vector<1x1x8xf32> to vector<16x16x8xf32>
    %115 = arith.mulf %110, %114 : vector<16x16x8xf32>
    %116 = arith.addf %106, %115 : vector<16x16x8xf32>
    %117 = vector.extract_strided_slice %109 {offsets = [0, 1, 0], sizes = [16, 16, 8], strides = [1, 1, 1]} : vector<16x24x8xf32> to vector<16x16x8xf32>
    %118 = vector.extract_strided_slice %26 {offsets = [11, 0], sizes = [1, 8], strides = [1, 1]} : vector<25x8xf32> to vector<1x8xf32>
    %119 = vector.shape_cast %118 : vector<1x8xf32> to vector<8xf32>
    %120 = vector.shape_cast %119 : vector<8xf32> to vector<1x1x8xf32>
    %121 = vector.broadcast %120 : vector<1x1x8xf32> to vector<16x16x8xf32>
    %122 = arith.mulf %117, %121 : vector<16x16x8xf32>
    %123 = arith.addf %116, %122 : vector<16x16x8xf32>
    %124 = vector.extract_strided_slice %109 {offsets = [0, 2, 0], sizes = [16, 16, 8], strides = [1, 1, 1]} : vector<16x24x8xf32> to vector<16x16x8xf32>
    %125 = vector.extract_strided_slice %26 {offsets = [12, 0], sizes = [1, 8], strides = [1, 1]} : vector<25x8xf32> to vector<1x8xf32>
    %126 = vector.shape_cast %125 : vector<1x8xf32> to vector<8xf32>
    %127 = vector.shape_cast %126 : vector<8xf32> to vector<1x1x8xf32>
    %128 = vector.broadcast %127 : vector<1x1x8xf32> to vector<16x16x8xf32>
    %129 = arith.mulf %124, %128 : vector<16x16x8xf32>
    %130 = arith.addf %123, %129 : vector<16x16x8xf32>
    %131 = vector.extract_strided_slice %109 {offsets = [0, 3, 0], sizes = [16, 16, 8], strides = [1, 1, 1]} : vector<16x24x8xf32> to vector<16x16x8xf32>
    %132 = vector.extract_strided_slice %26 {offsets = [13, 0], sizes = [1, 8], strides = [1, 1]} : vector<25x8xf32> to vector<1x8xf32>
    %133 = vector.shape_cast %132 : vector<1x8xf32> to vector<8xf32>
    %134 = vector.shape_cast %133 : vector<8xf32> to vector<1x1x8xf32>
    %135 = vector.broadcast %134 : vector<1x1x8xf32> to vector<16x16x8xf32>
    %136 = arith.mulf %131, %135 : vector<16x16x8xf32>
    %137 = arith.addf %130, %136 : vector<16x16x8xf32>
    %138 = vector.extract_strided_slice %109 {offsets = [0, 4, 0], sizes = [16, 16, 8], strides = [1, 1, 1]} : vector<16x24x8xf32> to vector<16x16x8xf32>
    %139 = vector.extract_strided_slice %26 {offsets = [14, 0], sizes = [1, 8], strides = [1, 1]} : vector<25x8xf32> to vector<1x8xf32>
    %140 = vector.shape_cast %139 : vector<1x8xf32> to vector<8xf32>
    %141 = vector.shape_cast %140 : vector<8xf32> to vector<1x1x8xf32>
    %142 = vector.broadcast %141 : vector<1x1x8xf32> to vector<16x16x8xf32>
    %143 = arith.mulf %138, %142 : vector<16x16x8xf32>
    %144 = arith.addf %137, %143 : vector<16x16x8xf32>
    %c3_i32 = arith.constant 3 : i32
    %145 = arith.addi %29, %c3_i32 : i32
    %146 = arith.index_cast %145 : i32 to index
    %c0_34 = arith.constant 0 : index
    %c0_35 = arith.constant 0 : index
    %147 = vector.load %arg8[%146, %c0_34, %c0_35] : memref<20x24x8xf32, #tpu.memory_space<vmem>>, vector<16x24x8xf32>
    %148 = vector.extract_strided_slice %147 {offsets = [0, 0, 0], sizes = [16, 16, 8], strides = [1, 1, 1]} : vector<16x24x8xf32> to vector<16x16x8xf32>
    %149 = vector.extract_strided_slice %26 {offsets = [15, 0], sizes = [1, 8], strides = [1, 1]} : vector<25x8xf32> to vector<1x8xf32>
    %150 = vector.shape_cast %149 : vector<1x8xf32> to vector<8xf32>
    %151 = vector.shape_cast %150 : vector<8xf32> to vector<1x1x8xf32>
    %152 = vector.broadcast %151 : vector<1x1x8xf32> to vector<16x16x8xf32>
    %153 = arith.mulf %148, %152 : vector<16x16x8xf32>
    %154 = arith.addf %144, %153 : vector<16x16x8xf32>
    %155 = vector.extract_strided_slice %147 {offsets = [0, 1, 0], sizes = [16, 16, 8], strides = [1, 1, 1]} : vector<16x24x8xf32> to vector<16x16x8xf32>
    %156 = vector.extract_strided_slice %26 {offsets = [16, 0], sizes = [1, 8], strides = [1, 1]} : vector<25x8xf32> to vector<1x8xf32>
    %157 = vector.shape_cast %156 : vector<1x8xf32> to vector<8xf32>
    %158 = vector.shape_cast %157 : vector<8xf32> to vector<1x1x8xf32>
    %159 = vector.broadcast %158 : vector<1x1x8xf32> to vector<16x16x8xf32>
    %160 = arith.mulf %155, %159 : vector<16x16x8xf32>
    %161 = arith.addf %154, %160 : vector<16x16x8xf32>
    %162 = vector.extract_strided_slice %147 {offsets = [0, 2, 0], sizes = [16, 16, 8], strides = [1, 1, 1]} : vector<16x24x8xf32> to vector<16x16x8xf32>
    %163 = vector.extract_strided_slice %26 {offsets = [17, 0], sizes = [1, 8], strides = [1, 1]} : vector<25x8xf32> to vector<1x8xf32>
    %164 = vector.shape_cast %163 : vector<1x8xf32> to vector<8xf32>
    %165 = vector.shape_cast %164 : vector<8xf32> to vector<1x1x8xf32>
    %166 = vector.broadcast %165 : vector<1x1x8xf32> to vector<16x16x8xf32>
    %167 = arith.mulf %162, %166 : vector<16x16x8xf32>
    %168 = arith.addf %161, %167 : vector<16x16x8xf32>
    %169 = vector.extract_strided_slice %147 {offsets = [0, 3, 0], sizes = [16, 16, 8], strides = [1, 1, 1]} : vector<16x24x8xf32> to vector<16x16x8xf32>
    %170 = vector.extract_strided_slice %26 {offsets = [18, 0], sizes = [1, 8], strides = [1, 1]} : vector<25x8xf32> to vector<1x8xf32>
    %171 = vector.shape_cast %170 : vector<1x8xf32> to vector<8xf32>
    %172 = vector.shape_cast %171 : vector<8xf32> to vector<1x1x8xf32>
    %173 = vector.broadcast %172 : vector<1x1x8xf32> to vector<16x16x8xf32>
    %174 = arith.mulf %169, %173 : vector<16x16x8xf32>
    %175 = arith.addf %168, %174 : vector<16x16x8xf32>
    %176 = vector.extract_strided_slice %147 {offsets = [0, 4, 0], sizes = [16, 16, 8], strides = [1, 1, 1]} : vector<16x24x8xf32> to vector<16x16x8xf32>
    %177 = vector.extract_strided_slice %26 {offsets = [19, 0], sizes = [1, 8], strides = [1, 1]} : vector<25x8xf32> to vector<1x8xf32>
    %178 = vector.shape_cast %177 : vector<1x8xf32> to vector<8xf32>
    %179 = vector.shape_cast %178 : vector<8xf32> to vector<1x1x8xf32>
    %180 = vector.broadcast %179 : vector<1x1x8xf32> to vector<16x16x8xf32>
    %181 = arith.mulf %176, %180 : vector<16x16x8xf32>
    %182 = arith.addf %175, %181 : vector<16x16x8xf32>
    %c4_i32 = arith.constant 4 : i32
    %183 = arith.addi %29, %c4_i32 : i32
    %184 = arith.index_cast %183 : i32 to index
    %c0_36 = arith.constant 0 : index
    %c0_37 = arith.constant 0 : index
    %185 = vector.load %arg8[%184, %c0_36, %c0_37] : memref<20x24x8xf32, #tpu.memory_space<vmem>>, vector<16x24x8xf32>
    %186 = vector.extract_strided_slice %185 {offsets = [0, 0, 0], sizes = [16, 16, 8], strides = [1, 1, 1]} : vector<16x24x8xf32> to vector<16x16x8xf32>
    %187 = vector.extract_strided_slice %26 {offsets = [20, 0], sizes = [1, 8], strides = [1, 1]} : vector<25x8xf32> to vector<1x8xf32>
    %188 = vector.shape_cast %187 : vector<1x8xf32> to vector<8xf32>
    %189 = vector.shape_cast %188 : vector<8xf32> to vector<1x1x8xf32>
    %190 = vector.broadcast %189 : vector<1x1x8xf32> to vector<16x16x8xf32>
    %191 = arith.mulf %186, %190 : vector<16x16x8xf32>
    %192 = arith.addf %182, %191 : vector<16x16x8xf32>
    %193 = vector.extract_strided_slice %185 {offsets = [0, 1, 0], sizes = [16, 16, 8], strides = [1, 1, 1]} : vector<16x24x8xf32> to vector<16x16x8xf32>
    %194 = vector.extract_strided_slice %26 {offsets = [21, 0], sizes = [1, 8], strides = [1, 1]} : vector<25x8xf32> to vector<1x8xf32>
    %195 = vector.shape_cast %194 : vector<1x8xf32> to vector<8xf32>
    %196 = vector.shape_cast %195 : vector<8xf32> to vector<1x1x8xf32>
    %197 = vector.broadcast %196 : vector<1x1x8xf32> to vector<16x16x8xf32>
    %198 = arith.mulf %193, %197 : vector<16x16x8xf32>
    %199 = arith.addf %192, %198 : vector<16x16x8xf32>
    %200 = vector.extract_strided_slice %185 {offsets = [0, 2, 0], sizes = [16, 16, 8], strides = [1, 1, 1]} : vector<16x24x8xf32> to vector<16x16x8xf32>
    %201 = vector.extract_strided_slice %26 {offsets = [22, 0], sizes = [1, 8], strides = [1, 1]} : vector<25x8xf32> to vector<1x8xf32>
    %202 = vector.shape_cast %201 : vector<1x8xf32> to vector<8xf32>
    %203 = vector.shape_cast %202 : vector<8xf32> to vector<1x1x8xf32>
    %204 = vector.broadcast %203 : vector<1x1x8xf32> to vector<16x16x8xf32>
    %205 = arith.mulf %200, %204 : vector<16x16x8xf32>
    %206 = arith.addf %199, %205 : vector<16x16x8xf32>
    %207 = vector.extract_strided_slice %185 {offsets = [0, 3, 0], sizes = [16, 16, 8], strides = [1, 1, 1]} : vector<16x24x8xf32> to vector<16x16x8xf32>
    %208 = vector.extract_strided_slice %26 {offsets = [23, 0], sizes = [1, 8], strides = [1, 1]} : vector<25x8xf32> to vector<1x8xf32>
    %209 = vector.shape_cast %208 : vector<1x8xf32> to vector<8xf32>
    %210 = vector.shape_cast %209 : vector<8xf32> to vector<1x1x8xf32>
    %211 = vector.broadcast %210 : vector<1x1x8xf32> to vector<16x16x8xf32>
    %212 = arith.mulf %207, %211 : vector<16x16x8xf32>
    %213 = arith.addf %206, %212 : vector<16x16x8xf32>
    %214 = vector.extract_strided_slice %185 {offsets = [0, 4, 0], sizes = [16, 16, 8], strides = [1, 1, 1]} : vector<16x24x8xf32> to vector<16x16x8xf32>
    %215 = vector.extract_strided_slice %26 {offsets = [24, 0], sizes = [1, 8], strides = [1, 1]} : vector<25x8xf32> to vector<1x8xf32>
    %216 = vector.shape_cast %215 : vector<1x8xf32> to vector<8xf32>
    %217 = vector.shape_cast %216 : vector<8xf32> to vector<1x1x8xf32>
    %218 = vector.broadcast %217 : vector<1x1x8xf32> to vector<16x16x8xf32>
    %219 = arith.mulf %214, %218 : vector<16x16x8xf32>
    %220 = arith.addf %213, %219 : vector<16x16x8xf32>
    %221 = vector.shape_cast %27 : vector<1x8xf32> to vector<1x1x8xf32>
    %222 = vector.broadcast %221 : vector<1x1x8xf32> to vector<16x16x8xf32>
    %223 = arith.addf %220, %222 : vector<16x16x8xf32>
    %cst_38 = arith.constant 0.000000e+00 : f32
    %224 = vector.broadcast %cst_38 : f32 to vector<16x16x8xf32>
    %225 = arith.subf %224, %223 : vector<16x16x8xf32>
    %226 = math.exp %225 : vector<16x16x8xf32>
    %cst_39 = arith.constant 1.000000e+00 : f32
    %227 = vector.broadcast %cst_39 : f32 to vector<16x16x8xf32>
    %228 = arith.addf %227, %226 : vector<16x16x8xf32>
    %229 = tpu.reciprocal %228 {approx = true} : vector<16x16x8xf32> -> vector<16x16x8xf32>
    %230 = arith.mulf %223, %229 : vector<16x16x8xf32>
    %c2_i32_40 = arith.constant 2 : i32
    %231 = arith.addi %29, %c2_i32_40 : i32
    %232 = arith.index_cast %231 : i32 to index
    %c2_41 = arith.constant 2 : index
    %c0_42 = arith.constant 0 : index
    %233 = vector.load %arg8[%232, %c2_41, %c0_42] : memref<20x24x8xf32, #tpu.memory_space<vmem>>, vector<16x16x8xf32>
    %234 = vector.extract_strided_slice %230 {offsets = [0, 0, 0], sizes = [16, 16, 4], strides = [1, 1, 1]} : vector<16x16x8xf32> to vector<16x16x4xf32>
    %235 = vector.extract_strided_slice %230 {offsets = [0, 0, 4], sizes = [16, 16, 4], strides = [1, 1, 1]} : vector<16x16x8xf32> to vector<16x16x4xf32>
    %236 = vector.extract_strided_slice %233 {offsets = [0, 0, 0], sizes = [16, 16, 4], strides = [1, 1, 1]} : vector<16x16x8xf32> to vector<16x16x4xf32>
    %237 = vector.extract_strided_slice %233 {offsets = [0, 0, 4], sizes = [16, 16, 4], strides = [1, 1, 1]} : vector<16x16x8xf32> to vector<16x16x4xf32>
    %238 = tpu.concatenate %236, %234, %237, %235 in 2 : vector<16x16x4xf32>, vector<16x16x4xf32>, vector<16x16x4xf32>, vector<16x16x4xf32> -> vector<16x16x16xf32>
    %239 = arith.truncf %238 : vector<16x16x16xf32> to vector<16x16x16xbf16>
    %c0_43 = arith.constant 0 : index
    %240 = arith.index_cast %29 : i32 to index
    %c0_44 = arith.constant 0 : index
    %c0_45 = arith.constant 0 : index
    %241 = vector.load %arg7[%c0_43, %240, %c0_44, %c0_45] : memref<1x16x16x16xbf16, #tpu.memory_space<vmem>>, vector<1x16x16x16xbf16>
    %242 = vector.shape_cast %241 : vector<1x16x16x16xbf16> to vector<16x16x16xbf16>
    %243 = vector.shape_cast %239 : vector<16x16x16xbf16> to vector<1x16x16x16xbf16>
    tpu.vector_store %arg7[%c0_43, %240, %c0_44, %c0_45], %243 {strides = array<i32>} : memref<1x16x16x16xbf16, #tpu.memory_space<vmem>>, vector<1x16x16x16xbf16>,
    %c1_i32_46 = arith.constant 1 : i32
    return
  }
  func.func @transform_0(%arg0: i32, %arg1: i32) -> (i32, i32, i32, i32) {
    %c0_i32 = arith.constant 0 : i32
    %c0_i32_0 = arith.constant 0 : i32
    %c0_i32_1 = arith.constant 0 : i32
    return %arg0, %arg1, %c0_i32, %c0_i32_0 : i32, i32, i32, i32
  }
  func.func @transform_1(%arg0: i32, %arg1: i32) -> (i32, i32) {
    %c0_i32 = arith.constant 0 : i32
    %c0_i32_0 = arith.constant 0 : i32
    %c0_i32_1 = arith.constant 0 : i32
    return %c0_i32, %c0_i32_0 : i32, i32
  }
  func.func @transform_2(%arg0: i32, %arg1: i32) -> (i32, i32) {
    %c0_i32 = arith.constant 0 : i32
    %c0_i32_0 = arith.constant 0 : i32
    %c0_i32_1 = arith.constant 0 : i32
    return %c0_i32, %c0_i32_0 : i32, i32
  }
  func.func @transform_3(%arg0: i32, %arg1: i32) -> (i32, i32) {
    %c0_i32 = arith.constant 0 : i32
    %c0_i32_0 = arith.constant 0 : i32
    %c0_i32_1 = arith.constant 0 : i32
    return %c0_i32, %c0_i32_0 : i32, i32
  }
  func.func @transform_4(%arg0: i32, %arg1: i32) -> (i32, i32) {
    %c0_i32 = arith.constant 0 : i32
    %c0_i32_0 = arith.constant 0 : i32
    %c0_i32_1 = arith.constant 0 : i32
    return %c0_i32, %c0_i32_0 : i32, i32
  }
  func.func @transform_5(%arg0: i32, %arg1: i32) -> (i32, i32, i32, i32) {
    %c0_i32 = arith.constant 0 : i32
    %c0_i32_0 = arith.constant 0 : i32
    %c0_i32_1 = arith.constant 0 : i32
    return %arg0, %arg1, %c0_i32, %c0_i32_0 : i32, i32, i32, i32
  }
}

</mosaic_0001>

<llo_original>
// kernel: gsconv_forward.1
$region0: #{gsconv_forward.1}
  #allocation0 [shape = 'u32[]', space=smem, size = 0x4, offset = 0x4, fixed_abs, tag = 'smem constant byte address 0x4 - core index']
  #allocation1 [shape = 'u32[144,128]{1,0:T(1,128)}', space=vmem, size = 0x12000, scoped, tag = 'internal scratch']
  #allocation2 [shape = 'f32[20,24,8]{2,1,0:T(8,128)}', space=vmem, size = 0x3c000, scoped, tag = 'scratch operand']
  %s0 = inlined_call_operand.vmem [shape: bf16[2,1,320,4], index: 0, kind: input, shape index: {}]
  %s1 = inlined_call_operand.vmem [shape: bf16[4,8], index: 1, kind: input, shape index: {}]
  %s2 = inlined_call_operand.vmem [shape: f32[1,8], index: 2, kind: input, shape index: {}]
  %s3 = inlined_call_operand.vmem [shape: f32[25,8], index: 3, kind: input, shape index: {}]
  %s4 = inlined_call_operand.vmem [shape: f32[1,8], index: 4, kind: input, shape index: {}]
  %s5 = inlined_call_operand.vmem [shape: bf16[2,16,16,16], index: 5, kind: output, shape index: {}]
  %s6 = sld [smem:[#allocation0]]
  $region57: #{gsconv_forward.1} parent=0
    _
  %s8 = ssub.s32 1, %s6
  %s9 = scalar_select 0, %s8, %s6
  loop: start=0, step=1, limit=4
  $region2: #{gsconv_forward.1} parent=0 // loop_pre_header
    _
  $region3: #{gsconv_forward.1} parent=0 // loop_header
    %s11 = sphi 0, %s15
    %p12 = scmp.ge.s32.totalorder %s11, 4
    %s18 = sphi 0, %s30
    %s19 = sphi 0, %s26
    %s20 = sphi 0, %s18
    %s21 = sphi 0, %s19
    %s22 = sphi 0, %s20
    %s23 = sphi 0, %s21
    %s35 = sphi 0, %s37
    %s38 = sphi 0, %s35
    %s39 = sphi 0, %s38
    %s55 = sphi 0, %s39
    %s59 = sphi 0, %s59
    %s61 = sphi 0, %s59
    %s62 = sphi 0, %s61
    %s76 = sphi 0, %s62
    %s80 = sphi 0, %s80
    %s82 = sphi 0, %s80
    %s83 = sphi 0, %s82
    %s97 = sphi 0, %s83
    %s101 = sphi 0, %s101
    %s103 = sphi 0, %s101
    %s104 = sphi 0, %s103
    %s118 = sphi 0, %s104
    %s122 = sphi 0, %s122
    %s124 = sphi 0, %s122
    %s125 = sphi 0, %s124
    %s139 = sphi 0, %s125
    %s147 = sphi 0, %s149
    %s150 = sphi 0, %s147
    %s151 = sphi 0, %s150
    %s167 = sphi 0, %s151
  $region4: #{gsconv_forward.1} parent=0 // loop_header_branch
    %14 = sbr.rel (%p12) target = $region8
  $region5: #{gsconv_forward.1} parent=0 // loop_body
    %s16 = ssub.s32 %s11, 1
    %s17 = ssub.s32 %s11, 2
    %s24 = sadd.s32 1, %s19
    %p25 = scmp.ge.s32.totalorder %s24, 1
    %s26 = scalar_select %p25, 0, %s24
    %s27 = sadd.s32 1, %s18
    %s28 = scalar_select %p25, %s27, %s18
    %p29 = scmp.ge.s32.totalorder %s28, 2
    %s30 = scalar_select %p29, 0, %s28
    %s31 = ssub.s32 %s18, %s30
    %s32 = ssub.s32 %s19, %s26
    %s33 = sor.u32 %s31, %s32
    %p34 = scmp.eq.s32.totalorder %s33, 0
    %s36 = sadd.s32 %s35, 1
    %s37 = scalar_select %p34, %s35, %s36
    %p40 = pneg %p34
    %p41 = scmp.eq.s32.totalorder %s11, 1
    %p42 = por %p40, %p41
    %p43 = scmp.ne.s32.totalorder %s35, %s38
    %p44 = scmp.eq.s32.totalorder %s11, 0
    %p45 = por %p43, %p44
    %p46 = scmp.ne.s32.totalorder %s35, %s38
    %p47 = scmp.eq.s32.totalorder %s16, 1
    %p48 = por %p46, %p47
    %p49 = scmp.ne.s32.totalorder %s38, %s39
    %p50 = scmp.eq.s32.totalorder %s16, 0
    %p51 = por %p49, %p50
    %p52 = scmp.ne.s32.totalorder %s38, %s39
    %p53 = scmp.eq.s32.totalorder %s17, 1
    %p54 = por %p52, %p53
    %p56 = scmp.ne.s32.totalorder %s39, %s55
    %p57 = scmp.eq.s32.totalorder %s17, 0
    %p58 = por %p56, %p57
    %s60 = sadd.s32 %s59, 1
    %p63 = scmp.eq.s32.totalorder %s11, 1
    %p64 = scmp.ne.s32.totalorder %s59, %s61
    %p65 = scmp.eq.s32.totalorder %s11, 0
    %p66 = por %p64, %p65
    %p67 = scmp.ne.s32.totalorder %s59, %s61
    %p68 = scmp.eq.s32.totalorder %s16, 1
    %p69 = por %p67, %p68
    %p70 = scmp.ne.s32.totalorder %s61, %s62
    %p71 = scmp.eq.s32.totalorder %s16, 0
    %p72 = por %p70, %p71
    %p73 = scmp.ne.s32.totalorder %s61, %s62
    %p74 = scmp.eq.s32.totalorder %s17, 1
    %p75 = por %p73, %p74
    %p77 = scmp.ne.s32.totalorder %s62, %s76
    %p78 = scmp.eq.s32.totalorder %s17, 0
    %p79 = por %p77, %p78
    %s81 = sadd.s32 %s80, 1
    %p84 = scmp.eq.s32.totalorder %s11, 1
    %p85 = scmp.ne.s32.totalorder %s80, %s82
    %p86 = scmp.eq.s32.totalorder %s11, 0
    %p87 = por %p85, %p86
    %p88 = scmp.ne.s32.totalorder %s80, %s82
    %p89 = scmp.eq.s32.totalorder %s16, 1
    %p90 = por %p88, %p89
    %p91 = scmp.ne.s32.totalorder %s82, %s83
    %p92 = scmp.eq.s32.totalorder %s16, 0
    %p93 = por %p91, %p92
    %p94 = scmp.ne.s32.totalorder %s82, %s83
    %p95 = scmp.eq.s32.totalorder %s17, 1
    %p96 = por %p94, %p95
    %p98 = scmp.ne.s32.totalorder %s83, %s97
    %p99 = scmp.eq.s32.totalorder %s17, 0
    %p100 = por %p98, %p99
    %s102 = sadd.s32 %s101, 1
    %p105 = scmp.eq.s32.totalorder %s11, 1
    %p106 = scmp.ne.s32.totalorder %s101, %s103
    %p107 = scmp.eq.s32.totalorder %s11, 0
    %p108 = por %p106, %p107
    %p109 = scmp.ne.s32.totalorder %s101, %s103
    %p110 = scmp.eq.s32.totalorder %s16, 1
    %p111 = por %p109, %p110
    %p112 = scmp.ne.s32.totalorder %s103, %s104
    %p113 = scmp.eq.s32.totalorder %s16, 0
    %p114 = por %p112, %p113
    %p115 = scmp.ne.s32.totalorder %s103, %s104
    %p116 = scmp.eq.s32.totalorder %s17, 1
    %p117 = por %p115, %p116
    %p119 = scmp.ne.s32.totalorder %s104, %s118
    %p120 = scmp.eq.s32.totalorder %s17, 0
    %p121 = por %p119, %p120
    %s123 = sadd.s32 %s122, 1
    %p126 = scmp.eq.s32.totalorder %s11, 1
    %p127 = scmp.ne.s32.totalorder %s122, %s124
    %p128 = scmp.eq.s32.totalorder %s11, 0
    %p129 = por %p127, %p128
    %p130 = scmp.ne.s32.totalorder %s122, %s124
    %p131 = scmp.eq.s32.totalorder %s16, 1
    %p132 = por %p130, %p131
    %p133 = scmp.ne.s32.totalorder %s124, %s125
    %p134 = scmp.eq.s32.totalorder %s16, 0
    %p135 = por %p133, %p134
    %p136 = scmp.ne.s32.totalorder %s124, %s125
    %p137 = scmp.eq.s32.totalorder %s17, 1
    %p138 = por %p136, %p137
    %p140 = scmp.ne.s32.totalorder %s125, %s139
    %p141 = scmp.eq.s32.totalorder %s17, 0
    %p142 = por %p140, %p141
    %s143 = ssub.s32 %s18, %s30
    %s144 = ssub.s32 %s19, %s26
    %s145 = sor.u32 %s143, %s144
    %p146 = scmp.eq.s32.totalorder %s145, 0
    %s148 = sadd.s32 %s147, 1
    %s149 = scalar_select %p146, %s147, %s148
    %p152 = pneg %p146
    %p153 = scmp.eq.s32.totalorder %s11, 1
    %p154 = por %p152, %p153
    %p155 = scmp.ne.s32.totalorder %s147, %s150
    %p156 = scmp.eq.s32.totalorder %s11, 0
    %p157 = por %p155, %p156
    %p158 = scmp.ne.s32.totalorder %s147, %s150
    %p159 = scmp.eq.s32.totalorder %s16, 1
    %p160 = por %p158, %p159
    %p161 = scmp.ne.s32.totalorder %s150, %s151
    %p162 = scmp.eq.s32.totalorder %s16, 0
    %p163 = por %p161, %p162
    %p164 = scmp.ne.s32.totalorder %s150, %s151
    %p165 = scmp.eq.s32.totalorder %s17, 1
    %p166 = por %p164, %p165
    %p168 = scmp.ne.s32.totalorder %s151, %s167
    %p169 = scmp.eq.s32.totalorder %s17, 0
    %p170 = por %p168, %p169
    %p171 = scmp.le.s32.totalorder 1, %s11
    %p172 = scmp.lt.s32.totalorder %s11, 3
    %p173 = pnand %p171, %p172
    %p174 = pneg %p173
    // Predicated region
    $region9: #{gsconv_forward.1} parent=5 // pred_check
      _
    $region10: #{gsconv_forward.1} parent=5 // pred_check_branch
      %176 = sbr.rel (%p173) target = $region12
    $region11: #{gsconv_forward.1} parent=5 // pred_region
      %s177 = ssub.s32 %s11, 1
      // Predicated region
      $region13: #{gsconv_forward.1} parent=11 // pred_check
        %p178 = pneg %p72
      $region14: #{gsconv_forward.1} parent=11 // pred_check_branch
        %180 = sbr.rel (%p178) target = $region16
      $region15: #{gsconv_forward.1} parent=11 // pred_region
        _
      $region16: #{gsconv_forward.1} parent=11 // pred_fallthru
        _
      // Predicated region
      $region17: #{gsconv_forward.1} parent=11 // pred_check
        %p181 = pneg %p93
      $region18: #{gsconv_forward.1} parent=11 // pred_check_branch
        %183 = sbr.rel (%p181) target = $region20
      $region19: #{gsconv_forward.1} parent=11 // pred_region
        _
      $region20: #{gsconv_forward.1} parent=11 // pred_fallthru
        _
      // Predicated region
      $region21: #{gsconv_forward.1} parent=11 // pred_check
        %p184 = pneg %p114
      $region22: #{gsconv_forward.1} parent=11 // pred_check_branch
        %186 = sbr.rel (%p184) target = $region24
      $region23: #{gsconv_forward.1} parent=11 // pred_region
        _
      $region24: #{gsconv_forward.1} parent=11 // pred_fallthru
        _
      // Predicated region
      $region25: #{gsconv_forward.1} parent=11 // pred_check
        %p187 = pneg %p135
      $region26: #{gsconv_forward.1} parent=11 // pred_check_branch
        %189 = sbr.rel (%p187) target = $region28
      $region27: #{gsconv_forward.1} parent=11 // pred_region
        _
      $region28: #{gsconv_forward.1} parent=11 // pred_fallthru
        _
    $region12: #{gsconv_forward.1} parent=5 // pred_fallthru
      _
    %p190 = scmp.lt.s32.totalorder %s11, 2
    // Predicated region
    $region29: #{gsconv_forward.1} parent=5 // pred_check
      %p191 = pneg %p190
    $region30: #{gsconv_forward.1} parent=5 // pred_check_branch
      %193 = sbr.rel (%p191) target = $region32
    $region31: #{gsconv_forward.1} parent=5 // pred_region
      // Predicated region
      $region33: #{gsconv_forward.1} parent=31 // pred_check
        %p194 = pneg %p45
      $region34: #{gsconv_forward.1} parent=31 // pred_check_branch
        %196 = sbr.rel (%p194) target = $region36
      $region35: #{gsconv_forward.1} parent=31 // pred_region
        %p197 = scmp.lt.s32.totalorder %s18, 1
        %s198 = scalar_select %p197, %s18, 1
        %p199 = scmp.lt.s32.totalorder %s19, 0
        %s200 = scalar_select %p199, %s19, 0
        %s201 = smul.addr %s200, 40
        %s202 = smul.addr %s198, 40
        %s203 = sadd.s32 %s201, %s202
        %s204 = smul.addr %s203, 4
        %s205 = scalar_lea.vmem %s0, %s204
      $region36: #{gsconv_forward.1} parent=31 // pred_fallthru
        _
    $region32: #{gsconv_forward.1} parent=5 // pred_fallthru
      _
    %p206 = scmp.le.s32.totalorder 1, %s11
    %p207 = scmp.lt.s32.totalorder %s11, 3
    %p208 = pnand %p206, %p207
    %p209 = pneg %p208
    // Predicated region
    $region37: #{gsconv_forward.1} parent=5 // pred_check
      _
    $region38: #{gsconv_forward.1} parent=5 // pred_check_branch
      %211 = sbr.rel (%p208) target = $region40
    $region39: #{gsconv_forward.1} parent=5 // pred_region
      %s212 = ssub.s32 %s11, 1
      %p213 = scmp.lt.s32.totalorder %s20, 1
      %s214 = scalar_select %p213, %s20, 1
      %p215 = scmp.lt.s32.totalorder %s21, 0
      %s216 = scalar_select %p215, %s21, 0
      %s217 = smul.addr %s216, 40
      %s218 = smul.addr %s214, 40
      %s219 = sadd.s32 %s217, %s218
      %s220 = smul.addr %s219, 4
      %s221 = scalar_lea.vmem %s0, %s220
      %p222 = pneg %p51
      %p223 = pneg %p48
      %p224 = pneg %p72
      %p225 = pneg %p69
      %p226 = pneg %p93
      %p227 = pneg %p90
      %p228 = pneg %p114
      %p229 = pneg %p111
      %p230 = pneg %p135
      %p231 = pneg %p132
      %p232 = pneg %p163
      %p233 = pneg %p160
      %s234 = smul.u32 16, %s21
      %p235 = scmp.lt.s32.totalorder %s20, 1
      %s236 = scalar_select %p235, %s20, 1
      %p237 = scmp.lt.s32.totalorder %s234, 15
      %s238 = scalar_select %p237, %s234, 15
      %s239 = smul.addr %s238, 2
      %s240 = smul.addr %s236, 32
      %s241 = sadd.s32 %s239, %s240
      %s242 = smul.addr %s241, 4
      %s243 = scalar_lea.vmem %s5, %s242
      %p244 = scmp.lt.s32.totalorder %s20, 1
      %s245 = scalar_select %p244, %s20, 1
      %p246 = scmp.lt.s32.totalorder %s21, 0
      %s247 = scalar_select %p246, %s21, 0
      %s248 = smul.addr %s247, 40
      %s249 = smul.addr %s245, 40
      %s250 = sadd.s32 %s248, %s249
      %s251 = smul.addr %s250, 4
      %s252 = scalar_lea.vmem %s0, %s251
      %s253 = smul.u32 16, %s21
      %p254 = scmp.lt.s32.totalorder %s20, 1
      %s255 = scalar_select %p254, %s20, 1
      %p256 = scmp.lt.s32.totalorder %s253, 15
      %s257 = scalar_select %p256, %s253, 15
      %s258 = smul.addr %s257, 2
      %s259 = smul.addr %s255, 32
      %s260 = sadd.s32 %s258, %s259
      %s261 = smul.addr %s260, 4
      %s262 = scalar_lea.vmem %s5, %s261
      %s263 = smul.u32 16, %s21
      %v265 = vld [vmem:[%s252] sm:$0xf]
      %v266 = vld [vmem:[%s252 + $0x4] sm:$0xf]
      %v267 = vld [vmem:[%s252 + $0x8] sm:$0xf]
      %v268 = vld [vmem:[%s252 + $0xc] sm:$0xf]
      %v269 = vld [vmem:[%s252 + $0x10] sm:$0xf]
      %v270 = vld [vmem:[%s252 + $0x14] sm:$0xf]
      %v271 = vld [vmem:[%s252 + $0x18] sm:$0xf]
      %v272 = vld [vmem:[%s252 + $0x1c] sm:$0xf]
      %v273 = vld [vmem:[%s252 + $0x20] sm:$0xf]
      %v274 = vld [vmem:[%s252 + $0x24] sm:$0xf]
      %v275 = vld [vmem:[%s252 + $0x28] sm:$0xf]
      %v276 = vld [vmem:[%s252 + $0x2c] sm:$0xf]
      %v277 = vld [vmem:[%s252 + $0x30] sm:$0xf]
      %v278 = vld [vmem:[%s252 + $0x34] sm:$0xf]
      %v279 = vld [vmem:[%s252 + $0x38] sm:$0xf]
      %v280 = vld [vmem:[%s252 + $0x3c] sm:$0xf]
      %v281 = vld [vmem:[%s252 + $0x40] sm:$0xf]
      %v282 = vld [vmem:[%s252 + $0x44] sm:$0xf]
      %v283 = vld [vmem:[%s252 + $0x48] sm:$0xf]
      %v284 = vld [vmem:[%s252 + $0x4c] sm:$0xf]
      %v285 = vld [vmem:[%s252 + $0x50] sm:$0xf]
      %v286 = vld [vmem:[%s252 + $0x54] sm:$0xf]
      %v287 = vld [vmem:[%s252 + $0x58] sm:$0xf]
      %v288 = vld [vmem:[%s252 + $0x5c] sm:$0xf]
      %v289 = vld [vmem:[%s252 + $0x60] sm:$0xf]
      %v290 = vld [vmem:[%s252 + $0x64] sm:$0xf]
      %v291 = vld [vmem:[%s252 + $0x68] sm:$0xf]
      %v292 = vld [vmem:[%s252 + $0x6c] sm:$0xf]
      %v293 = vld [vmem:[%s252 + $0x70] sm:$0xf]
      %v294 = vld [vmem:[%s252 + $0x74] sm:$0xf]
      %v295 = vld [vmem:[%s252 + $0x78] sm:$0xf]
      %v296 = vld [vmem:[%s252 + $0x7c] sm:$0xf]
      %v297 = vld [vmem:[%s252 + $0x80] sm:$0xf]
      %v298 = vld [vmem:[%s252 + $0x84] sm:$0xf]
      %v299 = vld [vmem:[%s252 + $0x88] sm:$0xf]
      %v300 = vld [vmem:[%s252 + $0x8c] sm:$0xf]
      %v301 = vld [vmem:[%s252 + $0x90] sm:$0xf]
      %v302 = vld [vmem:[%s252 + $0x94] sm:$0xf]
      %v303 = vld [vmem:[%s252 + $0x98] sm:$0xf]
      %v304 = vld [vmem:[%s252 + $0x9c] sm:$0xf]
      %v305 = vld [vmem:[%s1] sm:$0x3]
      %v306 = vld [vmem:[%s2] sm:$0x1]
      %v308 = vlaneseq
      %v309 = vshrl.u32 %v308, 7
      %v310 = vsub.s32 0, %v309
      %v311 = vrot.slane %v306, %v310
      %v353 = vunpack.c.l.b16 %v265
      %v354 = vunpack.c.l.b16 %v266
      %v355 = vunpack.c.l.b16 %v267
      %v356 = vunpack.c.l.b16 %v268
      %v357 = vunpack.c.l.b16 %v269
      %v358 = vunpack.c.l.b16 %v270
      %v359 = vunpack.c.l.b16 %v271
      %v360 = vunpack.c.l.b16 %v272
      %v361 = vunpack.c.l.b16 %v273
      %v362 = vunpack.c.l.b16 %v274
      %v363 = vunpack.c.l.b16 %v275
      %v364 = vunpack.c.l.b16 %v276
      %v365 = vunpack.c.l.b16 %v277
      %v366 = vunpack.c.l.b16 %v278
      %v367 = vunpack.c.l.b16 %v279
      %v368 = vunpack.c.l.b16 %v280
      %v369 = vunpack.c.l.b16 %v281
      %v370 = vunpack.c.l.b16 %v282
      %v371 = vunpack.c.l.b16 %v283
      %v372 = vunpack.c.l.b16 %v284
      %v373 = vunpack.c.l.b16 %v285
      %v374 = vunpack.c.l.b16 %v286
      %v375 = vunpack.c.l.b16 %v287
      %v376 = vunpack.c.l.b16 %v288
      %v377 = vunpack.c.l.b16 %v289
      %v378 = vunpack.c.l.b16 %v290
      %v379 = vunpack.c.l.b16 %v291
      %v380 = vunpack.c.l.b16 %v292
      %v381 = vunpack.c.l.b16 %v293
      %v382 = vunpack.c.l.b16 %v294
      %v383 = vunpack.c.l.b16 %v295
      %v384 = vunpack.c.l.b16 %v296
      %v385 = vunpack.c.l.b16 %v297
      %v386 = vunpack.c.l.b16 %v298
      %v387 = vunpack.c.l.b16 %v299
      %v388 = vunpack.c.l.b16 %v300
      %v389 = vunpack.c.l.b16 %v301
      %v390 = vunpack.c.l.b16 %v302
      %v391 = vunpack.c.l.b16 %v303
      %v392 = vunpack.c.l.b16 %v304
      %v393 = vpack.c.b16 %v354, %v353
      %v394 = vpack.c.b16 %v356, %v355
      %v395 = vpack.c.b16 %v358, %v357
      %v396 = vpack.c.b16 %v360, %v359
      %v397 = vpack.c.b16 %v362, %v361
      %v398 = vpack.c.b16 %v364, %v363
      %v399 = vpack.c.b16 %v366, %v365
      %v400 = vpack.c.b16 %v368, %v367
      %v401 = vpack.c.b16 %v370, %v369
      %v402 = vpack.c.b16 %v372, %v371
      %v403 = vpack.c.b16 %v374, %v373
      %v404 = vpack.c.b16 %v376, %v375
      %v405 = vpack.c.b16 %v378, %v377
      %v406 = vpack.c.b16 %v380, %v379
      %v407 = vpack.c.b16 %v382, %v381
      %v408 = vpack.c.b16 %v384, %v383
      %v409 = vpack.c.b16 %v386, %v385
      %v410 = vpack.c.b16 %v388, %v387
      %v411 = vpack.c.b16 %v390, %v389
      %v412 = vpack.c.b16 %v392, %v391
      %vm413 = vcmask 31744
      %v415 = vsel %vm413, %v393, 0
      %v418 = vsel %vm413, %v394, 0
      %v421 = vsel %vm413, %v395, 0
      %v424 = vsel %vm413, %v396, 0
      %v427 = vsel %vm413, %v397, 0
      %v430 = vsel %vm413, %v398, 0
      %v433 = vsel %vm413, %v399, 0
      %v436 = vsel %vm413, %v400, 0
      %v439 = vsel %vm413, %v401, 0
      %v442 = vsel %vm413, %v402, 0
      %v445 = vsel %vm413, %v403, 0
      %v448 = vsel %vm413, %v404, 0
      %v451 = vsel %vm413, %v405, 0
      %v454 = vsel %vm413, %v406, 0
      %v457 = vsel %vm413, %v407, 0
      %v460 = vsel %vm413, %v408, 0
      %v463 = vsel %vm413, %v409, 0
      %v466 = vsel %vm413, %v410, 0
      %v469 = vsel %vm413, %v411, 0
      %v472 = vsel %vm413, %v412, 0
      %vm474 = vcmask 1041408
      %v476 = vsel %vm474, %v305, 0
      %478 = vmatprep.subr.bf16.mxu0 0
      %479 = vmatpush1.bf16.msra.mxu0 0
      %480 = vmatprep.subr.bf16.mxu0 0
      %481 = vmatpush1.bf16.msra.mxu0 0
      %482 = vmatprep.subr.bf16.mxu0 0
      %483 = vmatpush1.bf16.msra.mxu0 0
      %484 = vmatprep.subr.bf16.mxu0 0
      %485 = vmatpush1.bf16.msra.mxu0 0
      %486 = vmatprep.subr.bf16.mxu0 0
      %487 = vmatpush1.bf16.msra.mxu0 0
      %488 = vmatprep.subr.bf16.mxu0 0
      %489 = vmatpush1.bf16.msra.mxu0 0
      %490 = vmatprep.subr.bf16.mxu0 0
      %491 = vmatpush1.bf16.msra.mxu0 0
      %492 = vmatprep.subr.bf16.mxu0 0
      %493 = vmatpush1.bf16.msra.mxu0 %v476
      %494 = vmatprep.subr.bf16.mxu0 0
      %495 = vmatpush2.bf16.msra.mxu0 0
      %496 = vmatprep.subr.bf16.mxu0 0
      %497 = vmatpush2.bf16.msra.mxu0 0
      %498 = vmatprep.subr.bf16.mxu0 0
      %499 = vmatpush2.bf16.msra.mxu0 0
      %500 = vmatprep.subr.bf16.mxu0 0
      %501 = vmatpush2.bf16.msra.mxu0 0
      %502 = vmatprep.subr.bf16.mxu0 0
      %503 = vmatpush2.bf16.msra.mxu0 0
      %504 = vmatprep.subr.bf16.mxu0 0
      %505 = vmatpush2.bf16.msra.mxu0 0
      %506 = vmatprep.subr.bf16.mxu0 0
      %507 = vmatpush2.bf16.msra.mxu0 0
      %508 = vmatprep.subr.bf16.mxu0 0
      %509 = vmatpush2.bf16.msra.mxu0 0
      %510 = vmatprep.mubr.bf16.mxu0 0
      %511 = vmatmul.mubr.bf16.gmra.mxu0 %v415
      %v512 = vpop.f32.mrf.mxu0
      %v513 = vadd.f32 %v311, %v512
      %v514 = vpop.f32.mrf.mxu0
      %v515 = vpop.f32.mrf.mxu0
      %v516 = vadd.f32 %v311, %v515
      %v517 = vpop.f32.mrf.mxu0
      %518 = vmatprep.mubr.bf16.mxu0 0
      %519 = vmatmul.mubr.bf16.gmra.mxu0 %v418
      %v520 = vpop.f32.mrf.mxu0
      %v521 = vadd.f32 %v311, %v520
      %v522 = vpop.f32.mrf.mxu0
      %v523 = vpop.f32.mrf.mxu0
      %v524 = vadd.f32 %v311, %v523
      %v525 = vpop.f32.mrf.mxu0
      %526 = vmatprep.mubr.bf16.mxu0 0
      %527 = vmatmul.mubr.bf16.gmra.mxu0 %v421
      %v528 = vpop.f32.mrf.mxu0
      %v529 = vadd.f32 %v311, %v528
      %v530 = vpop.f32.mrf.mxu0
      %v531 = vpop.f32.mrf.mxu0
      %v532 = vadd.f32 %v311, %v531
      %v533 = vpop.f32.mrf.mxu0
      %534 = vmatprep.mubr.bf16.mxu0 0
      %535 = vmatmul.mubr.bf16.gmra.mxu0 %v424
      %v536 = vpop.f32.mrf.mxu0
      %v537 = vadd.f32 %v311, %v536
      %v538 = vpop.f32.mrf.mxu0
      %v539 = vpop.f32.mrf.mxu0
      %v540 = vadd.f32 %v311, %v539
      %v541 = vpop.f32.mrf.mxu0
      %542 = vmatprep.mubr.bf16.mxu0 0
      %543 = vmatmul.mubr.bf16.gmra.mxu0 %v427
      %v544 = vpop.f32.mrf.mxu0
      %v545 = vadd.f32 %v311, %v544
      %v546 = vpop.f32.mrf.mxu0
      %v547 = vpop.f32.mrf.mxu0
      %v548 = vadd.f32 %v311, %v547
      %v549 = vpop.f32.mrf.mxu0
      %550 = vmatprep.mubr.bf16.mxu0 0
      %551 = vmatmul.mubr.bf16.gmra.mxu0 %v430
      %v552 = vpop.f32.mrf.mxu0
      %v553 = vadd.f32 %v311, %v552
      %v554 = vpop.f32.mrf.mxu0
      %v555 = vpop.f32.mrf.mxu0
      %v556 = vadd.f32 %v311, %v555
      %v557 = vpop.f32.mrf.mxu0
      %558 = vmatprep.mubr.bf16.mxu0 0
      %559 = vmatmul.mubr.bf16.gmra.mxu0 %v433
      %v560 = vpop.f32.mrf.mxu0
      %v561 = vadd.f32 %v311, %v560
      %v562 = vpop.f32.mrf.mxu0
      %v563 = vpop.f32.mrf.mxu0
      %v564 = vadd.f32 %v311, %v563
      %v565 = vpop.f32.mrf.mxu0
      %566 = vmatprep.mubr.bf16.mxu0 0
      %567 = vmatmul.mubr.bf16.gmra.mxu0 %v436
      %v568 = vpop.f32.mrf.mxu0
      %v569 = vadd.f32 %v311, %v568
      %v570 = vpop.f32.mrf.mxu0
      %v571 = vpop.f32.mrf.mxu0
      %v572 = vadd.f32 %v311, %v571
      %v573 = vpop.f32.mrf.mxu0
      %574 = vmatprep.mubr.bf16.mxu0 0
      %575 = vmatmul.mubr.bf16.gmra.mxu0 %v439
      %v576 = vpop.f32.mrf.mxu0
      %v577 = vadd.f32 %v311, %v576
      %v578 = vpop.f32.mrf.mxu0
      %v579 = vpop.f32.mrf.mxu0
      %v580 = vadd.f32 %v311, %v579
      %v581 = vpop.f32.mrf.mxu0
      %582 = vmatprep.mubr.bf16.mxu0 0
      %583 = vmatmul.mubr.bf16.gmra.mxu0 %v442
      %v584 = vpop.f32.mrf.mxu0
      %v585 = vadd.f32 %v311, %v584
      %v586 = vpop.f32.mrf.mxu0
      %v587 = vpop.f32.mrf.mxu0
      %v588 = vadd.f32 %v311, %v587
      %v589 = vpop.f32.mrf.mxu0
      %590 = vmatprep.mubr.bf16.mxu0 0
      %591 = vmatmul.mubr.bf16.gmra.mxu0 %v445
      %v592 = vpop.f32.mrf.mxu0
      %v593 = vadd.f32 %v311, %v592
      %v594 = vpop.f32.mrf.mxu0
      %v595 = vpop.f32.mrf.mxu0
      %v596 = vadd.f32 %v311, %v595
      %v597 = vpop.f32.mrf.mxu0
      %598 = vmatprep.mubr.bf16.mxu0 0
      %599 = vmatmul.mubr.bf16.gmra.mxu0 %v448
      %v600 = vpop.f32.mrf.mxu0
      %v601 = vadd.f32 %v311, %v600
      %v602 = vpop.f32.mrf.mxu0
      %v603 = vpop.f32.mrf.mxu0
      %v604 = vadd.f32 %v311, %v603
      %v605 = vpop.f32.mrf.mxu0
      %606 = vmatprep.mubr.bf16.mxu0 0
      %607 = vmatmul.mubr.bf16.gmra.mxu0 %v451
      %v608 = vpop.f32.mrf.mxu0
      %v609 = vadd.f32 %v311, %v608
      %v610 = vpop.f32.mrf.mxu0
      %v611 = vpop.f32.mrf.mxu0
      %v612 = vadd.f32 %v311, %v611
      %v613 = vpop.f32.mrf.mxu0
      %614 = vmatprep.mubr.bf16.mxu0 0
      %615 = vmatmul.mubr.bf16.gmra.mxu0 %v454
      %v616 = vpop.f32.mrf.mxu0
      %v617 = vadd.f32 %v311, %v616
      %v618 = vpop.f32.mrf.mxu0
      %v619 = vpop.f32.mrf.mxu0
      %v620 = vadd.f32 %v311, %v619
      %v621 = vpop.f32.mrf.mxu0
      %622 = vmatprep.mubr.bf16.mxu0 0
      %623 = vmatmul.mubr.bf16.gmra.mxu0 %v457
      %v624 = vpop.f32.mrf.mxu0
      %v625 = vadd.f32 %v311, %v624
      %v626 = vpop.f32.mrf.mxu0
      %v627 = vpop.f32.mrf.mxu0
      %v628 = vadd.f32 %v311, %v627
      %v629 = vpop.f32.mrf.mxu0
      %630 = vmatprep.mubr.bf16.mxu0 0
      %631 = vmatmul.mubr.bf16.gmra.mxu0 %v460
      %v632 = vpop.f32.mrf.mxu0
      %v633 = vadd.f32 %v311, %v632
      %v634 = vpop.f32.mrf.mxu0
      %v635 = vpop.f32.mrf.mxu0
      %v636 = vadd.f32 %v311, %v635
      %v637 = vpop.f32.mrf.mxu0
      %638 = vmatprep.mubr.bf16.mxu0 0
      %639 = vmatmul.mubr.bf16.gmra.mxu0 %v463
      %v640 = vpop.f32.mrf.mxu0
      %v641 = vadd.f32 %v311, %v640
      %v642 = vpop.f32.mrf.mxu0
      %v643 = vpop.f32.mrf.mxu0
      %v644 = vadd.f32 %v311, %v643
      %v645 = vpop.f32.mrf.mxu0
      %646 = vmatprep.mubr.bf16.mxu0 0
      %647 = vmatmul.mubr.bf16.gmra.mxu0 %v466
      %v648 = vpop.f32.mrf.mxu0
      %v649 = vadd.f32 %v311, %v648
      %v650 = vpop.f32.mrf.mxu0
      %v651 = vpop.f32.mrf.mxu0
      %v652 = vadd.f32 %v311, %v651
      %v653 = vpop.f32.mrf.mxu0
      %654 = vmatprep.mubr.bf16.mxu0 0
      %655 = vmatmul.mubr.bf16.gmra.mxu0 %v469
      %v656 = vpop.f32.mrf.mxu0
      %v657 = vadd.f32 %v311, %v656
      %v658 = vpop.f32.mrf.mxu0
      %v659 = vpop.f32.mrf.mxu0
      %v660 = vadd.f32 %v311, %v659
      %v661 = vpop.f32.mrf.mxu0
      %662 = vmatprep.mubr.bf16.mxu0 0
      %663 = vmatmul.mubr.bf16.gmra.mxu0 %v472
      %v664 = vpop.f32.mrf.mxu0
      %v665 = vadd.f32 %v311, %v664
      %v666 = vpop.f32.mrf.mxu0
      %v667 = vpop.f32.mrf.mxu0
      %v668 = vadd.f32 %v311, %v667
      %v669 = vpop.f32.mrf.mxu0
      %670 = vdwg.mxu0
      %v671 = vsub.f32 0.0, %v513
      %v672 = vsub.f32 0.0, %v516
      %v673 = vsub.f32 0.0, %v521
      %v674 = vsub.f32 0.0, %v524
      %v675 = vsub.f32 0.0, %v529
      %v676 = vsub.f32 0.0, %v532
      %v677 = vsub.f32 0.0, %v537
      %v678 = vsub.f32 0.0, %v540
      %v679 = vsub.f32 0.0, %v545
      %v680 = vsub.f32 0.0, %v548
      %v681 = vsub.f32 0.0, %v553
      %v682 = vsub.f32 0.0, %v556
      %v683 = vsub.f32 0.0, %v561
      %v684 = vsub.f32 0.0, %v564
      %v685 = vsub.f32 0.0, %v569
      %v686 = vsub.f32 0.0, %v572
      %v687 = vsub.f32 0.0, %v577
      %v688 = vsub.f32 0.0, %v580
      %v689 = vsub.f32 0.0, %v585
      %v690 = vsub.f32 0.0, %v588
      %v691 = vsub.f32 0.0, %v593
      %v692 = vsub.f32 0.0, %v596
      %v693 = vsub.f32 0.0, %v601
      %v694 = vsub.f32 0.0, %v604
      %v695 = vsub.f32 0.0, %v609
      %v696 = vsub.f32 0.0, %v612
      %v697 = vsub.f32 0.0, %v617
      %v698 = vsub.f32 0.0, %v620
      %v699 = vsub.f32 0.0, %v625
      %v700 = vsub.f32 0.0, %v628
      %v701 = vsub.f32 0.0, %v633
      %v702 = vsub.f32 0.0, %v636
      %v703 = vsub.f32 0.0, %v641
      %v704 = vsub.f32 0.0, %v644
      %v705 = vsub.f32 0.0, %v649
      %v706 = vsub.f32 0.0, %v652
      %v707 = vsub.f32 0.0, %v657
      %v708 = vsub.f32 0.0, %v660
      %v709 = vsub.f32 0.0, %v665
      %v710 = vsub.f32 0.0, %v668
      %v711 = vmul.f32 %v671, 1.442695
      %v712 = vpow.pop %v711
      %v713 = vmul.f32 %v672, 1.442695
      %v714 = vpow.pop %v713
      %v715 = vmul.f32 %v673, 1.442695
      %v716 = vpow.pop %v715
      %v717 = vmul.f32 %v674, 1.442695
      %v718 = vpow.pop %v717
      %v719 = vmul.f32 %v675, 1.442695
      %v720 = vpow.pop %v719
      %v721 = vmul.f32 %v676, 1.442695
      %v722 = vpow.pop %v721
      %v723 = vmul.f32 %v677, 1.442695
      %v724 = vpow.pop %v723
      %v725 = vmul.f32 %v678, 1.442695
      %v726 = vpow.pop %v725
      %v727 = vmul.f32 %v679, 1.442695
      %v728 = vpow.pop %v727
      %v729 = vmul.f32 %v680, 1.442695
      %v730 = vpow.pop %v729
      %v731 = vmul.f32 %v681, 1.442695
      %v732 = vpow.pop %v731
      %v733 = vmul.f32 %v682, 1.442695
      %v734 = vpow.pop %v733
      %v735 = vmul.f32 %v683, 1.442695
      %v736 = vpow.pop %v735
      %v737 = vmul.f32 %v684, 1.442695
      %v738 = vpow.pop %v737
      %v739 = vmul.f32 %v685, 1.442695
      %v740 = vpow.pop %v739
      %v741 = vmul.f32 %v686, 1.442695
      %v742 = vpow.pop %v741
      %v743 = vmul.f32 %v687, 1.442695
      %v744 = vpow.pop %v743
      %v745 = vmul.f32 %v688, 1.442695
      %v746 = vpow.pop %v745
      %v747 = vmul.f32 %v689, 1.442695
      %v748 = vpow.pop %v747
      %v749 = vmul.f32 %v690, 1.442695
      %v750 = vpow.pop %v749
      %v751 = vmul.f32 %v691, 1.442695
      %v752 = vpow.pop %v751
      %v753 = vmul.f32 %v692, 1.442695
      %v754 = vpow.pop %v753
      %v755 = vmul.f32 %v693, 1.442695
      %v756 = vpow.pop %v755
      %v757 = vmul.f32 %v694, 1.442695
      %v758 = vpow.pop %v757
      %v759 = vmul.f32 %v695, 1.442695
      %v760 = vpow.pop %v759
      %v761 = vmul.f32 %v696, 1.442695
      %v762 = vpow.pop %v761
      %v763 = vmul.f32 %v697, 1.442695
      %v764 = vpow.pop %v763
      %v765 = vmul.f32 %v698, 1.442695
      %v766 = vpow.pop %v765
      %v767 = vmul.f32 %v699, 1.442695
      %v768 = vpow.pop %v767
      %v769 = vmul.f32 %v700, 1.442695
      %v770 = vpow.pop %v769
      %v771 = vmul.f32 %v701, 1.442695
      %v772 = vpow.pop %v771
      %v773 = vmul.f32 %v702, 1.442695
      %v774 = vpow.pop %v773
      %v775 = vmul.f32 %v703, 1.442695
      %v776 = vpow.pop %v775
      %v777 = vmul.f32 %v704, 1.442695
      %v778 = vpow.pop %v777
      %v779 = vmul.f32 %v705, 1.442695
      %v780 = vpow.pop %v779
      %v781 = vmul.f32 %v706, 1.442695
      %v782 = vpow.pop %v781
      %v783 = vmul.f32 %v707, 1.442695
      %v784 = vpow.pop %v783
      %v785 = vmul.f32 %v708, 1.442695
      %v786 = vpow.pop %v785
      %v787 = vmul.f32 %v709, 1.442695
      %v788 = vpow.pop %v787
      %v789 = vmul.f32 %v710, 1.442695
      %v790 = vpow.pop %v789
      %v791 = vadd.f32 %v712, 1.0
      %v792 = vadd.f32 %v714, 1.0
      %v793 = vadd.f32 %v716, 1.0
      %v794 = vadd.f32 %v718, 1.0
      %v795 = vadd.f32 %v720, 1.0
      %v796 = vadd.f32 %v722, 1.0
      %v797 = vadd.f32 %v724, 1.0
      %v798 = vadd.f32 %v726, 1.0
      %v799 = vadd.f32 %v728, 1.0
      %v800 = vadd.f32 %v730, 1.0
      %v801 = vadd.f32 %v732, 1.0
      %v802 = vadd.f32 %v734, 1.0
      %v803 = vadd.f32 %v736, 1.0
      %v804 = vadd.f32 %v738, 1.0
      %v805 = vadd.f32 %v740, 1.0
      %v806 = vadd.f32 %v742, 1.0
      %v807 = vadd.f32 %v744, 1.0
      %v808 = vadd.f32 %v746, 1.0
      %v809 = vadd.f32 %v748, 1.0
      %v810 = vadd.f32 %v750, 1.0
      %v811 = vadd.f32 %v752, 1.0
      %v812 = vadd.f32 %v754, 1.0
      %v813 = vadd.f32 %v756, 1.0
      %v814 = vadd.f32 %v758, 1.0
      %v815 = vadd.f32 %v760, 1.0
      %v816 = vadd.f32 %v762, 1.0
      %v817 = vadd.f32 %v764, 1.0
      %v818 = vadd.f32 %v766, 1.0
      %v819 = vadd.f32 %v768, 1.0
      %v820 = vadd.f32 %v770, 1.0
      %v821 = vadd.f32 %v772, 1.0
      %v822 = vadd.f32 %v774, 1.0
      %v823 = vadd.f32 %v776, 1.0
      %v824 = vadd.f32 %v778, 1.0
      %v825 = vadd.f32 %v780, 1.0
      %v826 = vadd.f32 %v782, 1.0
      %v827 = vadd.f32 %v784, 1.0
      %v828 = vadd.f32 %v786, 1.0
      %v829 = vadd.f32 %v788, 1.0
      %v830 = vadd.f32 %v790, 1.0
      %v831 = vrcp.pop %v791
      %v832 = vrcp.pop %v792
      %v833 = vrcp.pop %v793
      %v834 = vrcp.pop %v794
      %v835 = vrcp.pop %v795
      %v836 = vrcp.pop %v796
      %v837 = vrcp.pop %v797
      %v838 = vrcp.pop %v798
      %v839 = vrcp.pop %v799
      %v840 = vrcp.pop %v800
      %v841 = vrcp.pop %v801
      %v842 = vrcp.pop %v802
      %v843 = vrcp.pop %v803
      %v844 = vrcp.pop %v804
      %v845 = vrcp.pop %v805
      %v846 = vrcp.pop %v806
      %v847 = vrcp.pop %v807
      %v848 = vrcp.pop %v808
      %v849 = vrcp.pop %v809
      %v850 = vrcp.pop %v810
      %v851 = vrcp.pop %v811
      %v852 = vrcp.pop %v812
      %v853 = vrcp.pop %v813
      %v854 = vrcp.pop %v814
      %v855 = vrcp.pop %v815
      %v856 = vrcp.pop %v816
      %v857 = vrcp.pop %v817
      %v858 = vrcp.pop %v818
      %v859 = vrcp.pop %v819
      %v860 = vrcp.pop %v820
      %v861 = vrcp.pop %v821
      %v862 = vrcp.pop %v822
      %v863 = vrcp.pop %v823
      %v864 = vrcp.pop %v824
      %v865 = vrcp.pop %v825
      %v866 = vrcp.pop %v826
      %v867 = vrcp.pop %v827
      %v868 = vrcp.pop %v828
      %v869 = vrcp.pop %v829
      %v870 = vrcp.pop %v830
      %v871 = vmul.f32 %v513, %v831
      %v872 = vmul.f32 %v516, %v832
      %v873 = vmul.f32 %v521, %v833
      %v874 = vmul.f32 %v524, %v834
      %v875 = vmul.f32 %v529, %v835
      %v876 = vmul.f32 %v532, %v836
      %v877 = vmul.f32 %v537, %v837
      %v878 = vmul.f32 %v540, %v838
      %v879 = vmul.f32 %v545, %v839
      %v880 = vmul.f32 %v548, %v840
      %v881 = vmul.f32 %v553, %v841
      %v882 = vmul.f32 %v556, %v842
      %v883 = vmul.f32 %v561, %v843
      %v884 = vmul.f32 %v564, %v844
      %v885 = vmul.f32 %v569, %v845
      %v886 = vmul.f32 %v572, %v846
      %v887 = vmul.f32 %v577, %v847
      %v888 = vmul.f32 %v580, %v848
      %v889 = vmul.f32 %v585, %v849
      %v890 = vmul.f32 %v588, %v850
      %v891 = vmul.f32 %v593, %v851
      %v892 = vmul.f32 %v596, %v852
      %v893 = vmul.f32 %v601, %v853
      %v894 = vmul.f32 %v604, %v854
      %v895 = vmul.f32 %v609, %v855
      %v896 = vmul.f32 %v612, %v856
      %v897 = vmul.f32 %v617, %v857
      %v898 = vmul.f32 %v620, %v858
      %v899 = vmul.f32 %v625, %v859
      %v900 = vmul.f32 %v628, %v860
      %v901 = vmul.f32 %v633, %v861
      %v902 = vmul.f32 %v636, %v862
      %v903 = vmul.f32 %v641, %v863
      %v904 = vmul.f32 %v644, %v864
      %v905 = vmul.f32 %v649, %v865
      %v906 = vmul.f32 %v652, %v866
      %v907 = vmul.f32 %v657, %v867
      %v908 = vmul.f32 %v660, %v868
      %v909 = vmul.f32 %v665, %v869
      %v910 = vmul.f32 %v668, %v870
      %vm911 = vcmask 58368
      %912 = vst.msk [vmem:[#allocation2] sm:$0x3] %vm911, 0.0
      %913 = vst.msk [vmem:[#allocation2 + $0x18] sm:$0x3] %vm911, 0.0
      %914 = vst.msk [vmem:[#allocation2 + $0x30] sm:$0x3] %vm911, 0.0
      %915 = vst.msk [vmem:[#allocation2 + $0x48] sm:$0x3] %vm911, 0.0
      %916 = vst.msk [vmem:[#allocation2 + $0x60] sm:$0x3] %vm911, 0.0
      %917 = vst.msk [vmem:[#allocation2 + $0x78] sm:$0x3] %vm911, 0.0
      %918 = vst.msk [vmem:[#allocation2 + $0x90] sm:$0x3] %vm911, 0.0
      %919 = vst.msk [vmem:[#allocation2 + $0xa8] sm:$0x3] %vm911, 0.0
      %920 = vst.msk [vmem:[#allocation2 + $0xc0] sm:$0x3] %vm911, 0.0
      %921 = vst.msk [vmem:[#allocation2 + $0xd8] sm:$0x3] %vm911, 0.0
      %922 = vst.msk [vmem:[#allocation2 + $0xf0] sm:$0x3] %vm911, 0.0
      %923 = vst.msk [vmem:[#allocation2 + $0x108] sm:$0x3] %vm911, 0.0
      %924 = vst.msk [vmem:[#allocation2 + $0x120] sm:$0x3] %vm911, 0.0
      %925 = vst.msk [vmem:[#allocation2 + $0x138] sm:$0x3] %vm911, 0.0
      %926 = vst.msk [vmem:[#allocation2 + $0x150] sm:$0x3] %vm911, 0.0
      %927 = vst.msk [vmem:[#allocation2 + $0x168] sm:$0x3] %vm911, 0.0
      %928 = vst.msk [vmem:[#allocation2 + $0x180] sm:$0x3] %vm911, 0.0
      %929 = vst.msk [vmem:[#allocation2 + $0x198] sm:$0x3] %vm911, 0.0
      %930 = vst.msk [vmem:[#allocation2 + $0x1b0] sm:$0x3] %vm911, 0.0
      %931 = vst.msk [vmem:[#allocation2 + $0x1c8] sm:$0x3] %vm911, 0.0
      %vm932 = vcmask 62464
      %933 = vst.msk [vmem:[#allocation2 + $0x12] sm:$0x3f] %vm932, 0.0
      %934 = vst.msk [vmem:[#allocation2 + $0x2a] sm:$0x3f] %vm932, 0.0
      %935 = vst.msk [vmem:[#allocation2 + $0x42] sm:$0x3f] %vm932, 0.0
      %936 = vst.msk [vmem:[#allocation2 + $0x5a] sm:$0x3f] %vm932, 0.0
      %937 = vst.msk [vmem:[#allocation2 + $0x72] sm:$0x3f] %vm932, 0.0
      %938 = vst.msk [vmem:[#allocation2 + $0x8a] sm:$0x3f] %vm932, 0.0
      %939 = vst.msk [vmem:[#allocation2 + $0xa2] sm:$0x3f] %vm932, 0.0
      %940 = vst.msk [vmem:[#allocation2 + $0xba] sm:$0x3f] %vm932, 0.0
      %941 = vst.msk [vmem:[#allocation2 + $0xd2] sm:$0x3f] %vm932, 0.0
      %942 = vst.msk [vmem:[#allocation2 + $0xea] sm:$0x3f] %vm932, 0.0
      %943 = vst.msk [vmem:[#allocation2 + $0x102] sm:$0x3f] %vm932, 0.0
      %944 = vst.msk [vmem:[#allocation2 + $0x11a] sm:$0x3f] %vm932, 0.0
      %945 = vst.msk [vmem:[#allocation2 + $0x132] sm:$0x3f] %vm932, 0.0
      %946 = vst.msk [vmem:[#allocation2 + $0x14a] sm:$0x3f] %vm932, 0.0
      %947 = vst.msk [vmem:[#allocation2 + $0x162] sm:$0x3f] %vm932, 0.0
      %948 = vst.msk [vmem:[#allocation2 + $0x17a] sm:$0x3f] %vm932, 0.0
      %949 = vst.msk [vmem:[#allocation2 + $0x192] sm:$0x3f] %vm932, 0.0
      %950 = vst.msk [vmem:[#allocation2 + $0x1aa] sm:$0x3f] %vm932, 0.0
      %951 = vst.msk [vmem:[#allocation2 + $0x1c2] sm:$0x3f] %vm932, 0.0
      %952 = vst.msk [vmem:[#allocation2 + $0x1da] sm:$0x3f] %vm932, 0.0
      %vm953 = vcmask 64512
      %954 = vst.msk [vmem:[#allocation2 + $0x2] sm:$0xff] %vm953, %v871
      %955 = vst.msk [vmem:[#allocation2 + $0xa] sm:$0xff] %vm953, %v872
      %956 = vst.msk [vmem:[#allocation2 + $0x1a] sm:$0xff] %vm953, %v873
      %957 = vst.msk [vmem:[#allocation2 + $0x22] sm:$0xff] %vm953, %v874
      %958 = vst.msk [vmem:[#allocation2 + $0x32] sm:$0xff] %vm953, %v875
      %959 = vst.msk [vmem:[#allocation2 + $0x3a] sm:$0xff] %vm953, %v876
      %960 = vst.msk [vmem:[#allocation2 + $0x4a] sm:$0xff] %vm953, %v877
      %961 = vst.msk [vmem:[#allocation2 + $0x52] sm:$0xff] %vm953, %v878
      %962 = vst.msk [vmem:[#allocation2 + $0x62] sm:$0xff] %vm953, %v879
      %963 = vst.msk [vmem:[#allocation2 + $0x6a] sm:$0xff] %vm953, %v880
      %964 = vst.msk [vmem:[#allocation2 + $0x7a] sm:$0xff] %vm953, %v881
      %965 = vst.msk [vmem:[#allocation2 + $0x82] sm:$0xff] %vm953, %v882
      %966 = vst.msk [vmem:[#allocation2 + $0x92] sm:$0xff] %vm953, %v883
      %967 = vst.msk [vmem:[#allocation2 + $0x9a] sm:$0xff] %vm953, %v884
      %968 = vst.msk [vmem:[#allocation2 + $0xaa] sm:$0xff] %vm953, %v885
      %969 = vst.msk [vmem:[#allocation2 + $0xb2] sm:$0xff] %vm953, %v886
      %970 = vst.msk [vmem:[#allocation2 + $0xc2] sm:$0xff] %vm953, %v887
      %971 = vst.msk [vmem:[#allocation2 + $0xca] sm:$0xff] %vm953, %v888
      %972 = vst.msk [vmem:[#allocation2 + $0xda] sm:$0xff] %vm953, %v889
      %973 = vst.msk [vmem:[#allocation2 + $0xe2] sm:$0xff] %vm953, %v890
      %974 = vst.msk [vmem:[#allocation2 + $0xf2] sm:$0xff] %vm953, %v891
      %975 = vst.msk [vmem:[#allocation2 + $0xfa] sm:$0xff] %vm953, %v892
      %976 = vst.msk [vmem:[#allocation2 + $0x10a] sm:$0xff] %vm953, %v893
      %977 = vst.msk [vmem:[#allocation2 + $0x112] sm:$0xff] %vm953, %v894
      %978 = vst.msk [vmem:[#allocation2 + $0x122] sm:$0xff] %vm953, %v895
      %979 = vst.msk [vmem:[#allocation2 + $0x12a] sm:$0xff] %vm953, %v896
      %980 = vst.msk [vmem:[#allocation2 + $0x13a] sm:$0xff] %vm953, %v897
      %981 = vst.msk [vmem:[#allocation2 + $0x142] sm:$0xff] %vm953, %v898
      %982 = vst.msk [vmem:[#allocation2 + $0x152] sm:$0xff] %vm953, %v899
      %983 = vst.msk [vmem:[#allocation2 + $0x15a] sm:$0xff] %vm953, %v900
      %984 = vst.msk [vmem:[#allocation2 + $0x16a] sm:$0xff] %vm953, %v901
      %985 = vst.msk [vmem:[#allocation2 + $0x172] sm:$0xff] %vm953, %v902
      %986 = vst.msk [vmem:[#allocation2 + $0x182] sm:$0xff] %vm953, %v903
      %987 = vst.msk [vmem:[#allocation2 + $0x18a] sm:$0xff] %vm953, %v904
      %988 = vst.msk [vmem:[#allocation2 + $0x19a] sm:$0xff] %vm953, %v905
      %989 = vst.msk [vmem:[#allocation2 + $0x1a2] sm:$0xff] %vm953, %v906
      %990 = vst.msk [vmem:[#allocation2 + $0x1b2] sm:$0xff] %vm953, %v907
      %991 = vst.msk [vmem:[#allocation2 + $0x1ba] sm:$0xff] %vm953, %v908
      %992 = vst.msk [vmem:[#allocation2 + $0x1ca] sm:$0xff] %vm953, %v909
      %993 = vst.msk [vmem:[#allocation2 + $0x1d2] sm:$0xff] %vm953, %v910
      %p994 = scmp.eq.s32.totalorder %s21, 0
      // Predicated region
      $region41: #{gsconv_forward.1} parent=39 // pred_check
        %p995 = pneg %p994
      $region42: #{gsconv_forward.1} parent=39 // pred_check_branch
        %997 = sbr.rel (%p995) target = $region44
      $region43: #{gsconv_forward.1} parent=39 // pred_region
        %998 = vst.msk [vmem:[#allocation2 + $0x2] sm:$0xff] %vm953, 0.0
        %999 = vst.msk [vmem:[#allocation2 + $0xa] sm:$0xff] %vm953, 0.0
        %1000 = vst.msk [vmem:[#allocation2 + $0x1a] sm:$0xff] %vm953, 0.0
        %1001 = vst.msk [vmem:[#allocation2 + $0x22] sm:$0xff] %vm953, 0.0
        %s1002 = scalar_lea.vmem [#allocation2], 432
        %1003 = vst.msk [vmem:[%s1002 + $0x2] sm:$0xff] %vm953, 0.0
        %1004 = vst.msk [vmem:[%s1002 + $0xa] sm:$0xff] %vm953, 0.0
        %1005 = vst.msk [vmem:[%s1002 + $0x1a] sm:$0xff] %vm953, 0.0
        %1006 = vst.msk [vmem:[%s1002 + $0x22] sm:$0xff] %vm953, 0.0
      $region44: #{gsconv_forward.1} parent=39 // pred_fallthru
        _
      %v1007 = vld [vmem:[%s3] sm:$0xff]
      %v1008 = vld [vmem:[%s3 + $0x8] sm:$0xff]
      %v1009 = vld [vmem:[%s3 + $0x10] sm:$0xff]
      %v1010 = vld [vmem:[%s3 + $0x18] sm:$0x1]
      %v1011 = vld [vmem:[%s4] sm:$0x1]
      %s1012 = smul.u32 0, 24
      %s1013 = scalar_lea.vmem [#allocation2], %s1012
      %v1014 = vld [vmem:[%s1013] sm:$0xff]
      %v1015 = vld [vmem:[%s1013 + $0x8] sm:$0xff]
      %v1016 = vld [vmem:[%s1013 + $0x10] sm:$0xff]
      %v1017 = vld [vmem:[%s1013 + $0x18] sm:$0xff]
      %v1018 = vld [vmem:[%s1013 + $0x20] sm:$0xff]
      %v1019 = vld [vmem:[%s1013 + $0x28] sm:$0xff]
      %v1020 = vld [vmem:[%s1013 + $0x30] sm:$0xff]
      %v1021 = vld [vmem:[%s1013 + $0x38] sm:$0xff]
      %v1022 = vld [vmem:[%s1013 + $0x40] sm:$0xff]
      %v1023 = vld [vmem:[%s1013 + $0x48] sm:$0xff]
      %v1024 = vld [vmem:[%s1013 + $0x50] sm:$0xff]
      %v1025 = vld [vmem:[%s1013 + $0x58] sm:$0xff]
      %v1026 = vld [vmem:[%s1013 + $0x60] sm:$0xff]
      %v1027 = vld [vmem:[%s1013 + $0x68] sm:$0xff]
      %v1028 = vld [vmem:[%s1013 + $0x70] sm:$0xff]
      %v1029 = vld [vmem:[%s1013 + $0x78] sm:$0xff]
      %v1030 = vld [vmem:[%s1013 + $0x80] sm:$0xff]
      %v1031 = vld [vmem:[%s1013 + $0x88] sm:$0xff]
      %v1032 = vld [vmem:[%s1013 + $0x90] sm:$0xff]
      %v1033 = vld [vmem:[%s1013 + $0x98] sm:$0xff]
      %v1034 = vld [vmem:[%s1013 + $0xa0] sm:$0xff]
      %v1035 = vld [vmem:[%s1013 + $0xa8] sm:$0xff]
      %v1036 = vld [vmem:[%s1013 + $0xb0] sm:$0xff]
      %v1037 = vld [vmem:[%s1013 + $0xb8] sm:$0xff]
      %v1038 = vld [vmem:[%s1013 + $0xc0] sm:$0xff]
      %v1039 = vld [vmem:[%s1013 + $0xc8] sm:$0xff]
      %v1040 = vld [vmem:[%s1013 + $0xd0] sm:$0xff]
      %v1041 = vld [vmem:[%s1013 + $0xd8] sm:$0xff]
      %v1042 = vld [vmem:[%s1013 + $0xe0] sm:$0xff]
      %v1043 = vld [vmem:[%s1013 + $0xe8] sm:$0xff]
      %v1044 = vld [vmem:[%s1013 + $0xf0] sm:$0xff]
      %v1045 = vld [vmem:[%s1013 + $0xf8] sm:$0xff]
      %v1046 = vld [vmem:[%s1013 + $0x100] sm:$0xff]
      %v1047 = vld [vmem:[%s1013 + $0x108] sm:$0xff]
      %v1048 = vld [vmem:[%s1013 + $0x110] sm:$0xff]
      %v1049 = vld [vmem:[%s1013 + $0x118] sm:$0xff]
      %v1050 = vld [vmem:[%s1013 + $0x120] sm:$0xff]
      %v1051 = vld [vmem:[%s1013 + $0x128] sm:$0xff]
      %v1052 = vld [vmem:[%s1013 + $0x130] sm:$0xff]
      %v1053 = vld [vmem:[%s1013 + $0x138] sm:$0xff]
      %v1054 = vld [vmem:[%s1013 + $0x140] sm:$0xff]
      %v1055 = vld [vmem:[%s1013 + $0x148] sm:$0xff]
      %v1056 = vld [vmem:[%s1013 + $0x150] sm:$0xff]
      %v1057 = vld [vmem:[%s1013 + $0x158] sm:$0xff]
      %v1058 = vld [vmem:[%s1013 + $0x160] sm:$0xff]
      %v1059 = vld [vmem:[%s1013 + $0x168] sm:$0xff]
      %v1060 = vld [vmem:[%s1013 + $0x170] sm:$0xff]
      %v1061 = vld [vmem:[%s1013 + $0x178] sm:$0xff]
      %v1062 = vlaneseq
      %v1063 = vshrl.u32 %v1062, 7
      %v1064 = vsub.s32 0, %v1063
      %v1065 = vrot.slane %v1007, %v1064
      %v1066 = vmul.f32 %v1014, %v1065
      %v1067 = vmul.f32 %v1015, %v1065
      %v1068 = vmul.f32 %v1017, %v1065
      %v1069 = vmul.f32 %v1018, %v1065
      %v1070 = vmul.f32 %v1020, %v1065
      %v1071 = vmul.f32 %v1021, %v1065
      %v1072 = vmul.f32 %v1023, %v1065
      %v1073 = vmul.f32 %v1024, %v1065
      %v1074 = vmul.f32 %v1026, %v1065
      %v1075 = vmul.f32 %v1027, %v1065
      %v1076 = vmul.f32 %v1029, %v1065
      %v1077 = vmul.f32 %v1030, %v1065
      %v1078 = vmul.f32 %v1032, %v1065
      %v1079 = vmul.f32 %v1033, %v1065
      %v1080 = vmul.f32 %v1035, %v1065
      %v1081 = vmul.f32 %v1036, %v1065
      %v1082 = vmul.f32 %v1038, %v1065
      %v1083 = vmul.f32 %v1039, %v1065
      %v1084 = vmul.f32 %v1041, %v1065
      %v1085 = vmul.f32 %v1042, %v1065
      %v1086 = vmul.f32 %v1044, %v1065
      %v1087 = vmul.f32 %v1045, %v1065
      %v1088 = vmul.f32 %v1047, %v1065
      %v1089 = vmul.f32 %v1048, %v1065
      %v1090 = vmul.f32 %v1050, %v1065
      %v1091 = vmul.f32 %v1051, %v1065
      %v1092 = vmul.f32 %v1053, %v1065
      %v1093 = vmul.f32 %v1054, %v1065
      %v1094 = vmul.f32 %v1056, %v1065
      %v1095 = vmul.f32 %v1057, %v1065
      %v1096 = vmul.f32 %v1059, %v1065
      %v1097 = vmul.f32 %v1060, %v1065
      %v1098 = vadd.f32 %v1066, 0.0
      %v1099 = vadd.f32 %v1067, 0.0
      %v1100 = vadd.f32 %v1068, 0.0
      %v1101 = vadd.f32 %v1069, 0.0
      %v1102 = vadd.f32 %v1070, 0.0
      %v1103 = vadd.f32 %v1071, 0.0
      %v1104 = vadd.f32 %v1072, 0.0
      %v1105 = vadd.f32 %v1073, 0.0
      %v1106 = vadd.f32 %v1074, 0.0
      %v1107 = vadd.f32 %v1075, 0.0
      %v1108 = vadd.f32 %v1076, 0.0
      %v1109 = vadd.f32 %v1077, 0.0
      %v1110 = vadd.f32 %v1078, 0.0
      %v1111 = vadd.f32 %v1079, 0.0
      %v1112 = vadd.f32 %v1080, 0.0
      %v1113 = vadd.f32 %v1081, 0.0
      %v1114 = vadd.f32 %v1082, 0.0
      %v1115 = vadd.f32 %v1083, 0.0
      %v1116 = vadd.f32 %v1084, 0.0
      %v1117 = vadd.f32 %v1085, 0.0
      %v1118 = vadd.f32 %v1086, 0.0
      %v1119 = vadd.f32 %v1087, 0.0
      %v1120 = vadd.f32 %v1088, 0.0
      %v1121 = vadd.f32 %v1089, 0.0
      %v1122 = vadd.f32 %v1090, 0.0
      %v1123 = vadd.f32 %v1091, 0.0
      %v1124 = vadd.f32 %v1092, 0.0
      %v1125 = vadd.f32 %v1093, 0.0
      %v1126 = vadd.f32 %v1094, 0.0
      %v1127 = vadd.f32 %v1095, 0.0
      %v1128 = vadd.f32 %v1096, 0.0
      %v1129 = vadd.f32 %v1097, 0.0
      %v1130 = vlaneseq
      %v1131 = vshrl.u32 %v1130, 7
      %v1132 = vsub.s32 1, %v1131
      %v1133 = vrot.slane %v1007, %v1132
      %v1134 = vmul.f32 %v1014, %v1133
      %v1135 = vmul.f32 %v1015, %v1133
      %v1136 = vmul.f32 %v1016, %v1133
      %v1137 = vmul.f32 %v1017, %v1133
      %v1138 = vmul.f32 %v1018, %v1133
      %v1139 = vmul.f32 %v1019, %v1133
      %v1140 = vmul.f32 %v1020, %v1133
      %v1141 = vmul.f32 %v1021, %v1133
      %v1142 = vmul.f32 %v1022, %v1133
      %v1143 = vmul.f32 %v1023, %v1133
      %v1144 = vmul.f32 %v1024, %v1133
      %v1145 = vmul.f32 %v1025, %v1133
      %v1146 = vmul.f32 %v1026, %v1133
      %v1147 = vmul.f32 %v1027, %v1133
      %v1148 = vmul.f32 %v1028, %v1133
      %v1149 = vmul.f32 %v1029, %v1133
      %v1150 = vmul.f32 %v1030, %v1133
      %v1151 = vmul.f32 %v1031, %v1133
      %v1152 = vmul.f32 %v1032, %v1133
      %v1153 = vmul.f32 %v1033, %v1133
      %v1154 = vmul.f32 %v1034, %v1133
      %v1155 = vmul.f32 %v1035, %v1133
      %v1156 = vmul.f32 %v1036, %v1133
      %v1157 = vmul.f32 %v1037, %v1133
      %v1158 = vmul.f32 %v1038, %v1133
      %v1159 = vmul.f32 %v1039, %v1133
      %v1160 = vmul.f32 %v1040, %v1133
      %v1161 = vmul.f32 %v1041, %v1133
      %v1162 = vmul.f32 %v1042, %v1133
      %v1163 = vmul.f32 %v1043, %v1133
      %v1164 = vmul.f32 %v1044, %v1133
      %v1165 = vmul.f32 %v1045, %v1133
      %v1166 = vmul.f32 %v1046, %v1133
      %v1167 = vmul.f32 %v1047, %v1133
      %v1168 = vmul.f32 %v1048, %v1133
      %v1169 = vmul.f32 %v1049, %v1133
      %v1170 = vmul.f32 %v1050, %v1133
      %v1171 = vmul.f32 %v1051, %v1133
      %v1172 = vmul.f32 %v1052, %v1133
      %v1173 = vmul.f32 %v1053, %v1133
      %v1174 = vmul.f32 %v1054, %v1133
      %v1175 = vmul.f32 %v1055, %v1133
      %v1176 = vmul.f32 %v1056, %v1133
      %v1177 = vmul.f32 %v1057, %v1133
      %v1178 = vmul.f32 %v1058, %v1133
      %v1179 = vmul.f32 %v1059, %v1133
      %v1180 = vmul.f32 %v1060, %v1133
      %v1181 = vmul.f32 %v1061, %v1133
      %vm1230 = vcmask 1046528
      %v1231 = vrot.slane %v1134, 1
      %v1232 = vrot.slane %v1135, 1
      %v1233 = vsel %vm1230, %v1231, %v1232
      %v1234 = vrot.slane %v1136, 1
      %v1235 = vsel %vm1230, %v1232, %v1234
      %v1236 = vrot.slane %v1137, 1
      %v1237 = vrot.slane %v1138, 1
      %v1238 = vsel %vm1230, %v1236, %v1237
      %v1239 = vrot.slane %v1139, 1
      %v1240 = vsel %vm1230, %v1237, %v1239
      %v1241 = vrot.slane %v1140, 1
      %v1242 = vrot.slane %v1141, 1
      %v1243 = vsel %vm1230, %v1241, %v1242
      %v1244 = vrot.slane %v1142, 1
      %v1245 = vsel %vm1230, %v1242, %v1244
      %v1246 = vrot.slane %v1143, 1
      %v1247 = vrot.slane %v1144, 1
      %v1248 = vsel %vm1230, %v1246, %v1247
      %v1249 = vrot.slane %v1145, 1
      %v1250 = vsel %vm1230, %v1247, %v1249
      %v1251 = vrot.slane %v1146, 1
      %v1252 = vrot.slane %v1147, 1
      %v1253 = vsel %vm1230, %v1251, %v1252
      %v1254 = vrot.slane %v1148, 1
      %v1255 = vsel %vm1230, %v1252, %v1254
      %v1256 = vrot.slane %v1149, 1
      %v1257 = vrot.slane %v1150, 1
      %v1258 = vsel %vm1230, %v1256, %v1257
      %v1259 = vrot.slane %v1151, 1
      %v1260 = vsel %vm1230, %v1257, %v1259
      %v1261 = vrot.slane %v1152, 1
      %v1262 = vrot.slane %v1153, 1
      %v1263 = vsel %vm1230, %v1261, %v1262
      %v1264 = vrot.slane %v1154, 1
      %v1265 = vsel %vm1230, %v1262, %v1264
      %v1266 = vrot.slane %v1155, 1
      %v1267 = vrot.slane %v1156, 1
      %v1268 = vsel %vm1230, %v1266, %v1267
      %v1269 = vrot.slane %v1157, 1
      %v1270 = vsel %vm1230, %v1267, %v1269
      %v1271 = vrot.slane %v1158, 1
      %v1272 = vrot.slane %v1159, 1
      %v1273 = vsel %vm1230, %v1271, %v1272
      %v1274 = vrot.slane %v1160, 1
      %v1275 = vsel %vm1230, %v1272, %v1274
      %v1276 = vrot.slane %v1161, 1
      %v1277 = vrot.slane %v1162, 1
      %v1278 = vsel %vm1230, %v1276, %v1277
      %v1279 = vrot.slane %v1163, 1
      %v1280 = vsel %vm1230, %v1277, %v1279
      %v1281 = vrot.slane %v1164, 1
      %v1282 = vrot.slane %v1165, 1
      %v1283 = vsel %vm1230, %v1281, %v1282
      %v1284 = vrot.slane %v1166, 1
      %v1285 = vsel %vm1230, %v1282, %v1284
      %v1286 = vrot.slane %v1167, 1
      %v1287 = vrot.slane %v1168, 1
      %v1288 = vsel %vm1230, %v1286, %v1287
      %v1289 = vrot.slane %v1169, 1
      %v1290 = vsel %vm1230, %v1287, %v1289
      %v1291 = vrot.slane %v1170, 1
      %v1292 = vrot.slane %v1171, 1
      %v1293 = vsel %vm1230, %v1291, %v1292
      %v1294 = vrot.slane %v1172, 1
      %v1295 = vsel %vm1230, %v1292, %v1294
      %v1296 = vrot.slane %v1173, 1
      %v1297 = vrot.slane %v1174, 1
      %v1298 = vsel %vm1230, %v1296, %v1297
      %v1299 = vrot.slane %v1175, 1
      %v1300 = vsel %vm1230, %v1297, %v1299
      %v1301 = vrot.slane %v1176, 1
      %v1302 = vrot.slane %v1177, 1
      %v1303 = vsel %vm1230, %v1301, %v1302
      %v1304 = vrot.slane %v1178, 1
      %v1305 = vsel %vm1230, %v1302, %v1304
      %v1306 = vrot.slane %v1179, 1
      %v1307 = vrot.slane %v1180, 1
      %v1308 = vsel %vm1230, %v1306, %v1307
      %v1309 = vrot.slane %v1181, 1
      %v1310 = vsel %vm1230, %v1307, %v1309
      %v1343 = vadd.f32 %v1098, %v1233
      %v1344 = vadd.f32 %v1099, %v1235
      %v1345 = vadd.f32 %v1100, %v1238
      %v1346 = vadd.f32 %v1101, %v1240
      %v1347 = vadd.f32 %v1102, %v1243
      %v1348 = vadd.f32 %v1103, %v1245
      %v1349 = vadd.f32 %v1104, %v1248
      %v1350 = vadd.f32 %v1105, %v1250
      %v1351 = vadd.f32 %v1106, %v1253
      %v1352 = vadd.f32 %v1107, %v1255
      %v1353 = vadd.f32 %v1108, %v1258
      %v1354 = vadd.f32 %v1109, %v1260
      %v1355 = vadd.f32 %v1110, %v1263
      %v1356 = vadd.f32 %v1111, %v1265
      %v1357 = vadd.f32 %v1112, %v1268
      %v1358 = vadd.f32 %v1113, %v1270
      %v1359 = vadd.f32 %v1114, %v1273
      %v1360 = vadd.f32 %v1115, %v1275
      %v1361 = vadd.f32 %v1116, %v1278
      %v1362 = vadd.f32 %v1117, %v1280
      %v1363 = vadd.f32 %v1118, %v1283
      %v1364 = vadd.f32 %v1119, %v1285
      %v1365 = vadd.f32 %v1120, %v1288
      %v1366 = vadd.f32 %v1121, %v1290
      %v1367 = vadd.f32 %v1122, %v1293
      %v1368 = vadd.f32 %v1123, %v1295
      %v1369 = vadd.f32 %v1124, %v1298
      %v1370 = vadd.f32 %v1125, %v1300
      %v1371 = vadd.f32 %v1126, %v1303
      %v1372 = vadd.f32 %v1127, %v1305
      %v1373 = vadd.f32 %v1128, %v1308
      %v1374 = vadd.f32 %v1129, %v1310
      %v1375 = vlaneseq
      %v1376 = vshrl.u32 %v1375, 7
      %v1377 = vsub.s32 2, %v1376
      %v1378 = vrot.slane %v1007, %v1377
      %v1379 = vmul.f32 %v1014, %v1378
      %v1380 = vmul.f32 %v1015, %v1378
      %v1381 = vmul.f32 %v1016, %v1378
      %v1382 = vmul.f32 %v1017, %v1378
      %v1383 = vmul.f32 %v1018, %v1378
      %v1384 = vmul.f32 %v1019, %v1378
      %v1385 = vmul.f32 %v1020, %v1378
      %v1386 = vmul.f32 %v1021, %v1378
      %v1387 = vmul.f32 %v1022, %v1378
      %v1388 = vmul.f32 %v1023, %v1378
      %v1389 = vmul.f32 %v1024, %v1378
      %v1390 = vmul.f32 %v1025, %v1378
      %v1391 = vmul.f32 %v1026, %v1378
      %v1392 = vmul.f32 %v1027, %v1378
      %v1393 = vmul.f32 %v1028, %v1378
      %v1394 = vmul.f32 %v1029, %v1378
      %v1395 = vmul.f32 %v1030, %v1378
      %v1396 = vmul.f32 %v1031, %v1378
      %v1397 = vmul.f32 %v1032, %v1378
      %v1398 = vmul.f32 %v1033, %v1378
      %v1399 = vmul.f32 %v1034, %v1378
      %v1400 = vmul.f32 %v1035, %v1378
      %v1401 = vmul.f32 %v1036, %v1378
      %v1402 = vmul.f32 %v1037, %v1378
      %v1403 = vmul.f32 %v1038, %v1378
      %v1404 = vmul.f32 %v1039, %v1378
      %v1405 = vmul.f32 %v1040, %v1378
      %v1406 = vmul.f32 %v1041, %v1378
      %v1407 = vmul.f32 %v1042, %v1378
      %v1408 = vmul.f32 %v1043, %v1378
      %v1409 = vmul.f32 %v1044, %v1378
      %v1410 = vmul.f32 %v1045, %v1378
      %v1411 = vmul.f32 %v1046, %v1378
      %v1412 = vmul.f32 %v1047, %v1378
      %v1413 = vmul.f32 %v1048, %v1378
      %v1414 = vmul.f32 %v1049, %v1378
      %v1415 = vmul.f32 %v1050, %v1378
      %v1416 = vmul.f32 %v1051, %v1378
      %v1417 = vmul.f32 %v1052, %v1378
      %v1418 = vmul.f32 %v1053, %v1378
      %v1419 = vmul.f32 %v1054, %v1378
      %v1420 = vmul.f32 %v1055, %v1378
      %v1421 = vmul.f32 %v1056, %v1378
      %v1422 = vmul.f32 %v1057, %v1378
      %v1423 = vmul.f32 %v1058, %v1378
      %v1424 = vmul.f32 %v1059, %v1378
      %v1425 = vmul.f32 %v1060, %v1378
      %v1426 = vmul.f32 %v1061, %v1378
      %vm1475 = vcmask 1045504
      %v1476 = vrot.slane %v1379, 2
      %v1477 = vrot.slane %v1380, 2
      %v1478 = vsel %vm1475, %v1476, %v1477
      %v1479 = vrot.slane %v1381, 2
      %v1480 = vsel %vm1475, %v1477, %v1479
      %v1481 = vrot.slane %v1382, 2
      %v1482 = vrot.slane %v1383, 2
      %v1483 = vsel %vm1475, %v1481, %v1482
      %v1484 = vrot.slane %v1384, 2
      %v1485 = vsel %vm1475, %v1482, %v1484
      %v1486 = vrot.slane %v1385, 2
      %v1487 = vrot.slane %v1386, 2
      %v1488 = vsel %vm1475, %v1486, %v1487
      %v1489 = vrot.slane %v1387, 2
      %v1490 = vsel %vm1475, %v1487, %v1489
      %v1491 = vrot.slane %v1388, 2
      %v1492 = vrot.slane %v1389, 2
      %v1493 = vsel %vm1475, %v1491, %v1492
      %v1494 = vrot.slane %v1390, 2
      %v1495 = vsel %vm1475, %v1492, %v1494
      %v1496 = vrot.slane %v1391, 2
      %v1497 = vrot.slane %v1392, 2
      %v1498 = vsel %vm1475, %v1496, %v1497
      %v1499 = vrot.slane %v1393, 2
      %v1500 = vsel %vm1475, %v1497, %v1499
      %v1501 = vrot.slane %v1394, 2
      %v1502 = vrot.slane %v1395, 2
      %v1503 = vsel %vm1475, %v1501, %v1502
      %v1504 = vrot.slane %v1396, 2
      %v1505 = vsel %vm1475, %v1502, %v1504
      %v1506 = vrot.slane %v1397, 2
      %v1507 = vrot.slane %v1398, 2
      %v1508 = vsel %vm1475, %v1506, %v1507
      %v1509 = vrot.slane %v1399, 2
      %v1510 = vsel %vm1475, %v1507, %v1509
      %v1511 = vrot.slane %v1400, 2
      %v1512 = vrot.slane %v1401, 2
      %v1513 = vsel %vm1475, %v1511, %v1512
      %v1514 = vrot.slane %v1402, 2
      %v1515 = vsel %vm1475, %v1512, %v1514
      %v1516 = vrot.slane %v1403, 2
      %v1517 = vrot.slane %v1404, 2
      %v1518 = vsel %vm1475, %v1516, %v1517
      %v1519 = vrot.slane %v1405, 2
      %v1520 = vsel %vm1475, %v1517, %v1519
      %v1521 = vrot.slane %v1406, 2
      %v1522 = vrot.slane %v1407, 2
      %v1523 = vsel %vm1475, %v1521, %v1522
      %v1524 = vrot.slane %v1408, 2
      %v1525 = vsel %vm1475, %v1522, %v1524
      %v1526 = vrot.slane %v1409, 2
      %v1527 = vrot.slane %v1410, 2
      %v1528 = vsel %vm1475, %v1526, %v1527
      %v1529 = vrot.slane %v1411, 2
      %v1530 = vsel %vm1475, %v1527, %v1529
      %v1531 = vrot.slane %v1412, 2
      %v1532 = vrot.slane %v1413, 2
      %v1533 = vsel %vm1475, %v1531, %v1532
      %v1534 = vrot.slane %v1414, 2
      %v1535 = vsel %vm1475, %v1532, %v1534
      %v1536 = vrot.slane %v1415, 2
      %v1537 = vrot.slane %v1416, 2
      %v1538 = vsel %vm1475, %v1536, %v1537
      %v1539 = vrot.slane %v1417, 2
      %v1540 = vsel %vm1475, %v1537, %v1539
      %v1541 = vrot.slane %v1418, 2
      %v1542 = vrot.slane %v1419, 2
      %v1543 = vsel %vm1475, %v1541, %v1542
      %v1544 = vrot.slane %v1420, 2
      %v1545 = vsel %vm1475, %v1542, %v1544
      %v1546 = vrot.slane %v1421, 2
      %v1547 = vrot.slane %v1422, 2
      %v1548 = vsel %vm1475, %v1546, %v1547
      %v1549 = vrot.slane %v1423, 2
      %v1550 = vsel %vm1475, %v1547, %v1549
      %v1551 = vrot.slane %v1424, 2
      %v1552 = vrot.slane %v1425, 2
      %v1553 = vsel %vm1475, %v1551, %v1552
      %v1554 = vrot.slane %v1426, 2
      %v1555 = vsel %vm1475, %v1552, %v1554
      %v1588 = vadd.f32 %v1343, %v1478
      %v1589 = vadd.f32 %v1344, %v1480
      %v1590 = vadd.f32 %v1345, %v1483
      %v1591 = vadd.f32 %v1346, %v1485
      %v1592 = vadd.f32 %v1347, %v1488
      %v1593 = vadd.f32 %v1348, %v1490
      %v1594 = vadd.f32 %v1349, %v1493
      %v1595 = vadd.f32 %v1350, %v1495
      %v1596 = vadd.f32 %v1351, %v1498
      %v1597 = vadd.f32 %v1352, %v1500
      %v1598 = vadd.f32 %v1353, %v1503
      %v1599 = vadd.f32 %v1354, %v1505
      %v1600 = vadd.f32 %v1355, %v1508
      %v1601 = vadd.f32 %v1356, %v1510
      %v1602 = vadd.f32 %v1357, %v1513
      %v1603 = vadd.f32 %v1358, %v1515
      %v1604 = vadd.f32 %v1359, %v1518
      %v1605 = vadd.f32 %v1360, %v1520
      %v1606 = vadd.f32 %v1361, %v1523
      %v1607 = vadd.f32 %v1362, %v1525
      %v1608 = vadd.f32 %v1363, %v1528
      %v1609 = vadd.f32 %v1364, %v1530
      %v1610 = vadd.f32 %v1365, %v1533
      %v1611 = vadd.f32 %v1366, %v1535
      %v1612 = vadd.f32 %v1367, %v1538
      %v1613 = vadd.f32 %v1368, %v1540
      %v1614 = vadd.f32 %v1369, %v1543
      %v1615 = vadd.f32 %v1370, %v1545
      %v1616 = vadd.f32 %v1371, %v1548
      %v1617 = vadd.f32 %v1372, %v1550
      %v1618 = vadd.f32 %v1373, %v1553
      %v1619 = vadd.f32 %v1374, %v1555
      %v1620 = vlaneseq
      %v1621 = vshrl.u32 %v1620, 7
      %v1622 = vsub.s32 3, %v1621
      %v1623 = vrot.slane %v1007, %v1622
      %v1624 = vmul.f32 %v1014, %v1623
      %v1625 = vmul.f32 %v1015, %v1623
      %v1626 = vmul.f32 %v1016, %v1623
      %v1627 = vmul.f32 %v1017, %v1623
      %v1628 = vmul.f32 %v1018, %v1623
      %v1629 = vmul.f32 %v1019, %v1623
      %v1630 = vmul.f32 %v1020, %v1623
      %v1631 = vmul.f32 %v1021, %v1623
      %v1632 = vmul.f32 %v1022, %v1623
      %v1633 = vmul.f32 %v1023, %v1623
      %v1634 = vmul.f32 %v1024, %v1623
      %v1635 = vmul.f32 %v1025, %v1623
      %v1636 = vmul.f32 %v1026, %v1623
      %v1637 = vmul.f32 %v1027, %v1623
      %v1638 = vmul.f32 %v1028, %v1623
      %v1639 = vmul.f32 %v1029, %v1623
      %v1640 = vmul.f32 %v1030, %v1623
      %v1641 = vmul.f32 %v1031, %v1623
      %v1642 = vmul.f32 %v1032, %v1623
      %v1643 = vmul.f32 %v1033, %v1623
      %v1644 = vmul.f32 %v1034, %v1623
      %v1645 = vmul.f32 %v1035, %v1623
      %v1646 = vmul.f32 %v1036, %v1623
      %v1647 = vmul.f32 %v1037, %v1623
      %v1648 = vmul.f32 %v1038, %v1623
      %v1649 = vmul.f32 %v1039, %v1623
      %v1650 = vmul.f32 %v1040, %v1623
      %v1651 = vmul.f32 %v1041, %v1623
      %v1652 = vmul.f32 %v1042, %v1623
      %v1653 = vmul.f32 %v1043, %v1623
      %v1654 = vmul.f32 %v1044, %v1623
      %v1655 = vmul.f32 %v1045, %v1623
      %v1656 = vmul.f32 %v1046, %v1623
      %v1657 = vmul.f32 %v1047, %v1623
      %v1658 = vmul.f32 %v1048, %v1623
      %v1659 = vmul.f32 %v1049, %v1623
      %v1660 = vmul.f32 %v1050, %v1623
      %v1661 = vmul.f32 %v1051, %v1623
      %v1662 = vmul.f32 %v1052, %v1623
      %v1663 = vmul.f32 %v1053, %v1623
      %v1664 = vmul.f32 %v1054, %v1623
      %v1665 = vmul.f32 %v1055, %v1623
      %v1666 = vmul.f32 %v1056, %v1623
      %v1667 = vmul.f32 %v1057, %v1623
      %v1668 = vmul.f32 %v1058, %v1623
      %v1669 = vmul.f32 %v1059, %v1623
      %v1670 = vmul.f32 %v1060, %v1623
      %v1671 = vmul.f32 %v1061, %v1623
      %vm1720 = vcmask 1044480
      %v1721 = vrot.slane %v1624, 3
      %v1722 = vrot.slane %v1625, 3
      %v1723 = vsel %vm1720, %v1721, %v1722
      %v1724 = vrot.slane %v1626, 3
      %v1725 = vsel %vm1720, %v1722, %v1724
      %v1726 = vrot.slane %v1627, 3
      %v1727 = vrot.slane %v1628, 3
      %v1728 = vsel %vm1720, %v1726, %v1727
      %v1729 = vrot.slane %v1629, 3
      %v1730 = vsel %vm1720, %v1727, %v1729
      %v1731 = vrot.slane %v1630, 3
      %v1732 = vrot.slane %v1631, 3
      %v1733 = vsel %vm1720, %v1731, %v1732
      %v1734 = vrot.slane %v1632, 3
      %v1735 = vsel %vm1720, %v1732, %v1734
      %v1736 = vrot.slane %v1633, 3
      %v1737 = vrot.slane %v1634, 3
      %v1738 = vsel %vm1720, %v1736, %v1737
      %v1739 = vrot.slane %v1635, 3
      %v1740 = vsel %vm1720, %v1737, %v1739
      %v1741 = vrot.slane %v1636, 3
      %v1742 = vrot.slane %v1637, 3
      %v1743 = vsel %vm1720, %v1741, %v1742
      %v1744 = vrot.slane %v1638, 3
      %v1745 = vsel %vm1720, %v1742, %v1744
      %v1746 = vrot.slane %v1639, 3
      %v1747 = vrot.slane %v1640, 3
      %v1748 = vsel %vm1720, %v1746, %v1747
      %v1749 = vrot.slane %v1641, 3
      %v1750 = vsel %vm1720, %v1747, %v1749
      %v1751 = vrot.slane %v1642, 3
      %v1752 = vrot.slane %v1643, 3
      %v1753 = vsel %vm1720, %v1751, %v1752
      %v1754 = vrot.slane %v1644, 3
      %v1755 = vsel %vm1720, %v1752, %v1754
      %v1756 = vrot.slane %v1645, 3
      %v1757 = vrot.slane %v1646, 3
      %v1758 = vsel %vm1720, %v1756, %v1757
      %v1759 = vrot.slane %v1647, 3
      %v1760 = vsel %vm1720, %v1757, %v1759
      %v1761 = vrot.slane %v1648, 3
      %v1762 = vrot.slane %v1649, 3
      %v1763 = vsel %vm1720, %v1761, %v1762
      %v1764 = vrot.slane %v1650, 3
      %v1765 = vsel %vm1720, %v1762, %v1764
      %v1766 = vrot.slane %v1651, 3
      %v1767 = vrot.slane %v1652, 3
      %v1768 = vsel %vm1720, %v1766, %v1767
      %v1769 = vrot.slane %v1653, 3
      %v1770 = vsel %vm1720, %v1767, %v1769
      %v1771 = vrot.slane %v1654, 3
      %v1772 = vrot.slane %v1655, 3
      %v1773 = vsel %vm1720, %v1771, %v1772
      %v1774 = vrot.slane %v1656, 3
      %v1775 = vsel %vm1720, %v1772, %v1774
      %v1776 = vrot.slane %v1657, 3
      %v1777 = vrot.slane %v1658, 3
      %v1778 = vsel %vm1720, %v1776, %v1777
      %v1779 = vrot.slane %v1659, 3
      %v1780 = vsel %vm1720, %v1777, %v1779
      %v1781 = vrot.slane %v1660, 3
      %v1782 = vrot.slane %v1661, 3
      %v1783 = vsel %vm1720, %v1781, %v1782
      %v1784 = vrot.slane %v1662, 3
      %v1785 = vsel %vm1720, %v1782, %v1784
      %v1786 = vrot.slane %v1663, 3
      %v1787 = vrot.slane %v1664, 3
      %v1788 = vsel %vm1720, %v1786, %v1787
      %v1789 = vrot.slane %v1665, 3
      %v1790 = vsel %vm1720, %v1787, %v1789
      %v1791 = vrot.slane %v1666, 3
      %v1792 = vrot.slane %v1667, 3
      %v1793 = vsel %vm1720, %v1791, %v1792
      %v1794 = vrot.slane %v1668, 3
      %v1795 = vsel %vm1720, %v1792, %v1794
      %v1796 = vrot.slane %v1669, 3
      %v1797 = vrot.slane %v1670, 3
      %v1798 = vsel %vm1720, %v1796, %v1797
      %v1799 = vrot.slane %v1671, 3
      %v1800 = vsel %vm1720, %v1797, %v1799
      %v1833 = vadd.f32 %v1588, %v1723
      %v1834 = vadd.f32 %v1589, %v1725
      %v1835 = vadd.f32 %v1590, %v1728
      %v1836 = vadd.f32 %v1591, %v1730
      %v1837 = vadd.f32 %v1592, %v1733
      %v1838 = vadd.f32 %v1593, %v1735
      %v1839 = vadd.f32 %v1594, %v1738
      %v1840 = vadd.f32 %v1595, %v1740
      %v1841 = vadd.f32 %v1596, %v1743
      %v1842 = vadd.f32 %v1597, %v1745
      %v1843 = vadd.f32 %v1598, %v1748
      %v1844 = vadd.f32 %v1599, %v1750
      %v1845 = vadd.f32 %v1600, %v1753
      %v1846 = vadd.f32 %v1601, %v1755
      %v1847 = vadd.f32 %v1602, %v1758
      %v1848 = vadd.f32 %v1603, %v1760
      %v1849 = vadd.f32 %v1604, %v1763
      %v1850 = vadd.f32 %v1605, %v1765
      %v1851 = vadd.f32 %v1606, %v1768
      %v1852 = vadd.f32 %v1607, %v1770
      %v1853 = vadd.f32 %v1608, %v1773
      %v1854 = vadd.f32 %v1609, %v1775
      %v1855 = vadd.f32 %v1610, %v1778
      %v1856 = vadd.f32 %v1611, %v1780
      %v1857 = vadd.f32 %v1612, %v1783
      %v1858 = vadd.f32 %v1613, %v1785
      %v1859 = vadd.f32 %v1614, %v1788
      %v1860 = vadd.f32 %v1615, %v1790
      %v1861 = vadd.f32 %v1616, %v1793
      %v1862 = vadd.f32 %v1617, %v1795
      %v1863 = vadd.f32 %v1618, %v1798
      %v1864 = vadd.f32 %v1619, %v1800
      %v1865 = vlaneseq
      %v1866 = vshrl.u32 %v1865, 7
      %v1867 = vsub.s32 4, %v1866
      %v1868 = vrot.slane %v1007, %v1867
      %v1869 = vmul.f32 %v1014, %v1868
      %v1870 = vmul.f32 %v1015, %v1868
      %v1871 = vmul.f32 %v1016, %v1868
      %v1872 = vmul.f32 %v1017, %v1868
      %v1873 = vmul.f32 %v1018, %v1868
      %v1874 = vmul.f32 %v1019, %v1868
      %v1875 = vmul.f32 %v1020, %v1868
      %v1876 = vmul.f32 %v1021, %v1868
      %v1877 = vmul.f32 %v1022, %v1868
      %v1878 = vmul.f32 %v1023, %v1868
      %v1879 = vmul.f32 %v1024, %v1868
      %v1880 = vmul.f32 %v1025, %v1868
      %v1881 = vmul.f32 %v1026, %v1868
      %v1882 = vmul.f32 %v1027, %v1868
      %v1883 = vmul.f32 %v1028, %v1868
      %v1884 = vmul.f32 %v1029, %v1868
      %v1885 = vmul.f32 %v1030, %v1868
      %v1886 = vmul.f32 %v1031, %v1868
      %v1887 = vmul.f32 %v1032, %v1868
      %v1888 = vmul.f32 %v1033, %v1868
      %v1889 = vmul.f32 %v1034, %v1868
      %v1890 = vmul.f32 %v1035, %v1868
      %v1891 = vmul.f32 %v1036, %v1868
      %v1892 = vmul.f32 %v1037, %v1868
      %v1893 = vmul.f32 %v1038, %v1868
      %v1894 = vmul.f32 %v1039, %v1868
      %v1895 = vmul.f32 %v1040, %v1868
      %v1896 = vmul.f32 %v1041, %v1868
      %v1897 = vmul.f32 %v1042, %v1868
      %v1898 = vmul.f32 %v1043, %v1868
      %v1899 = vmul.f32 %v1044, %v1868
      %v1900 = vmul.f32 %v1045, %v1868
      %v1901 = vmul.f32 %v1046, %v1868
      %v1902 = vmul.f32 %v1047, %v1868
      %v1903 = vmul.f32 %v1048, %v1868
      %v1904 = vmul.f32 %v1049, %v1868
      %v1905 = vmul.f32 %v1050, %v1868
      %v1906 = vmul.f32 %v1051, %v1868
      %v1907 = vmul.f32 %v1052, %v1868
      %v1908 = vmul.f32 %v1053, %v1868
      %v1909 = vmul.f32 %v1054, %v1868
      %v1910 = vmul.f32 %v1055, %v1868
      %v1911 = vmul.f32 %v1056, %v1868
      %v1912 = vmul.f32 %v1057, %v1868
      %v1913 = vmul.f32 %v1058, %v1868
      %v1914 = vmul.f32 %v1059, %v1868
      %v1915 = vmul.f32 %v1060, %v1868
      %v1916 = vmul.f32 %v1061, %v1868
      %vm1965 = vcmask 1043456
      %v1966 = vrot.slane %v1869, 4
      %v1967 = vrot.slane %v1870, 4
      %v1968 = vsel %vm1965, %v1966, %v1967
      %v1969 = vrot.slane %v1871, 4
      %v1970 = vsel %vm1965, %v1967, %v1969
      %v1971 = vrot.slane %v1872, 4
      %v1972 = vrot.slane %v1873, 4
      %v1973 = vsel %vm1965, %v1971, %v1972
      %v1974 = vrot.slane %v1874, 4
      %v1975 = vsel %vm1965, %v1972, %v1974
      %v1976 = vrot.slane %v1875, 4
      %v1977 = vrot.slane %v1876, 4
      %v1978 = vsel %vm1965, %v1976, %v1977
      %v1979 = vrot.slane %v1877, 4
      %v1980 = vsel %vm1965, %v1977, %v1979
      %v1981 = vrot.slane %v1878, 4
      %v1982 = vrot.slane %v1879, 4
      %v1983 = vsel %vm1965, %v1981, %v1982
      %v1984 = vrot.slane %v1880, 4
      %v1985 = vsel %vm1965, %v1982, %v1984
      %v1986 = vrot.slane %v1881, 4
      %v1987 = vrot.slane %v1882, 4
      %v1988 = vsel %vm1965, %v1986, %v1987
      %v1989 = vrot.slane %v1883, 4
      %v1990 = vsel %vm1965, %v1987, %v1989
      %v1991 = vrot.slane %v1884, 4
      %v1992 = vrot.slane %v1885, 4
      %v1993 = vsel %vm1965, %v1991, %v1992
      %v1994 = vrot.slane %v1886, 4
      %v1995 = vsel %vm1965, %v1992, %v1994
      %v1996 = vrot.slane %v1887, 4
      %v1997 = vrot.slane %v1888, 4
      %v1998 = vsel %vm1965, %v1996, %v1997
      %v1999 = vrot.slane %v1889, 4
      %v2000 = vsel %vm1965, %v1997, %v1999
      %v2001 = vrot.slane %v1890, 4
      %v2002 = vrot.slane %v1891, 4
      %v2003 = vsel %vm1965, %v2001, %v2002
      %v2004 = vrot.slane %v1892, 4
      %v2005 = vsel %vm1965, %v2002, %v2004
      %v2006 = vrot.slane %v1893, 4
      %v2007 = vrot.slane %v1894, 4
      %v2008 = vsel %vm1965, %v2006, %v2007
      %v2009 = vrot.slane %v1895, 4
      %v2010 = vsel %vm1965, %v2007, %v2009
      %v2011 = vrot.slane %v1896, 4
      %v2012 = vrot.slane %v1897, 4
      %v2013 = vsel %vm1965, %v2011, %v2012
      %v2014 = vrot.slane %v1898, 4
      %v2015 = vsel %vm1965, %v2012, %v2014
      %v2016 = vrot.slane %v1899, 4
      %v2017 = vrot.slane %v1900, 4
      %v2018 = vsel %vm1965, %v2016, %v2017
      %v2019 = vrot.slane %v1901, 4
      %v2020 = vsel %vm1965, %v2017, %v2019
      %v2021 = vrot.slane %v1902, 4
      %v2022 = vrot.slane %v1903, 4
      %v2023 = vsel %vm1965, %v2021, %v2022
      %v2024 = vrot.slane %v1904, 4
      %v2025 = vsel %vm1965, %v2022, %v2024
      %v2026 = vrot.slane %v1905, 4
      %v2027 = vrot.slane %v1906, 4
      %v2028 = vsel %vm1965, %v2026, %v2027
      %v2029 = vrot.slane %v1907, 4
      %v2030 = vsel %vm1965, %v2027, %v2029
      %v2031 = vrot.slane %v1908, 4
      %v2032 = vrot.slane %v1909, 4
      %v2033 = vsel %vm1965, %v2031, %v2032
      %v2034 = vrot.slane %v1910, 4
      %v2035 = vsel %vm1965, %v2032, %v2034
      %v2036 = vrot.slane %v1911, 4
      %v2037 = vrot.slane %v1912, 4
      %v2038 = vsel %vm1965, %v2036, %v2037
      %v2039 = vrot.slane %v1913, 4
      %v2040 = vsel %vm1965, %v2037, %v2039
      %v2041 = vrot.slane %v1914, 4
      %v2042 = vrot.slane %v1915, 4
      %v2043 = vsel %vm1965, %v2041, %v2042
      %v2044 = vrot.slane %v1916, 4
      %v2045 = vsel %vm1965, %v2042, %v2044
      %v2078 = vadd.f32 %v1833, %v1968
      %v2079 = vadd.f32 %v1834, %v1970
      %v2080 = vadd.f32 %v1835, %v1973
      %v2081 = vadd.f32 %v1836, %v1975
      %v2082 = vadd.f32 %v1837, %v1978
      %v2083 = vadd.f32 %v1838, %v1980
      %v2084 = vadd.f32 %v1839, %v1983
      %v2085 = vadd.f32 %v1840, %v1985
      %v2086 = vadd.f32 %v1841, %v1988
      %v2087 = vadd.f32 %v1842, %v1990
      %v2088 = vadd.f32 %v1843, %v1993
      %v2089 = vadd.f32 %v1844, %v1995
      %v2090 = vadd.f32 %v1845, %v1998
      %v2091 = vadd.f32 %v1846, %v2000
      %v2092 = vadd.f32 %v1847, %v2003
      %v2093 = vadd.f32 %v1848, %v2005
      %v2094 = vadd.f32 %v1849, %v2008
      %v2095 = vadd.f32 %v1850, %v2010
      %v2096 = vadd.f32 %v1851, %v2013
      %v2097 = vadd.f32 %v1852, %v2015
      %v2098 = vadd.f32 %v1853, %v2018
      %v2099 = vadd.f32 %v1854, %v2020
      %v2100 = vadd.f32 %v1855, %v2023
      %v2101 = vadd.f32 %v1856, %v2025
      %v2102 = vadd.f32 %v1857, %v2028
      %v2103 = vadd.f32 %v1858, %v2030
      %v2104 = vadd.f32 %v1859, %v2033
      %v2105 = vadd.f32 %v1860, %v2035
      %v2106 = vadd.f32 %v1861, %v2038
      %v2107 = vadd.f32 %v1862, %v2040
      %v2108 = vadd.f32 %v1863, %v2043
      %v2109 = vadd.f32 %v1864, %v2045
      %s2110 = sadd.s32 0, 1
      %s2111 = smul.u32 %s2110, 24
      %s2112 = scalar_lea.vmem [#allocation2], %s2111
      %v2113 = vld [vmem:[%s2112] sm:$0xff]
      %v2114 = vld [vmem:[%s2112 + $0x8] sm:$0xff]
      %v2115 = vld [vmem:[%s2112 + $0x10] sm:$0xff]
      %v2116 = vld [vmem:[%s2112 + $0x18] sm:$0xff]
      %v2117 = vld [vmem:[%s2112 + $0x20] sm:$0xff]
      %v2118 = vld [vmem:[%s2112 + $0x28] sm:$0xff]
      %v2119 = vld [vmem:[%s2112 + $0x30] sm:$0xff]
      %v2120 = vld [vmem:[%s2112 + $0x38] sm:$0xff]
      %v2121 = vld [vmem:[%s2112 + $0x40] sm:$0xff]
      %v2122 = vld [vmem:[%s2112 + $0x48] sm:$0xff]
      %v2123 = vld [vmem:[%s2112 + $0x50] sm:$0xff]
      %v2124 = vld [vmem:[%s2112 + $0x58] sm:$0xff]
      %v2125 = vld [vmem:[%s2112 + $0x60] sm:$0xff]
      %v2126 = vld [vmem:[%s2112 + $0x68] sm:$0xff]
      %v2127 = vld [vmem:[%s2112 + $0x70] sm:$0xff]
      %v2128 = vld [vmem:[%s2112 + $0x78] sm:$0xff]
      %v2129 = vld [vmem:[%s2112 + $0x80] sm:$0xff]
      %v2130 = vld [vmem:[%s2112 + $0x88] sm:$0xff]
      %v2131 = vld [vmem:[%s2112 + $0x90] sm:$0xff]
      %v2132 = vld [vmem:[%s2112 + $0x98] sm:$0xff]
      %v2133 = vld [vmem:[%s2112 + $0xa0] sm:$0xff]
      %v2134 = vld [vmem:[%s2112 + $0xa8] sm:$0xff]
      %v2135 = vld [vmem:[%s2112 + $0xb0] sm:$0xff]
      %v2136 = vld [vmem:[%s2112 + $0xb8] sm:$0xff]
      %v2137 = vld [vmem:[%s2112 + $0xc0] sm:$0xff]
      %v2138 = vld [vmem:[%s2112 + $0xc8] sm:$0xff]
      %v2139 = vld [vmem:[%s2112 + $0xd0] sm:$0xff]
      %v2140 = vld [vmem:[%s2112 + $0xd8] sm:$0xff]
      %v2141 = vld [vmem:[%s2112 + $0xe0] sm:$0xff]
      %v2142 = vld [vmem:[%s2112 + $0xe8] sm:$0xff]
      %v2143 = vld [vmem:[%s2112 + $0xf0] sm:$0xff]
      %v2144 = vld [vmem:[%s2112 + $0xf8] sm:$0xff]
      %v2145 = vld [vmem:[%s2112 + $0x100] sm:$0xff]
      %v2146 = vld [vmem:[%s2112 + $0x108] sm:$0xff]
      %v2147 = vld [vmem:[%s2112 + $0x110] sm:$0xff]
      %v2148 = vld [vmem:[%s2112 + $0x118] sm:$0xff]
      %v2149 = vld [vmem:[%s2112 + $0x120] sm:$0xff]
      %v2150 = vld [vmem:[%s2112 + $0x128] sm:$0xff]
      %v2151 = vld [vmem:[%s2112 + $0x130] sm:$0xff]
      %v2152 = vld [vmem:[%s2112 + $0x138] sm:$0xff]
      %v2153 = vld [vmem:[%s2112 + $0x140] sm:$0xff]
      %v2154 = vld [vmem:[%s2112 + $0x148] sm:$0xff]
      %v2155 = vld [vmem:[%s2112 + $0x150] sm:$0xff]
      %v2156 = vld [vmem:[%s2112 + $0x158] sm:$0xff]
      %v2157 = vld [vmem:[%s2112 + $0x160] sm:$0xff]
      %v2158 = vld [vmem:[%s2112 + $0x168] sm:$0xff]
      %v2159 = vld [vmem:[%s2112 + $0x170] sm:$0xff]
      %v2160 = vld [vmem:[%s2112 + $0x178] sm:$0xff]
      %v2161 = vlaneseq
      %v2162 = vshrl.u32 %v2161, 7
      %v2163 = vsub.s32 5, %v2162
      %v2164 = vrot.slane %v1007, %v2163
      %v2165 = vmul.f32 %v2113, %v2164
      %v2166 = vmul.f32 %v2114, %v2164
      %v2167 = vmul.f32 %v2116, %v2164
      %v2168 = vmul.f32 %v2117, %v2164
      %v2169 = vmul.f32 %v2119, %v2164
      %v2170 = vmul.f32 %v2120, %v2164
      %v2171 = vmul.f32 %v2122, %v2164
      %v2172 = vmul.f32 %v2123, %v2164
      %v2173 = vmul.f32 %v2125, %v2164
      %v2174 = vmul.f32 %v2126, %v2164
      %v2175 = vmul.f32 %v2128, %v2164
      %v2176 = vmul.f32 %v2129, %v2164
      %v2177 = vmul.f32 %v2131, %v2164
      %v2178 = vmul.f32 %v2132, %v2164
      %v2179 = vmul.f32 %v2134, %v2164
      %v2180 = vmul.f32 %v2135, %v2164
      %v2181 = vmul.f32 %v2137, %v2164
      %v2182 = vmul.f32 %v2138, %v2164
      %v2183 = vmul.f32 %v2140, %v2164
      %v2184 = vmul.f32 %v2141, %v2164
      %v2185 = vmul.f32 %v2143, %v2164
      %v2186 = vmul.f32 %v2144, %v2164
      %v2187 = vmul.f32 %v2146, %v2164
      %v2188 = vmul.f32 %v2147, %v2164
      %v2189 = vmul.f32 %v2149, %v2164
      %v2190 = vmul.f32 %v2150, %v2164
      %v2191 = vmul.f32 %v2152, %v2164
      %v2192 = vmul.f32 %v2153, %v2164
      %v2193 = vmul.f32 %v2155, %v2164
      %v2194 = vmul.f32 %v2156, %v2164
      %v2195 = vmul.f32 %v2158, %v2164
      %v2196 = vmul.f32 %v2159, %v2164
      %v2197 = vadd.f32 %v2078, %v2165
      %v2198 = vadd.f32 %v2079, %v2166
      %v2199 = vadd.f32 %v2080, %v2167
      %v2200 = vadd.f32 %v2081, %v2168
      %v2201 = vadd.f32 %v2082, %v2169
      %v2202 = vadd.f32 %v2083, %v2170
      %v2203 = vadd.f32 %v2084, %v2171
      %v2204 = vadd.f32 %v2085, %v2172
      %v2205 = vadd.f32 %v2086, %v2173
      %v2206 = vadd.f32 %v2087, %v2174
      %v2207 = vadd.f32 %v2088, %v2175
      %v2208 = vadd.f32 %v2089, %v2176
      %v2209 = vadd.f32 %v2090, %v2177
      %v2210 = vadd.f32 %v2091, %v2178
      %v2211 = vadd.f32 %v2092, %v2179
      %v2212 = vadd.f32 %v2093, %v2180
      %v2213 = vadd.f32 %v2094, %v2181
      %v2214 = vadd.f32 %v2095, %v2182
      %v2215 = vadd.f32 %v2096, %v2183
      %v2216 = vadd.f32 %v2097, %v2184
      %v2217 = vadd.f32 %v2098, %v2185
      %v2218 = vadd.f32 %v2099, %v2186
      %v2219 = vadd.f32 %v2100, %v2187
      %v2220 = vadd.f32 %v2101, %v2188
      %v2221 = vadd.f32 %v2102, %v2189
      %v2222 = vadd.f32 %v2103, %v2190
      %v2223 = vadd.f32 %v2104, %v2191
      %v2224 = vadd.f32 %v2105, %v2192
      %v2225 = vadd.f32 %v2106, %v2193
      %v2226 = vadd.f32 %v2107, %v2194
      %v2227 = vadd.f32 %v2108, %v2195
      %v2228 = vadd.f32 %v2109, %v2196
      %v2229 = vlaneseq
      %v2230 = vshrl.u32 %v2229, 7
      %v2231 = vsub.s32 6, %v2230
      %v2232 = vrot.slane %v1007, %v2231
      %v2233 = vmul.f32 %v2113, %v2232
      %v2234 = vmul.f32 %v2114, %v2232
      %v2235 = vmul.f32 %v2115, %v2232
      %v2236 = vmul.f32 %v2116, %v2232
      %v2237 = vmul.f32 %v2117, %v2232
      %v2238 = vmul.f32 %v2118, %v2232
      %v2239 = vmul.f32 %v2119, %v2232
      %v2240 = vmul.f32 %v2120, %v2232
      %v2241 = vmul.f32 %v2121, %v2232
      %v2242 = vmul.f32 %v2122, %v2232
      %v2243 = vmul.f32 %v2123, %v2232
      %v2244 = vmul.f32 %v2124, %v2232
      %v2245 = vmul.f32 %v2125, %v2232
      %v2246 = vmul.f32 %v2126, %v2232
      %v2247 = vmul.f32 %v2127, %v2232
      %v2248 = vmul.f32 %v2128, %v2232
      %v2249 = vmul.f32 %v2129, %v2232
      %v2250 = vmul.f32 %v2130, %v2232
      %v2251 = vmul.f32 %v2131, %v2232
      %v2252 = vmul.f32 %v2132, %v2232
      %v2253 = vmul.f32 %v2133, %v2232
      %v2254 = vmul.f32 %v2134, %v2232
      %v2255 = vmul.f32 %v2135, %v2232
      %v2256 = vmul.f32 %v2136, %v2232
      %v2257 = vmul.f32 %v2137, %v2232
      %v2258 = vmul.f32 %v2138, %v2232
      %v2259 = vmul.f32 %v2139, %v2232
      %v2260 = vmul.f32 %v2140, %v2232
      %v2261 = vmul.f32 %v2141, %v2232
      %v2262 = vmul.f32 %v2142, %v2232
      %v2263 = vmul.f32 %v2143, %v2232
      %v2264 = vmul.f32 %v2144, %v2232
      %v2265 = vmul.f32 %v2145, %v2232
      %v2266 = vmul.f32 %v2146, %v2232
      %v2267 = vmul.f32 %v2147, %v2232
      %v2268 = vmul.f32 %v2148, %v2232
      %v2269 = vmul.f32 %v2149, %v2232
      %v2270 = vmul.f32 %v2150, %v2232
      %v2271 = vmul.f32 %v2151, %v2232
      %v2272 = vmul.f32 %v2152, %v2232
      %v2273 = vmul.f32 %v2153, %v2232
      %v2274 = vmul.f32 %v2154, %v2232
      %v2275 = vmul.f32 %v2155, %v2232
      %v2276 = vmul.f32 %v2156, %v2232
      %v2277 = vmul.f32 %v2157, %v2232
      %v2278 = vmul.f32 %v2158, %v2232
      %v2279 = vmul.f32 %v2159, %v2232
      %v2280 = vmul.f32 %v2160, %v2232
      %v2329 = vrot.slane %v2233, 1
      %v2330 = vrot.slane %v2234, 1
      %v2331 = vsel %vm1230, %v2329, %v2330
      %v2332 = vrot.slane %v2235, 1
      %v2333 = vsel %vm1230, %v2330, %v2332
      %v2334 = vrot.slane %v2236, 1
      %v2335 = vrot.slane %v2237, 1
      %v2336 = vsel %vm1230, %v2334, %v2335
      %v2337 = vrot.slane %v2238, 1
      %v2338 = vsel %vm1230, %v2335, %v2337
      %v2339 = vrot.slane %v2239, 1
      %v2340 = vrot.slane %v2240, 1
      %v2341 = vsel %vm1230, %v2339, %v2340
      %v2342 = vrot.slane %v2241, 1
      %v2343 = vsel %vm1230, %v2340, %v2342
      %v2344 = vrot.slane %v2242, 1
      %v2345 = vrot.slane %v2243, 1
      %v2346 = vsel %vm1230, %v2344, %v2345
      %v2347 = vrot.slane %v2244, 1
      %v2348 = vsel %vm1230, %v2345, %v2347
      %v2349 = vrot.slane %v2245, 1
      %v2350 = vrot.slane %v2246, 1
      %v2351 = vsel %vm1230, %v2349, %v2350
      %v2352 = vrot.slane %v2247, 1
      %v2353 = vsel %vm1230, %v2350, %v2352
      %v2354 = vrot.slane %v2248, 1
      %v2355 = vrot.slane %v2249, 1
      %v2356 = vsel %vm1230, %v2354, %v2355
      %v2357 = vrot.slane %v2250, 1
      %v2358 = vsel %vm1230, %v2355, %v2357
      %v2359 = vrot.slane %v2251, 1
      %v2360 = vrot.slane %v2252, 1
      %v2361 = vsel %vm1230, %v2359, %v2360
      %v2362 = vrot.slane %v2253, 1
      %v2363 = vsel %vm1230, %v2360, %v2362
      %v2364 = vrot.slane %v2254, 1
      %v2365 = vrot.slane %v2255, 1
      %v2366 = vsel %vm1230, %v2364, %v2365
      %v2367 = vrot.slane %v2256, 1
      %v2368 = vsel %vm1230, %v2365, %v2367
      %v2369 = vrot.slane %v2257, 1
      %v2370 = vrot.slane %v2258, 1
      %v2371 = vsel %vm1230, %v2369, %v2370
      %v2372 = vrot.slane %v2259, 1
      %v2373 = vsel %vm1230, %v2370, %v2372
      %v2374 = vrot.slane %v2260, 1
      %v2375 = vrot.slane %v2261, 1
      %v2376 = vsel %vm1230, %v2374, %v2375
      %v2377 = vrot.slane %v2262, 1
      %v2378 = vsel %vm1230, %v2375, %v2377
      %v2379 = vrot.slane %v2263, 1
      %v2380 = vrot.slane %v2264, 1
      %v2381 = vsel %vm1230, %v2379, %v2380
      %v2382 = vrot.slane %v2265, 1
      %v2383 = vsel %vm1230, %v2380, %v2382
      %v2384 = vrot.slane %v2266, 1
      %v2385 = vrot.slane %v2267, 1
      %v2386 = vsel %vm1230, %v2384, %v2385
      %v2387 = vrot.slane %v2268, 1
      %v2388 = vsel %vm1230, %v2385, %v2387
      %v2389 = vrot.slane %v2269, 1
      %v2390 = vrot.slane %v2270, 1
      %v2391 = vsel %vm1230, %v2389, %v2390
      %v2392 = vrot.slane %v2271, 1
      %v2393 = vsel %vm1230, %v2390, %v2392
      %v2394 = vrot.slane %v2272, 1
      %v2395 = vrot.slane %v2273, 1
      %v2396 = vsel %vm1230, %v2394, %v2395
      %v2397 = vrot.slane %v2274, 1
      %v2398 = vsel %vm1230, %v2395, %v2397
      %v2399 = vrot.slane %v2275, 1
      %v2400 = vrot.slane %v2276, 1
      %v2401 = vsel %vm1230, %v2399, %v2400
      %v2402 = vrot.slane %v2277, 1
      %v2403 = vsel %vm1230, %v2400, %v2402
      %v2404 = vrot.slane %v2278, 1
      %v2405 = vrot.slane %v2279, 1
      %v2406 = vsel %vm1230, %v2404, %v2405
      %v2407 = vrot.slane %v2280, 1
      %v2408 = vsel %vm1230, %v2405, %v2407
      %v2441 = vadd.f32 %v2197, %v2331
      %v2442 = vadd.f32 %v2198, %v2333
      %v2443 = vadd.f32 %v2199, %v2336
      %v2444 = vadd.f32 %v2200, %v2338
      %v2445 = vadd.f32 %v2201, %v2341
      %v2446 = vadd.f32 %v2202, %v2343
      %v2447 = vadd.f32 %v2203, %v2346
      %v2448 = vadd.f32 %v2204, %v2348
      %v2449 = vadd.f32 %v2205, %v2351
      %v2450 = vadd.f32 %v2206, %v2353
      %v2451 = vadd.f32 %v2207, %v2356
      %v2452 = vadd.f32 %v2208, %v2358
      %v2453 = vadd.f32 %v2209, %v2361
      %v2454 = vadd.f32 %v2210, %v2363
      %v2455 = vadd.f32 %v2211, %v2366
      %v2456 = vadd.f32 %v2212, %v2368
      %v2457 = vadd.f32 %v2213, %v2371
      %v2458 = vadd.f32 %v2214, %v2373
      %v2459 = vadd.f32 %v2215, %v2376
      %v2460 = vadd.f32 %v2216, %v2378
      %v2461 = vadd.f32 %v2217, %v2381
      %v2462 = vadd.f32 %v2218, %v2383
      %v2463 = vadd.f32 %v2219, %v2386
      %v2464 = vadd.f32 %v2220, %v2388
      %v2465 = vadd.f32 %v2221, %v2391
      %v2466 = vadd.f32 %v2222, %v2393
      %v2467 = vadd.f32 %v2223, %v2396
      %v2468 = vadd.f32 %v2224, %v2398
      %v2469 = vadd.f32 %v2225, %v2401
      %v2470 = vadd.f32 %v2226, %v2403
      %v2471 = vadd.f32 %v2227, %v2406
      %v2472 = vadd.f32 %v2228, %v2408
      %v2473 = vlaneseq
      %v2474 = vshrl.u32 %v2473, 7
      %v2475 = vsub.s32 7, %v2474
      %v2476 = vrot.slane %v1007, %v2475
      %v2477 = vmul.f32 %v2113, %v2476
      %v2478 = vmul.f32 %v2114, %v2476
      %v2479 = vmul.f32 %v2115, %v2476
      %v2480 = vmul.f32 %v2116, %v2476
      %v2481 = vmul.f32 %v2117, %v2476
      %v2482 = vmul.f32 %v2118, %v2476
      %v2483 = vmul.f32 %v2119, %v2476
      %v2484 = vmul.f32 %v2120, %v2476
      %v2485 = vmul.f32 %v2121, %v2476
      %v2486 = vmul.f32 %v2122, %v2476
      %v2487 = vmul.f32 %v2123, %v2476
      %v2488 = vmul.f32 %v2124, %v2476
      %v2489 = vmul.f32 %v2125, %v2476
      %v2490 = vmul.f32 %v2126, %v2476
      %v2491 = vmul.f32 %v2127, %v2476
      %v2492 = vmul.f32 %v2128, %v2476
      %v2493 = vmul.f32 %v2129, %v2476
      %v2494 = vmul.f32 %v2130, %v2476
      %v2495 = vmul.f32 %v2131, %v2476
      %v2496 = vmul.f32 %v2132, %v2476
      %v2497 = vmul.f32 %v2133, %v2476
      %v2498 = vmul.f32 %v2134, %v2476
      %v2499 = vmul.f32 %v2135, %v2476
      %v2500 = vmul.f32 %v2136, %v2476
      %v2501 = vmul.f32 %v2137, %v2476
      %v2502 = vmul.f32 %v2138, %v2476
      %v2503 = vmul.f32 %v2139, %v2476
      %v2504 = vmul.f32 %v2140, %v2476
      %v2505 = vmul.f32 %v2141, %v2476
      %v2506 = vmul.f32 %v2142, %v2476
      %v2507 = vmul.f32 %v2143, %v2476
      %v2508 = vmul.f32 %v2144, %v2476
      %v2509 = vmul.f32 %v2145, %v2476
      %v2510 = vmul.f32 %v2146, %v2476
      %v2511 = vmul.f32 %v2147, %v2476
      %v2512 = vmul.f32 %v2148, %v2476
      %v2513 = vmul.f32 %v2149, %v2476
      %v2514 = vmul.f32 %v2150, %v2476
      %v2515 = vmul.f32 %v2151, %v2476
      %v2516 = vmul.f32 %v2152, %v2476
      %v2517 = vmul.f32 %v2153, %v2476
      %v2518 = vmul.f32 %v2154, %v2476
      %v2519 = vmul.f32 %v2155, %v2476
      %v2520 = vmul.f32 %v2156, %v2476
      %v2521 = vmul.f32 %v2157, %v2476
      %v2522 = vmul.f32 %v2158, %v2476
      %v2523 = vmul.f32 %v2159, %v2476
      %v2524 = vmul.f32 %v2160, %v2476
      %v2573 = vrot.slane %v2477, 2
      %v2574 = vrot.slane %v2478, 2
      %v2575 = vsel %vm1475, %v2573, %v2574
      %v2576 = vrot.slane %v2479, 2
      %v2577 = vsel %vm1475, %v2574, %v2576
      %v2578 = vrot.slane %v2480, 2
      %v2579 = vrot.slane %v2481, 2
      %v2580 = vsel %vm1475, %v2578, %v2579
      %v2581 = vrot.slane %v2482, 2
      %v2582 = vsel %vm1475, %v2579, %v2581
      %v2583 = vrot.slane %v2483, 2
      %v2584 = vrot.slane %v2484, 2
      %v2585 = vsel %vm1475, %v2583, %v2584
      %v2586 = vrot.slane %v2485, 2
      %v2587 = vsel %vm1475, %v2584, %v2586
      %v2588 = vrot.slane %v2486, 2
      %v2589 = vrot.slane %v2487, 2
      %v2590 = vsel %vm1475, %v2588, %v2589
      %v2591 = vrot.slane %v2488, 2
      %v2592 = vsel %vm1475, %v2589, %v2591
      %v2593 = vrot.slane %v2489, 2
      %v2594 = vrot.slane %v2490, 2
      %v2595 = vsel %vm1475, %v2593, %v2594
      %v2596 = vrot.slane %v2491, 2
      %v2597 = vsel %vm1475, %v2594, %v2596
      %v2598 = vrot.slane %v2492, 2
      %v2599 = vrot.slane %v2493, 2
      %v2600 = vsel %vm1475, %v2598, %v2599
      %v2601 = vrot.slane %v2494, 2
      %v2602 = vsel %vm1475, %v2599, %v2601
      %v2603 = vrot.slane %v2495, 2
      %v2604 = vrot.slane %v2496, 2
      %v2605 = vsel %vm1475, %v2603, %v2604
      %v2606 = vrot.slane %v2497, 2
      %v2607 = vsel %vm1475, %v2604, %v2606
      %v2608 = vrot.slane %v2498, 2
      %v2609 = vrot.slane %v2499, 2
      %v2610 = vsel %vm1475, %v2608, %v2609
      %v2611 = vrot.slane %v2500, 2
      %v2612 = vsel %vm1475, %v2609, %v2611
      %v2613 = vrot.slane %v2501, 2
      %v2614 = vrot.slane %v2502, 2
      %v2615 = vsel %vm1475, %v2613, %v2614
      %v2616 = vrot.slane %v2503, 2
      %v2617 = vsel %vm1475, %v2614, %v2616
      %v2618 = vrot.slane %v2504, 2
      %v2619 = vrot.slane %v2505, 2
      %v2620 = vsel %vm1475, %v2618, %v2619
      %v2621 = vrot.slane %v2506, 2
      %v2622 = vsel %vm1475, %v2619, %v2621
      %v2623 = vrot.slane %v2507, 2
      %v2624 = vrot.slane %v2508, 2
      %v2625 = vsel %vm1475, %v2623, %v2624
      %v2626 = vrot.slane %v2509, 2
      %v2627 = vsel %vm1475, %v2624, %v2626
      %v2628 = vrot.slane %v2510, 2
      %v2629 = vrot.slane %v2511, 2
      %v2630 = vsel %vm1475, %v2628, %v2629
      %v2631 = vrot.slane %v2512, 2
      %v2632 = vsel %vm1475, %v2629, %v2631
      %v2633 = vrot.slane %v2513, 2
      %v2634 = vrot.slane %v2514, 2
      %v2635 = vsel %vm1475, %v2633, %v2634
      %v2636 = vrot.slane %v2515, 2
      %v2637 = vsel %vm1475, %v2634, %v2636
      %v2638 = vrot.slane %v2516, 2
      %v2639 = vrot.slane %v2517, 2
      %v2640 = vsel %vm1475, %v2638, %v2639
      %v2641 = vrot.slane %v2518, 2
      %v2642 = vsel %vm1475, %v2639, %v2641
      %v2643 = vrot.slane %v2519, 2
      %v2644 = vrot.slane %v2520, 2
      %v2645 = vsel %vm1475, %v2643, %v2644
      %v2646 = vrot.slane %v2521, 2
      %v2647 = vsel %vm1475, %v2644, %v2646
      %v2648 = vrot.slane %v2522, 2
      %v2649 = vrot.slane %v2523, 2
      %v2650 = vsel %vm1475, %v2648, %v2649
      %v2651 = vrot.slane %v2524, 2
      %v2652 = vsel %vm1475, %v2649, %v2651
      %v2685 = vadd.f32 %v2441, %v2575
      %v2686 = vadd.f32 %v2442, %v2577
      %v2687 = vadd.f32 %v2443, %v2580
      %v2688 = vadd.f32 %v2444, %v2582
      %v2689 = vadd.f32 %v2445, %v2585
      %v2690 = vadd.f32 %v2446, %v2587
      %v2691 = vadd.f32 %v2447, %v2590
      %v2692 = vadd.f32 %v2448, %v2592
      %v2693 = vadd.f32 %v2449, %v2595
      %v2694 = vadd.f32 %v2450, %v2597
      %v2695 = vadd.f32 %v2451, %v2600
      %v2696 = vadd.f32 %v2452, %v2602
      %v2697 = vadd.f32 %v2453, %v2605
      %v2698 = vadd.f32 %v2454, %v2607
      %v2699 = vadd.f32 %v2455, %v2610
      %v2700 = vadd.f32 %v2456, %v2612
      %v2701 = vadd.f32 %v2457, %v2615
      %v2702 = vadd.f32 %v2458, %v2617
      %v2703 = vadd.f32 %v2459, %v2620
      %v2704 = vadd.f32 %v2460, %v2622
      %v2705 = vadd.f32 %v2461, %v2625
      %v2706 = vadd.f32 %v2462, %v2627
      %v2707 = vadd.f32 %v2463, %v2630
      %v2708 = vadd.f32 %v2464, %v2632
      %v2709 = vadd.f32 %v2465, %v2635
      %v2710 = vadd.f32 %v2466, %v2637
      %v2711 = vadd.f32 %v2467, %v2640
      %v2712 = vadd.f32 %v2468, %v2642
      %v2713 = vadd.f32 %v2469, %v2645
      %v2714 = vadd.f32 %v2470, %v2647
      %v2715 = vadd.f32 %v2471, %v2650
      %v2716 = vadd.f32 %v2472, %v2652
      %v2717 = vlaneseq
      %v2718 = vshrl.u32 %v2717, 7
      %v2719 = vsub.s32 0, %v2718
      %v2720 = vrot.slane %v1008, %v2719
      %v2721 = vmul.f32 %v2113, %v2720
      %v2722 = vmul.f32 %v2114, %v2720
      %v2723 = vmul.f32 %v2115, %v2720
      %v2724 = vmul.f32 %v2116, %v2720
      %v2725 = vmul.f32 %v2117, %v2720
      %v2726 = vmul.f32 %v2118, %v2720
      %v2727 = vmul.f32 %v2119, %v2720
      %v2728 = vmul.f32 %v2120, %v2720
      %v2729 = vmul.f32 %v2121, %v2720
      %v2730 = vmul.f32 %v2122, %v2720
      %v2731 = vmul.f32 %v2123, %v2720
      %v2732 = vmul.f32 %v2124, %v2720
      %v2733 = vmul.f32 %v2125, %v2720
      %v2734 = vmul.f32 %v2126, %v2720
      %v2735 = vmul.f32 %v2127, %v2720
      %v2736 = vmul.f32 %v2128, %v2720
      %v2737 = vmul.f32 %v2129, %v2720
      %v2738 = vmul.f32 %v2130, %v2720
      %v2739 = vmul.f32 %v2131, %v2720
      %v2740 = vmul.f32 %v2132, %v2720
      %v2741 = vmul.f32 %v2133, %v2720
      %v2742 = vmul.f32 %v2134, %v2720
      %v2743 = vmul.f32 %v2135, %v2720
      %v2744 = vmul.f32 %v2136, %v2720
      %v2745 = vmul.f32 %v2137, %v2720
      %v2746 = vmul.f32 %v2138, %v2720
      %v2747 = vmul.f32 %v2139, %v2720
      %v2748 = vmul.f32 %v2140, %v2720
      %v2749 = vmul.f32 %v2141, %v2720
      %v2750 = vmul.f32 %v2142, %v2720
      %v2751 = vmul.f32 %v2143, %v2720
      %v2752 = vmul.f32 %v2144, %v2720
      %v2753 = vmul.f32 %v2145, %v2720
      %v2754 = vmul.f32 %v2146, %v2720
      %v2755 = vmul.f32 %v2147, %v2720
      %v2756 = vmul.f32 %v2148, %v2720
      %v2757 = vmul.f32 %v2149, %v2720
      %v2758 = vmul.f32 %v2150, %v2720
      %v2759 = vmul.f32 %v2151, %v2720
      %v2760 = vmul.f32 %v2152, %v2720
      %v2761 = vmul.f32 %v2153, %v2720
      %v2762 = vmul.f32 %v2154, %v2720
      %v2763 = vmul.f32 %v2155, %v2720
      %v2764 = vmul.f32 %v2156, %v2720
      %v2765 = vmul.f32 %v2157, %v2720
      %v2766 = vmul.f32 %v2158, %v2720
      %v2767 = vmul.f32 %v2159, %v2720
      %v2768 = vmul.f32 %v2160, %v2720
      %v2817 = vrot.slane %v2721, 3
      %v2818 = vrot.slane %v2722, 3
      %v2819 = vsel %vm1720, %v2817, %v2818
      %v2820 = vrot.slane %v2723, 3
      %v2821 = vsel %vm1720, %v2818, %v2820
      %v2822 = vrot.slane %v2724, 3
      %v2823 = vrot.slane %v2725, 3
      %v2824 = vsel %vm1720, %v2822, %v2823
      %v2825 = vrot.slane %v2726, 3
      %v2826 = vsel %vm1720, %v2823, %v2825
      %v2827 = vrot.slane %v2727, 3
      %v2828 = vrot.slane %v2728, 3
      %v2829 = vsel %vm1720, %v2827, %v2828
      %v2830 = vrot.slane %v2729, 3
      %v2831 = vsel %vm1720, %v2828, %v2830
      %v2832 = vrot.slane %v2730, 3
      %v2833 = vrot.slane %v2731, 3
      %v2834 = vsel %vm1720, %v2832, %v2833
      %v2835 = vrot.slane %v2732, 3
      %v2836 = vsel %vm1720, %v2833, %v2835
      %v2837 = vrot.slane %v2733, 3
      %v2838 = vrot.slane %v2734, 3
      %v2839 = vsel %vm1720, %v2837, %v2838
      %v2840 = vrot.slane %v2735, 3
      %v2841 = vsel %vm1720, %v2838, %v2840
      %v2842 = vrot.slane %v2736, 3
      %v2843 = vrot.slane %v2737, 3
      %v2844 = vsel %vm1720, %v2842, %v2843
      %v2845 = vrot.slane %v2738, 3
      %v2846 = vsel %vm1720, %v2843, %v2845
      %v2847 = vrot.slane %v2739, 3
      %v2848 = vrot.slane %v2740, 3
      %v2849 = vsel %vm1720, %v2847, %v2848
      %v2850 = vrot.slane %v2741, 3
      %v2851 = vsel %vm1720, %v2848, %v2850
      %v2852 = vrot.slane %v2742, 3
      %v2853 = vrot.slane %v2743, 3
      %v2854 = vsel %vm1720, %v2852, %v2853
      %v2855 = vrot.slane %v2744, 3
      %v2856 = vsel %vm1720, %v2853, %v2855
      %v2857 = vrot.slane %v2745, 3
      %v2858 = vrot.slane %v2746, 3
      %v2859 = vsel %vm1720, %v2857, %v2858
      %v2860 = vrot.slane %v2747, 3
      %v2861 = vsel %vm1720, %v2858, %v2860
      %v2862 = vrot.slane %v2748, 3
      %v2863 = vrot.slane %v2749, 3
      %v2864 = vsel %vm1720, %v2862, %v2863
      %v2865 = vrot.slane %v2750, 3
      %v2866 = vsel %vm1720, %v2863, %v2865
      %v2867 = vrot.slane %v2751, 3
      %v2868 = vrot.slane %v2752, 3
      %v2869 = vsel %vm1720, %v2867, %v2868
      %v2870 = vrot.slane %v2753, 3
      %v2871 = vsel %vm1720, %v2868, %v2870
      %v2872 = vrot.slane %v2754, 3
      %v2873 = vrot.slane %v2755, 3
      %v2874 = vsel %vm1720, %v2872, %v2873
      %v2875 = vrot.slane %v2756, 3
      %v2876 = vsel %vm1720, %v2873, %v2875
      %v2877 = vrot.slane %v2757, 3
      %v2878 = vrot.slane %v2758, 3
      %v2879 = vsel %vm1720, %v2877, %v2878
      %v2880 = vrot.slane %v2759, 3
      %v2881 = vsel %vm1720, %v2878, %v2880
      %v2882 = vrot.slane %v2760, 3
      %v2883 = vrot.slane %v2761, 3
      %v2884 = vsel %vm1720, %v2882, %v2883
      %v2885 = vrot.slane %v2762, 3
      %v2886 = vsel %vm1720, %v2883, %v2885
      %v2887 = vrot.slane %v2763, 3
      %v2888 = vrot.slane %v2764, 3
      %v2889 = vsel %vm1720, %v2887, %v2888
      %v2890 = vrot.slane %v2765, 3
      %v2891 = vsel %vm1720, %v2888, %v2890
      %v2892 = vrot.slane %v2766, 3
      %v2893 = vrot.slane %v2767, 3
      %v2894 = vsel %vm1720, %v2892, %v2893
      %v2895 = vrot.slane %v2768, 3
      %v2896 = vsel %vm1720, %v2893, %v2895
      %v2929 = vadd.f32 %v2685, %v2819
      %v2930 = vadd.f32 %v2686, %v2821
      %v2931 = vadd.f32 %v2687, %v2824
      %v2932 = vadd.f32 %v2688, %v2826
      %v2933 = vadd.f32 %v2689, %v2829
      %v2934 = vadd.f32 %v2690, %v2831
      %v2935 = vadd.f32 %v2691, %v2834
      %v2936 = vadd.f32 %v2692, %v2836
      %v2937 = vadd.f32 %v2693, %v2839
      %v2938 = vadd.f32 %v2694, %v2841
      %v2939 = vadd.f32 %v2695, %v2844
      %v2940 = vadd.f32 %v2696, %v2846
      %v2941 = vadd.f32 %v2697, %v2849
      %v2942 = vadd.f32 %v2698, %v2851
      %v2943 = vadd.f32 %v2699, %v2854
      %v2944 = vadd.f32 %v2700, %v2856
      %v2945 = vadd.f32 %v2701, %v2859
      %v2946 = vadd.f32 %v2702, %v2861
      %v2947 = vadd.f32 %v2703, %v2864
      %v2948 = vadd.f32 %v2704, %v2866
      %v2949 = vadd.f32 %v2705, %v2869
      %v2950 = vadd.f32 %v2706, %v2871
      %v2951 = vadd.f32 %v2707, %v2874
      %v2952 = vadd.f32 %v2708, %v2876
      %v2953 = vadd.f32 %v2709, %v2879
      %v2954 = vadd.f32 %v2710, %v2881
      %v2955 = vadd.f32 %v2711, %v2884
      %v2956 = vadd.f32 %v2712, %v2886
      %v2957 = vadd.f32 %v2713, %v2889
      %v2958 = vadd.f32 %v2714, %v2891
      %v2959 = vadd.f32 %v2715, %v2894
      %v2960 = vadd.f32 %v2716, %v2896
      %v2961 = vlaneseq
      %v2962 = vshrl.u32 %v2961, 7
      %v2963 = vsub.s32 1, %v2962
      %v2964 = vrot.slane %v1008, %v2963
      %v2965 = vmul.f32 %v2113, %v2964
      %v2966 = vmul.f32 %v2114, %v2964
      %v2967 = vmul.f32 %v2115, %v2964
      %v2968 = vmul.f32 %v2116, %v2964
      %v2969 = vmul.f32 %v2117, %v2964
      %v2970 = vmul.f32 %v2118, %v2964
      %v2971 = vmul.f32 %v2119, %v2964
      %v2972 = vmul.f32 %v2120, %v2964
      %v2973 = vmul.f32 %v2121, %v2964
      %v2974 = vmul.f32 %v2122, %v2964
      %v2975 = vmul.f32 %v2123, %v2964
      %v2976 = vmul.f32 %v2124, %v2964
      %v2977 = vmul.f32 %v2125, %v2964
      %v2978 = vmul.f32 %v2126, %v2964
      %v2979 = vmul.f32 %v2127, %v2964
      %v2980 = vmul.f32 %v2128, %v2964
      %v2981 = vmul.f32 %v2129, %v2964
      %v2982 = vmul.f32 %v2130, %v2964
      %v2983 = vmul.f32 %v2131, %v2964
      %v2984 = vmul.f32 %v2132, %v2964
      %v2985 = vmul.f32 %v2133, %v2964
      %v2986 = vmul.f32 %v2134, %v2964
      %v2987 = vmul.f32 %v2135, %v2964
      %v2988 = vmul.f32 %v2136, %v2964
      %v2989 = vmul.f32 %v2137, %v2964
      %v2990 = vmul.f32 %v2138, %v2964
      %v2991 = vmul.f32 %v2139, %v2964
      %v2992 = vmul.f32 %v2140, %v2964
      %v2993 = vmul.f32 %v2141, %v2964
      %v2994 = vmul.f32 %v2142, %v2964
      %v2995 = vmul.f32 %v2143, %v2964
      %v2996 = vmul.f32 %v2144, %v2964
      %v2997 = vmul.f32 %v2145, %v2964
      %v2998 = vmul.f32 %v2146, %v2964
      %v2999 = vmul.f32 %v2147, %v2964
      %v3000 = vmul.f32 %v2148, %v2964
      %v3001 = vmul.f32 %v2149, %v2964
      %v3002 = vmul.f32 %v2150, %v2964
      %v3003 = vmul.f32 %v2151, %v2964
      %v3004 = vmul.f32 %v2152, %v2964
      %v3005 = vmul.f32 %v2153, %v2964
      %v3006 = vmul.f32 %v2154, %v2964
      %v3007 = vmul.f32 %v2155, %v2964
      %v3008 = vmul.f32 %v2156, %v2964
      %v3009 = vmul.f32 %v2157, %v2964
      %v3010 = vmul.f32 %v2158, %v2964
      %v3011 = vmul.f32 %v2159, %v2964
      %v3012 = vmul.f32 %v2160, %v2964
      %v3061 = vrot.slane %v2965, 4
      %v3062 = vrot.slane %v2966, 4
      %v3063 = vsel %vm1965, %v3061, %v3062
      %v3064 = vrot.slane %v2967, 4
      %v3065 = vsel %vm1965, %v3062, %v3064
      %v3066 = vrot.slane %v2968, 4
      %v3067 = vrot.slane %v2969, 4
      %v3068 = vsel %vm1965, %v3066, %v3067
      %v3069 = vrot.slane %v2970, 4
      %v3070 = vsel %vm1965, %v3067, %v3069
      %v3071 = vrot.slane %v2971, 4
      %v3072 = vrot.slane %v2972, 4
      %v3073 = vsel %vm1965, %v3071, %v3072
      %v3074 = vrot.slane %v2973, 4
      %v3075 = vsel %vm1965, %v3072, %v3074
      %v3076 = vrot.slane %v2974, 4
      %v3077 = vrot.slane %v2975, 4
      %v3078 = vsel %vm1965, %v3076, %v3077
      %v3079 = vrot.slane %v2976, 4
      %v3080 = vsel %vm1965, %v3077, %v3079
      %v3081 = vrot.slane %v2977, 4
      %v3082 = vrot.slane %v2978, 4
      %v3083 = vsel %vm1965, %v3081, %v3082
      %v3084 = vrot.slane %v2979, 4
      %v3085 = vsel %vm1965, %v3082, %v3084
      %v3086 = vrot.slane %v2980, 4
      %v3087 = vrot.slane %v2981, 4
      %v3088 = vsel %vm1965, %v3086, %v3087
      %v3089 = vrot.slane %v2982, 4
      %v3090 = vsel %vm1965, %v3087, %v3089
      %v3091 = vrot.slane %v2983, 4
      %v3092 = vrot.slane %v2984, 4
      %v3093 = vsel %vm1965, %v3091, %v3092
      %v3094 = vrot.slane %v2985, 4
      %v3095 = vsel %vm1965, %v3092, %v3094
      %v3096 = vrot.slane %v2986, 4
      %v3097 = vrot.slane %v2987, 4
      %v3098 = vsel %vm1965, %v3096, %v3097
      %v3099 = vrot.slane %v2988, 4
      %v3100 = vsel %vm1965, %v3097, %v3099
      %v3101 = vrot.slane %v2989, 4
      %v3102 = vrot.slane %v2990, 4
      %v3103 = vsel %vm1965, %v3101, %v3102
      %v3104 = vrot.slane %v2991, 4
      %v3105 = vsel %vm1965, %v3102, %v3104
      %v3106 = vrot.slane %v2992, 4
      %v3107 = vrot.slane %v2993, 4
      %v3108 = vsel %vm1965, %v3106, %v3107
      %v3109 = vrot.slane %v2994, 4
      %v3110 = vsel %vm1965, %v3107, %v3109
      %v3111 = vrot.slane %v2995, 4
      %v3112 = vrot.slane %v2996, 4
      %v3113 = vsel %vm1965, %v3111, %v3112
      %v3114 = vrot.slane %v2997, 4
      %v3115 = vsel %vm1965, %v3112, %v3114
      %v3116 = vrot.slane %v2998, 4
      %v3117 = vrot.slane %v2999, 4
      %v3118 = vsel %vm1965, %v3116, %v3117
      %v3119 = vrot.slane %v3000, 4
      %v3120 = vsel %vm1965, %v3117, %v3119
      %v3121 = vrot.slane %v3001, 4
      %v3122 = vrot.slane %v3002, 4
      %v3123 = vsel %vm1965, %v3121, %v3122
      %v3124 = vrot.slane %v3003, 4
      %v3125 = vsel %vm1965, %v3122, %v3124
      %v3126 = vrot.slane %v3004, 4
      %v3127 = vrot.slane %v3005, 4
      %v3128 = vsel %vm1965, %v3126, %v3127
      %v3129 = vrot.slane %v3006, 4
      %v3130 = vsel %vm1965, %v3127, %v3129
      %v3131 = vrot.slane %v3007, 4
      %v3132 = vrot.slane %v3008, 4
      %v3133 = vsel %vm1965, %v3131, %v3132
      %v3134 = vrot.slane %v3009, 4
      %v3135 = vsel %vm1965, %v3132, %v3134
      %v3136 = vrot.slane %v3010, 4
      %v3137 = vrot.slane %v3011, 4
      %v3138 = vsel %vm1965, %v3136, %v3137
      %v3139 = vrot.slane %v3012, 4
      %v3140 = vsel %vm1965, %v3137, %v3139
      %v3173 = vadd.f32 %v2929, %v3063
      %v3174 = vadd.f32 %v2930, %v3065
      %v3175 = vadd.f32 %v2931, %v3068
      %v3176 = vadd.f32 %v2932, %v3070
      %v3177 = vadd.f32 %v2933, %v3073
      %v3178 = vadd.f32 %v2934, %v3075
      %v3179 = vadd.f32 %v2935, %v3078
      %v3180 = vadd.f32 %v2936, %v3080
      %v3181 = vadd.f32 %v2937, %v3083
      %v3182 = vadd.f32 %v2938, %v3085
      %v3183 = vadd.f32 %v2939, %v3088
      %v3184 = vadd.f32 %v2940, %v3090
      %v3185 = vadd.f32 %v2941, %v3093
      %v3186 = vadd.f32 %v2942, %v3095
      %v3187 = vadd.f32 %v2943, %v3098
      %v3188 = vadd.f32 %v2944, %v3100
      %v3189 = vadd.f32 %v2945, %v3103
      %v3190 = vadd.f32 %v2946, %v3105
      %v3191 = vadd.f32 %v2947, %v3108
      %v3192 = vadd.f32 %v2948, %v3110
      %v3193 = vadd.f32 %v2949, %v3113
      %v3194 = vadd.f32 %v2950, %v3115
      %v3195 = vadd.f32 %v2951, %v3118
      %v3196 = vadd.f32 %v2952, %v3120
      %v3197 = vadd.f32 %v2953, %v3123
      %v3198 = vadd.f32 %v2954, %v3125
      %v3199 = vadd.f32 %v2955, %v3128
      %v3200 = vadd.f32 %v2956, %v3130
      %v3201 = vadd.f32 %v2957, %v3133
      %v3202 = vadd.f32 %v2958, %v3135
      %v3203 = vadd.f32 %v2959, %v3138
      %v3204 = vadd.f32 %v2960, %v3140
      %s3205 = sadd.s32 0, 2
      %s3206 = smul.u32 %s3205, 24
      %s3207 = scalar_lea.vmem [#allocation2], %s3206
      %v3208 = vld [vmem:[%s3207] sm:$0xff]
      %v3209 = vld [vmem:[%s3207 + $0x8] sm:$0xff]
      %v3210 = vld [vmem:[%s3207 + $0x10] sm:$0xff]
      %v3211 = vld [vmem:[%s3207 + $0x18] sm:$0xff]
      %v3212 = vld [vmem:[%s3207 + $0x20] sm:$0xff]
      %v3213 = vld [vmem:[%s3207 + $0x28] sm:$0xff]
      %v3214 = vld [vmem:[%s3207 + $0x30] sm:$0xff]
      %v3215 = vld [vmem:[%s3207 + $0x38] sm:$0xff]
      %v3216 = vld [vmem:[%s3207 + $0x40] sm:$0xff]
      %v3217 = vld [vmem:[%s3207 + $0x48] sm:$0xff]
      %v3218 = vld [vmem:[%s3207 + $0x50] sm:$0xff]
      %v3219 = vld [vmem:[%s3207 + $0x58] sm:$0xff]
      %v3220 = vld [vmem:[%s3207 + $0x60] sm:$0xff]
      %v3221 = vld [vmem:[%s3207 + $0x68] sm:$0xff]
      %v3222 = vld [vmem:[%s3207 + $0x70] sm:$0xff]
      %v3223 = vld [vmem:[%s3207 + $0x78] sm:$0xff]
      %v3224 = vld [vmem:[%s3207 + $0x80] sm:$0xff]
      %v3225 = vld [vmem:[%s3207 + $0x88] sm:$0xff]
      %v3226 = vld [vmem:[%s3207 + $0x90] sm:$0xff]
      %v3227 = vld [vmem:[%s3207 + $0x98] sm:$0xff]
      %v3228 = vld [vmem:[%s3207 + $0xa0] sm:$0xff]
      %v3229 = vld [vmem:[%s3207 + $0xa8] sm:$0xff]
      %v3230 = vld [vmem:[%s3207 + $0xb0] sm:$0xff]
      %v3231 = vld [vmem:[%s3207 + $0xb8] sm:$0xff]
      %v3232 = vld [vmem:[%s3207 + $0xc0] sm:$0xff]
      %v3233 = vld [vmem:[%s3207 + $0xc8] sm:$0xff]
      %v3234 = vld [vmem:[%s3207 + $0xd0] sm:$0xff]
      %v3235 = vld [vmem:[%s3207 + $0xd8] sm:$0xff]
      %v3236 = vld [vmem:[%s3207 + $0xe0] sm:$0xff]
      %v3237 = vld [vmem:[%s3207 + $0xe8] sm:$0xff]
      %v3238 = vld [vmem:[%s3207 + $0xf0] sm:$0xff]
      %v3239 = vld [vmem:[%s3207 + $0xf8] sm:$0xff]
      %v3240 = vld [vmem:[%s3207 + $0x100] sm:$0xff]
      %v3241 = vld [vmem:[%s3207 + $0x108] sm:$0xff]
      %v3242 = vld [vmem:[%s3207 + $0x110] sm:$0xff]
      %v3243 = vld [vmem:[%s3207 + $0x118] sm:$0xff]
      %v3244 = vld [vmem:[%s3207 + $0x120] sm:$0xff]
      %v3245 = vld [vmem:[%s3207 + $0x128] sm:$0xff]
      %v3246 = vld [vmem:[%s3207 + $0x130] sm:$0xff]
      %v3247 = vld [vmem:[%s3207 + $0x138] sm:$0xff]
      %v3248 = vld [vmem:[%s3207 + $0x140] sm:$0xff]
      %v3249 = vld [vmem:[%s3207 + $0x148] sm:$0xff]
      %v3250 = vld [vmem:[%s3207 + $0x150] sm:$0xff]
      %v3251 = vld [vmem:[%s3207 + $0x158] sm:$0xff]
      %v3252 = vld [vmem:[%s3207 + $0x160] sm:$0xff]
      %v3253 = vld [vmem:[%s3207 + $0x168] sm:$0xff]
      %v3254 = vld [vmem:[%s3207 + $0x170] sm:$0xff]
      %v3255 = vld [vmem:[%s3207 + $0x178] sm:$0xff]
      %v3256 = vlaneseq
      %v3257 = vshrl.u32 %v3256, 7
      %v3258 = vsub.s32 2, %v3257
      %v3259 = vrot.slane %v1008, %v3258
      %v3260 = vmul.f32 %v3208, %v3259
      %v3261 = vmul.f32 %v3209, %v3259
      %v3262 = vmul.f32 %v3211, %v3259
      %v3263 = vmul.f32 %v3212, %v3259
      %v3264 = vmul.f32 %v3214, %v3259
      %v3265 = vmul.f32 %v3215, %v3259
      %v3266 = vmul.f32 %v3217, %v3259
      %v3267 = vmul.f32 %v3218, %v3259
      %v3268 = vmul.f32 %v3220, %v3259
      %v3269 = vmul.f32 %v3221, %v3259
      %v3270 = vmul.f32 %v3223, %v3259
      %v3271 = vmul.f32 %v3224, %v3259
      %v3272 = vmul.f32 %v3226, %v3259
      %v3273 = vmul.f32 %v3227, %v3259
      %v3274 = vmul.f32 %v3229, %v3259
      %v3275 = vmul.f32 %v3230, %v3259
      %v3276 = vmul.f32 %v3232, %v3259
      %v3277 = vmul.f32 %v3233, %v3259
      %v3278 = vmul.f32 %v3235, %v3259
      %v3279 = vmul.f32 %v3236, %v3259
      %v3280 = vmul.f32 %v3238, %v3259
      %v3281 = vmul.f32 %v3239, %v3259
      %v3282 = vmul.f32 %v3241, %v3259
      %v3283 = vmul.f32 %v3242, %v3259
      %v3284 = vmul.f32 %v3244, %v3259
      %v3285 = vmul.f32 %v3245, %v3259
      %v3286 = vmul.f32 %v3247, %v3259
      %v3287 = vmul.f32 %v3248, %v3259
      %v3288 = vmul.f32 %v3250, %v3259
      %v3289 = vmul.f32 %v3251, %v3259
      %v3290 = vmul.f32 %v3253, %v3259
      %v3291 = vmul.f32 %v3254, %v3259
      %v3292 = vadd.f32 %v3173, %v3260
      %v3293 = vadd.f32 %v3174, %v3261
      %v3294 = vadd.f32 %v3175, %v3262
      %v3295 = vadd.f32 %v3176, %v3263
      %v3296 = vadd.f32 %v3177, %v3264
      %v3297 = vadd.f32 %v3178, %v3265
      %v3298 = vadd.f32 %v3179, %v3266
      %v3299 = vadd.f32 %v3180, %v3267
      %v3300 = vadd.f32 %v3181, %v3268
      %v3301 = vadd.f32 %v3182, %v3269
      %v3302 = vadd.f32 %v3183, %v3270
      %v3303 = vadd.f32 %v3184, %v3271
      %v3304 = vadd.f32 %v3185, %v3272
      %v3305 = vadd.f32 %v3186, %v3273
      %v3306 = vadd.f32 %v3187, %v3274
      %v3307 = vadd.f32 %v3188, %v3275
      %v3308 = vadd.f32 %v3189, %v3276
      %v3309 = vadd.f32 %v3190, %v3277
      %v3310 = vadd.f32 %v3191, %v3278
      %v3311 = vadd.f32 %v3192, %v3279
      %v3312 = vadd.f32 %v3193, %v3280
      %v3313 = vadd.f32 %v3194, %v3281
      %v3314 = vadd.f32 %v3195, %v3282
      %v3315 = vadd.f32 %v3196, %v3283
      %v3316 = vadd.f32 %v3197, %v3284
      %v3317 = vadd.f32 %v3198, %v3285
      %v3318 = vadd.f32 %v3199, %v3286
      %v3319 = vadd.f32 %v3200, %v3287
      %v3320 = vadd.f32 %v3201, %v3288
      %v3321 = vadd.f32 %v3202, %v3289
      %v3322 = vadd.f32 %v3203, %v3290
      %v3323 = vadd.f32 %v3204, %v3291
      %v3324 = vlaneseq
      %v3325 = vshrl.u32 %v3324, 7
      %v3326 = vsub.s32 3, %v3325
      %v3327 = vrot.slane %v1008, %v3326
      %v3328 = vmul.f32 %v3208, %v3327
      %v3329 = vmul.f32 %v3209, %v3327
      %v3330 = vmul.f32 %v3210, %v3327
      %v3331 = vmul.f32 %v3211, %v3327
      %v3332 = vmul.f32 %v3212, %v3327
      %v3333 = vmul.f32 %v3213, %v3327
      %v3334 = vmul.f32 %v3214, %v3327
      %v3335 = vmul.f32 %v3215, %v3327
      %v3336 = vmul.f32 %v3216, %v3327
      %v3337 = vmul.f32 %v3217, %v3327
      %v3338 = vmul.f32 %v3218, %v3327
      %v3339 = vmul.f32 %v3219, %v3327
      %v3340 = vmul.f32 %v3220, %v3327
      %v3341 = vmul.f32 %v3221, %v3327
      %v3342 = vmul.f32 %v3222, %v3327
      %v3343 = vmul.f32 %v3223, %v3327
      %v3344 = vmul.f32 %v3224, %v3327
      %v3345 = vmul.f32 %v3225, %v3327
      %v3346 = vmul.f32 %v3226, %v3327
      %v3347 = vmul.f32 %v3227, %v3327
      %v3348 = vmul.f32 %v3228, %v3327
      %v3349 = vmul.f32 %v3229, %v3327
      %v3350 = vmul.f32 %v3230, %v3327
      %v3351 = vmul.f32 %v3231, %v3327
      %v3352 = vmul.f32 %v3232, %v3327
      %v3353 = vmul.f32 %v3233, %v3327
      %v3354 = vmul.f32 %v3234, %v3327
      %v3355 = vmul.f32 %v3235, %v3327
      %v3356 = vmul.f32 %v3236, %v3327
      %v3357 = vmul.f32 %v3237, %v3327
      %v3358 = vmul.f32 %v3238, %v3327
      %v3359 = vmul.f32 %v3239, %v3327
      %v3360 = vmul.f32 %v3240, %v3327
      %v3361 = vmul.f32 %v3241, %v3327
      %v3362 = vmul.f32 %v3242, %v3327
      %v3363 = vmul.f32 %v3243, %v3327
      %v3364 = vmul.f32 %v3244, %v3327
      %v3365 = vmul.f32 %v3245, %v3327
      %v3366 = vmul.f32 %v3246, %v3327
      %v3367 = vmul.f32 %v3247, %v3327
      %v3368 = vmul.f32 %v3248, %v3327
      %v3369 = vmul.f32 %v3249, %v3327
      %v3370 = vmul.f32 %v3250, %v3327
      %v3371 = vmul.f32 %v3251, %v3327
      %v3372 = vmul.f32 %v3252, %v3327
      %v3373 = vmul.f32 %v3253, %v3327
      %v3374 = vmul.f32 %v3254, %v3327
      %v3375 = vmul.f32 %v3255, %v3327
      %v3424 = vrot.slane %v3328, 1
      %v3425 = vrot.slane %v3329, 1
      %v3426 = vsel %vm1230, %v3424, %v3425
      %v3427 = vrot.slane %v3330, 1
      %v3428 = vsel %vm1230, %v3425, %v3427
      %v3429 = vrot.slane %v3331, 1
      %v3430 = vrot.slane %v3332, 1
      %v3431 = vsel %vm1230, %v3429, %v3430
      %v3432 = vrot.slane %v3333, 1
      %v3433 = vsel %vm1230, %v3430, %v3432
      %v3434 = vrot.slane %v3334, 1
      %v3435 = vrot.slane %v3335, 1
      %v3436 = vsel %vm1230, %v3434, %v3435
      %v3437 = vrot.slane %v3336, 1
      %v3438 = vsel %vm1230, %v3435, %v3437
      %v3439 = vrot.slane %v3337, 1
      %v3440 = vrot.slane %v3338, 1
      %v3441 = vsel %vm1230, %v3439, %v3440
      %v3442 = vrot.slane %v3339, 1
      %v3443 = vsel %vm1230, %v3440, %v3442
      %v3444 = vrot.slane %v3340, 1
      %v3445 = vrot.slane %v3341, 1
      %v3446 = vsel %vm1230, %v3444, %v3445
      %v3447 = vrot.slane %v3342, 1
      %v3448 = vsel %vm1230, %v3445, %v3447
      %v3449 = vrot.slane %v3343, 1
      %v3450 = vrot.slane %v3344, 1
      %v3451 = vsel %vm1230, %v3449, %v3450
      %v3452 = vrot.slane %v3345, 1
      %v3453 = vsel %vm1230, %v3450, %v3452
      %v3454 = vrot.slane %v3346, 1
      %v3455 = vrot.slane %v3347, 1
      %v3456 = vsel %vm1230, %v3454, %v3455
      %v3457 = vrot.slane %v3348, 1
      %v3458 = vsel %vm1230, %v3455, %v3457
      %v3459 = vrot.slane %v3349, 1
      %v3460 = vrot.slane %v3350, 1
      %v3461 = vsel %vm1230, %v3459, %v3460
      %v3462 = vrot.slane %v3351, 1
      %v3463 = vsel %vm1230, %v3460, %v3462
      %v3464 = vrot.slane %v3352, 1
      %v3465 = vrot.slane %v3353, 1
      %v3466 = vsel %vm1230, %v3464, %v3465
      %v3467 = vrot.slane %v3354, 1
      %v3468 = vsel %vm1230, %v3465, %v3467
      %v3469 = vrot.slane %v3355, 1
      %v3470 = vrot.slane %v3356, 1
      %v3471 = vsel %vm1230, %v3469, %v3470
      %v3472 = vrot.slane %v3357, 1
      %v3473 = vsel %vm1230, %v3470, %v3472
      %v3474 = vrot.slane %v3358, 1
      %v3475 = vrot.slane %v3359, 1
      %v3476 = vsel %vm1230, %v3474, %v3475
      %v3477 = vrot.slane %v3360, 1
      %v3478 = vsel %vm1230, %v3475, %v3477
      %v3479 = vrot.slane %v3361, 1
      %v3480 = vrot.slane %v3362, 1
      %v3481 = vsel %vm1230, %v3479, %v3480
      %v3482 = vrot.slane %v3363, 1
      %v3483 = vsel %vm1230, %v3480, %v3482
      %v3484 = vrot.slane %v3364, 1
      %v3485 = vrot.slane %v3365, 1
      %v3486 = vsel %vm1230, %v3484, %v3485
      %v3487 = vrot.slane %v3366, 1
      %v3488 = vsel %vm1230, %v3485, %v3487
      %v3489 = vrot.slane %v3367, 1
      %v3490 = vrot.slane %v3368, 1
      %v3491 = vsel %vm1230, %v3489, %v3490
      %v3492 = vrot.slane %v3369, 1
      %v3493 = vsel %vm1230, %v3490, %v3492
      %v3494 = vrot.slane %v3370, 1
      %v3495 = vrot.slane %v3371, 1
      %v3496 = vsel %vm1230, %v3494, %v3495
      %v3497 = vrot.slane %v3372, 1
      %v3498 = vsel %vm1230, %v3495, %v3497
      %v3499 = vrot.slane %v3373, 1
      %v3500 = vrot.slane %v3374, 1
      %v3501 = vsel %vm1230, %v3499, %v3500
      %v3502 = vrot.slane %v3375, 1
      %v3503 = vsel %vm1230, %v3500, %v3502
      %v3536 = vadd.f32 %v3292, %v3426
      %v3537 = vadd.f32 %v3293, %v3428
      %v3538 = vadd.f32 %v3294, %v3431
      %v3539 = vadd.f32 %v3295, %v3433
      %v3540 = vadd.f32 %v3296, %v3436
      %v3541 = vadd.f32 %v3297, %v3438
      %v3542 = vadd.f32 %v3298, %v3441
      %v3543 = vadd.f32 %v3299, %v3443
      %v3544 = vadd.f32 %v3300, %v3446
      %v3545 = vadd.f32 %v3301, %v3448
      %v3546 = vadd.f32 %v3302, %v3451
      %v3547 = vadd.f32 %v3303, %v3453
      %v3548 = vadd.f32 %v3304, %v3456
      %v3549 = vadd.f32 %v3305, %v3458
      %v3550 = vadd.f32 %v3306, %v3461
      %v3551 = vadd.f32 %v3307, %v3463
      %v3552 = vadd.f32 %v3308, %v3466
      %v3553 = vadd.f32 %v3309, %v3468
      %v3554 = vadd.f32 %v3310, %v3471
      %v3555 = vadd.f32 %v3311, %v3473
      %v3556 = vadd.f32 %v3312, %v3476
      %v3557 = vadd.f32 %v3313, %v3478
      %v3558 = vadd.f32 %v3314, %v3481
      %v3559 = vadd.f32 %v3315, %v3483
      %v3560 = vadd.f32 %v3316, %v3486
      %v3561 = vadd.f32 %v3317, %v3488
      %v3562 = vadd.f32 %v3318, %v3491
      %v3563 = vadd.f32 %v3319, %v3493
      %v3564 = vadd.f32 %v3320, %v3496
      %v3565 = vadd.f32 %v3321, %v3498
      %v3566 = vadd.f32 %v3322, %v3501
      %v3567 = vadd.f32 %v3323, %v3503
      %v3568 = vlaneseq
      %v3569 = vshrl.u32 %v3568, 7
      %v3570 = vsub.s32 4, %v3569
      %v3571 = vrot.slane %v1008, %v3570
      %v3572 = vmul.f32 %v3208, %v3571
      %v3573 = vmul.f32 %v3209, %v3571
      %v3574 = vmul.f32 %v3210, %v3571
      %v3575 = vmul.f32 %v3211, %v3571
      %v3576 = vmul.f32 %v3212, %v3571
      %v3577 = vmul.f32 %v3213, %v3571
      %v3578 = vmul.f32 %v3214, %v3571
      %v3579 = vmul.f32 %v3215, %v3571
      %v3580 = vmul.f32 %v3216, %v3571
      %v3581 = vmul.f32 %v3217, %v3571
      %v3582 = vmul.f32 %v3218, %v3571
      %v3583 = vmul.f32 %v3219, %v3571
      %v3584 = vmul.f32 %v3220, %v3571
      %v3585 = vmul.f32 %v3221, %v3571
      %v3586 = vmul.f32 %v3222, %v3571
      %v3587 = vmul.f32 %v3223, %v3571
      %v3588 = vmul.f32 %v3224, %v3571
      %v3589 = vmul.f32 %v3225, %v3571
      %v3590 = vmul.f32 %v3226, %v3571
      %v3591 = vmul.f32 %v3227, %v3571
      %v3592 = vmul.f32 %v3228, %v3571
      %v3593 = vmul.f32 %v3229, %v3571
      %v3594 = vmul.f32 %v3230, %v3571
      %v3595 = vmul.f32 %v3231, %v3571
      %v3596 = vmul.f32 %v3232, %v3571
      %v3597 = vmul.f32 %v3233, %v3571
      %v3598 = vmul.f32 %v3234, %v3571
      %v3599 = vmul.f32 %v3235, %v3571
      %v3600 = vmul.f32 %v3236, %v3571
      %v3601 = vmul.f32 %v3237, %v3571
      %v3602 = vmul.f32 %v3238, %v3571
      %v3603 = vmul.f32 %v3239, %v3571
      %v3604 = vmul.f32 %v3240, %v3571
      %v3605 = vmul.f32 %v3241, %v3571
      %v3606 = vmul.f32 %v3242, %v3571
      %v3607 = vmul.f32 %v3243, %v3571
      %v3608 = vmul.f32 %v3244, %v3571
      %v3609 = vmul.f32 %v3245, %v3571
      %v3610 = vmul.f32 %v3246, %v3571
      %v3611 = vmul.f32 %v3247, %v3571
      %v3612 = vmul.f32 %v3248, %v3571
      %v3613 = vmul.f32 %v3249, %v3571
      %v3614 = vmul.f32 %v3250, %v3571
      %v3615 = vmul.f32 %v3251, %v3571
      %v3616 = vmul.f32 %v3252, %v3571
      %v3617 = vmul.f32 %v3253, %v3571
      %v3618 = vmul.f32 %v3254, %v3571
      %v3619 = vmul.f32 %v3255, %v3571
      %v3668 = vrot.slane %v3572, 2
      %v3669 = vrot.slane %v3573, 2
      %v3670 = vsel %vm1475, %v3668, %v3669
      %v3671 = vrot.slane %v3574, 2
      %v3672 = vsel %vm1475, %v3669, %v3671
      %v3673 = vrot.slane %v3575, 2
      %v3674 = vrot.slane %v3576, 2
      %v3675 = vsel %vm1475, %v3673, %v3674
      %v3676 = vrot.slane %v3577, 2
      %v3677 = vsel %vm1475, %v3674, %v3676
      %v3678 = vrot.slane %v3578, 2
      %v3679 = vrot.slane %v3579, 2
      %v3680 = vsel %vm1475, %v3678, %v3679
      %v3681 = vrot.slane %v3580, 2
      %v3682 = vsel %vm1475, %v3679, %v3681
      %v3683 = vrot.slane %v3581, 2
      %v3684 = vrot.slane %v3582, 2
      %v3685 = vsel %vm1475, %v3683, %v3684
      %v3686 = vrot.slane %v3583, 2
      %v3687 = vsel %vm1475, %v3684, %v3686
      %v3688 = vrot.slane %v3584, 2
      %v3689 = vrot.slane %v3585, 2
      %v3690 = vsel %vm1475, %v3688, %v3689
      %v3691 = vrot.slane %v3586, 2
      %v3692 = vsel %vm1475, %v3689, %v3691
      %v3693 = vrot.slane %v3587, 2
      %v3694 = vrot.slane %v3588, 2
      %v3695 = vsel %vm1475, %v3693, %v3694
      %v3696 = vrot.slane %v3589, 2
      %v3697 = vsel %vm1475, %v3694, %v3696
      %v3698 = vrot.slane %v3590, 2
      %v3699 = vrot.slane %v3591, 2
      %v3700 = vsel %vm1475, %v3698, %v3699
      %v3701 = vrot.slane %v3592, 2
      %v3702 = vsel %vm1475, %v3699, %v3701
      %v3703 = vrot.slane %v3593, 2
      %v3704 = vrot.slane %v3594, 2
      %v3705 = vsel %vm1475, %v3703, %v3704
      %v3706 = vrot.slane %v3595, 2
      %v3707 = vsel %vm1475, %v3704, %v3706
      %v3708 = vrot.slane %v3596, 2
      %v3709 = vrot.slane %v3597, 2
      %v3710 = vsel %vm1475, %v3708, %v3709
      %v3711 = vrot.slane %v3598, 2
      %v3712 = vsel %vm1475, %v3709, %v3711
      %v3713 = vrot.slane %v3599, 2
      %v3714 = vrot.slane %v3600, 2
      %v3715 = vsel %vm1475, %v3713, %v3714
      %v3716 = vrot.slane %v3601, 2
      %v3717 = vsel %vm1475, %v3714, %v3716
      %v3718 = vrot.slane %v3602, 2
      %v3719 = vrot.slane %v3603, 2
      %v3720 = vsel %vm1475, %v3718, %v3719
      %v3721 = vrot.slane %v3604, 2
      %v3722 = vsel %vm1475, %v3719, %v3721
      %v3723 = vrot.slane %v3605, 2
      %v3724 = vrot.slane %v3606, 2
      %v3725 = vsel %vm1475, %v3723, %v3724
      %v3726 = vrot.slane %v3607, 2
      %v3727 = vsel %vm1475, %v3724, %v3726
      %v3728 = vrot.slane %v3608, 2
      %v3729 = vrot.slane %v3609, 2
      %v3730 = vsel %vm1475, %v3728, %v3729
      %v3731 = vrot.slane %v3610, 2
      %v3732 = vsel %vm1475, %v3729, %v3731
      %v3733 = vrot.slane %v3611, 2
      %v3734 = vrot.slane %v3612, 2
      %v3735 = vsel %vm1475, %v3733, %v3734
      %v3736 = vrot.slane %v3613, 2
      %v3737 = vsel %vm1475, %v3734, %v3736
      %v3738 = vrot.slane %v3614, 2
      %v3739 = vrot.slane %v3615, 2
      %v3740 = vsel %vm1475, %v3738, %v3739
      %v3741 = vrot.slane %v3616, 2
      %v3742 = vsel %vm1475, %v3739, %v3741
      %v3743 = vrot.slane %v3617, 2
      %v3744 = vrot.slane %v3618, 2
      %v3745 = vsel %vm1475, %v3743, %v3744
      %v3746 = vrot.slane %v3619, 2
      %v3747 = vsel %vm1475, %v3744, %v3746
      %v3780 = vadd.f32 %v3536, %v3670
      %v3781 = vadd.f32 %v3537, %v3672
      %v3782 = vadd.f32 %v3538, %v3675
      %v3783 = vadd.f32 %v3539, %v3677
      %v3784 = vadd.f32 %v3540, %v3680
      %v3785 = vadd.f32 %v3541, %v3682
      %v3786 = vadd.f32 %v3542, %v3685
      %v3787 = vadd.f32 %v3543, %v3687
      %v3788 = vadd.f32 %v3544, %v3690
      %v3789 = vadd.f32 %v3545, %v3692
      %v3790 = vadd.f32 %v3546, %v3695
      %v3791 = vadd.f32 %v3547, %v3697
      %v3792 = vadd.f32 %v3548, %v3700
      %v3793 = vadd.f32 %v3549, %v3702
      %v3794 = vadd.f32 %v3550, %v3705
      %v3795 = vadd.f32 %v3551, %v3707
      %v3796 = vadd.f32 %v3552, %v3710
      %v3797 = vadd.f32 %v3553, %v3712
      %v3798 = vadd.f32 %v3554, %v3715
      %v3799 = vadd.f32 %v3555, %v3717
      %v3800 = vadd.f32 %v3556, %v3720
      %v3801 = vadd.f32 %v3557, %v3722
      %v3802 = vadd.f32 %v3558, %v3725
      %v3803 = vadd.f32 %v3559, %v3727
      %v3804 = vadd.f32 %v3560, %v3730
      %v3805 = vadd.f32 %v3561, %v3732
      %v3806 = vadd.f32 %v3562, %v3735
      %v3807 = vadd.f32 %v3563, %v3737
      %v3808 = vadd.f32 %v3564, %v3740
      %v3809 = vadd.f32 %v3565, %v3742
      %v3810 = vadd.f32 %v3566, %v3745
      %v3811 = vadd.f32 %v3567, %v3747
      %v3812 = vlaneseq
      %v3813 = vshrl.u32 %v3812, 7
      %v3814 = vsub.s32 5, %v3813
      %v3815 = vrot.slane %v1008, %v3814
      %v3816 = vmul.f32 %v3208, %v3815
      %v3817 = vmul.f32 %v3209, %v3815
      %v3818 = vmul.f32 %v3210, %v3815
      %v3819 = vmul.f32 %v3211, %v3815
      %v3820 = vmul.f32 %v3212, %v3815
      %v3821 = vmul.f32 %v3213, %v3815
      %v3822 = vmul.f32 %v3214, %v3815
      %v3823 = vmul.f32 %v3215, %v3815
      %v3824 = vmul.f32 %v3216, %v3815
      %v3825 = vmul.f32 %v3217, %v3815
      %v3826 = vmul.f32 %v3218, %v3815
      %v3827 = vmul.f32 %v3219, %v3815
      %v3828 = vmul.f32 %v3220, %v3815
      %v3829 = vmul.f32 %v3221, %v3815
      %v3830 = vmul.f32 %v3222, %v3815
      %v3831 = vmul.f32 %v3223, %v3815
      %v3832 = vmul.f32 %v3224, %v3815
      %v3833 = vmul.f32 %v3225, %v3815
      %v3834 = vmul.f32 %v3226, %v3815
      %v3835 = vmul.f32 %v3227, %v3815
      %v3836 = vmul.f32 %v3228, %v3815
      %v3837 = vmul.f32 %v3229, %v3815
      %v3838 = vmul.f32 %v3230, %v3815
      %v3839 = vmul.f32 %v3231, %v3815
      %v3840 = vmul.f32 %v3232, %v3815
      %v3841 = vmul.f32 %v3233, %v3815
      %v3842 = vmul.f32 %v3234, %v3815
      %v3843 = vmul.f32 %v3235, %v3815
      %v3844 = vmul.f32 %v3236, %v3815
      %v3845 = vmul.f32 %v3237, %v3815
      %v3846 = vmul.f32 %v3238, %v3815
      %v3847 = vmul.f32 %v3239, %v3815
      %v3848 = vmul.f32 %v3240, %v3815
      %v3849 = vmul.f32 %v3241, %v3815
      %v3850 = vmul.f32 %v3242, %v3815
      %v3851 = vmul.f32 %v3243, %v3815
      %v3852 = vmul.f32 %v3244, %v3815
      %v3853 = vmul.f32 %v3245, %v3815
      %v3854 = vmul.f32 %v3246, %v3815
      %v3855 = vmul.f32 %v3247, %v3815
      %v3856 = vmul.f32 %v3248, %v3815
      %v3857 = vmul.f32 %v3249, %v3815
      %v3858 = vmul.f32 %v3250, %v3815
      %v3859 = vmul.f32 %v3251, %v3815
      %v3860 = vmul.f32 %v3252, %v3815
      %v3861 = vmul.f32 %v3253, %v3815
      %v3862 = vmul.f32 %v3254, %v3815
      %v3863 = vmul.f32 %v3255, %v3815
      %v3912 = vrot.slane %v3816, 3
      %v3913 = vrot.slane %v3817, 3
      %v3914 = vsel %vm1720, %v3912, %v3913
      %v3915 = vrot.slane %v3818, 3
      %v3916 = vsel %vm1720, %v3913, %v3915
      %v3917 = vrot.slane %v3819, 3
      %v3918 = vrot.slane %v3820, 3
      %v3919 = vsel %vm1720, %v3917, %v3918
      %v3920 = vrot.slane %v3821, 3
      %v3921 = vsel %vm1720, %v3918, %v3920
      %v3922 = vrot.slane %v3822, 3
      %v3923 = vrot.slane %v3823, 3
      %v3924 = vsel %vm1720, %v3922, %v3923
      %v3925 = vrot.slane %v3824, 3
      %v3926 = vsel %vm1720, %v3923, %v3925
      %v3927 = vrot.slane %v3825, 3
      %v3928 = vrot.slane %v3826, 3
      %v3929 = vsel %vm1720, %v3927, %v3928
      %v3930 = vrot.slane %v3827, 3
      %v3931 = vsel %vm1720, %v3928, %v3930
      %v3932 = vrot.slane %v3828, 3
      %v3933 = vrot.slane %v3829, 3
      %v3934 = vsel %vm1720, %v3932, %v3933
      %v3935 = vrot.slane %v3830, 3
      %v3936 = vsel %vm1720, %v3933, %v3935
      %v3937 = vrot.slane %v3831, 3
      %v3938 = vrot.slane %v3832, 3
      %v3939 = vsel %vm1720, %v3937, %v3938
      %v3940 = vrot.slane %v3833, 3
      %v3941 = vsel %vm1720, %v3938, %v3940
      %v3942 = vrot.slane %v3834, 3
      %v3943 = vrot.slane %v3835, 3
      %v3944 = vsel %vm1720, %v3942, %v3943
      %v3945 = vrot.slane %v3836, 3
      %v3946 = vsel %vm1720, %v3943, %v3945
      %v3947 = vrot.slane %v3837, 3
      %v3948 = vrot.slane %v3838, 3
      %v3949 = vsel %vm1720, %v3947, %v3948
      %v3950 = vrot.slane %v3839, 3
      %v3951 = vsel %vm1720, %v3948, %v3950
      %v3952 = vrot.slane %v3840, 3
      %v3953 = vrot.slane %v3841, 3
      %v3954 = vsel %vm1720, %v3952, %v3953
      %v3955 = vrot.slane %v3842, 3
      %v3956 = vsel %vm1720, %v3953, %v3955
      %v3957 = vrot.slane %v3843, 3
      %v3958 = vrot.slane %v3844, 3
      %v3959 = vsel %vm1720, %v3957, %v3958
      %v3960 = vrot.slane %v3845, 3
      %v3961 = vsel %vm1720, %v3958, %v3960
      %v3962 = vrot.slane %v3846, 3
      %v3963 = vrot.slane %v3847, 3
      %v3964 = vsel %vm1720, %v3962, %v3963
      %v3965 = vrot.slane %v3848, 3
      %v3966 = vsel %vm1720, %v3963, %v3965
      %v3967 = vrot.slane %v3849, 3
      %v3968 = vrot.slane %v3850, 3
      %v3969 = vsel %vm1720, %v3967, %v3968
      %v3970 = vrot.slane %v3851, 3
      %v3971 = vsel %vm1720, %v3968, %v3970
      %v3972 = vrot.slane %v3852, 3
      %v3973 = vrot.slane %v3853, 3
      %v3974 = vsel %vm1720, %v3972, %v3973
      %v3975 = vrot.slane %v3854, 3
      %v3976 = vsel %vm1720, %v3973, %v3975
      %v3977 = vrot.slane %v3855, 3
      %v3978 = vrot.slane %v3856, 3
      %v3979 = vsel %vm1720, %v3977, %v3978
      %v3980 = vrot.slane %v3857, 3
      %v3981 = vsel %vm1720, %v3978, %v3980
      %v3982 = vrot.slane %v3858, 3
      %v3983 = vrot.slane %v3859, 3
      %v3984 = vsel %vm1720, %v3982, %v3983
      %v3985 = vrot.slane %v3860, 3
      %v3986 = vsel %vm1720, %v3983, %v3985
      %v3987 = vrot.slane %v3861, 3
      %v3988 = vrot.slane %v3862, 3
      %v3989 = vsel %vm1720, %v3987, %v3988
      %v3990 = vrot.slane %v3863, 3
      %v3991 = vsel %vm1720, %v3988, %v3990
      %v4024 = vadd.f32 %v3780, %v3914
      %v4025 = vadd.f32 %v3781, %v3916
      %v4026 = vadd.f32 %v3782, %v3919
      %v4027 = vadd.f32 %v3783, %v3921
      %v4028 = vadd.f32 %v3784, %v3924
      %v4029 = vadd.f32 %v3785, %v3926
      %v4030 = vadd.f32 %v3786, %v3929
      %v4031 = vadd.f32 %v3787, %v3931
      %v4032 = vadd.f32 %v3788, %v3934
      %v4033 = vadd.f32 %v3789, %v3936
      %v4034 = vadd.f32 %v3790, %v3939
      %v4035 = vadd.f32 %v3791, %v3941
      %v4036 = vadd.f32 %v3792, %v3944
      %v4037 = vadd.f32 %v3793, %v3946
      %v4038 = vadd.f32 %v3794, %v3949
      %v4039 = vadd.f32 %v3795, %v3951
      %v4040 = vadd.f32 %v3796, %v3954
      %v4041 = vadd.f32 %v3797, %v3956
      %v4042 = vadd.f32 %v3798, %v3959
      %v4043 = vadd.f32 %v3799, %v3961
      %v4044 = vadd.f32 %v3800, %v3964
      %v4045 = vadd.f32 %v3801, %v3966
      %v4046 = vadd.f32 %v3802, %v3969
      %v4047 = vadd.f32 %v3803, %v3971
      %v4048 = vadd.f32 %v3804, %v3974
      %v4049 = vadd.f32 %v3805, %v3976
      %v4050 = vadd.f32 %v3806, %v3979
      %v4051 = vadd.f32 %v3807, %v3981
      %v4052 = vadd.f32 %v3808, %v3984
      %v4053 = vadd.f32 %v3809, %v3986
      %v4054 = vadd.f32 %v3810, %v3989
      %v4055 = vadd.f32 %v3811, %v3991
      %v4056 = vlaneseq
      %v4057 = vshrl.u32 %v4056, 7
      %v4058 = vsub.s32 6, %v4057
      %v4059 = vrot.slane %v1008, %v4058
      %v4060 = vmul.f32 %v3208, %v4059
      %v4061 = vmul.f32 %v3209, %v4059
      %v4062 = vmul.f32 %v3210, %v4059
      %v4063 = vmul.f32 %v3211, %v4059
      %v4064 = vmul.f32 %v3212, %v4059
      %v4065 = vmul.f32 %v3213, %v4059
      %v4066 = vmul.f32 %v3214, %v4059
      %v4067 = vmul.f32 %v3215, %v4059
      %v4068 = vmul.f32 %v3216, %v4059
      %v4069 = vmul.f32 %v3217, %v4059
      %v4070 = vmul.f32 %v3218, %v4059
      %v4071 = vmul.f32 %v3219, %v4059
      %v4072 = vmul.f32 %v3220, %v4059
      %v4073 = vmul.f32 %v3221, %v4059
      %v4074 = vmul.f32 %v3222, %v4059
      %v4075 = vmul.f32 %v3223, %v4059
      %v4076 = vmul.f32 %v3224, %v4059
      %v4077 = vmul.f32 %v3225, %v4059
      %v4078 = vmul.f32 %v3226, %v4059
      %v4079 = vmul.f32 %v3227, %v4059
      %v4080 = vmul.f32 %v3228, %v4059
      %v4081 = vmul.f32 %v3229, %v4059
      %v4082 = vmul.f32 %v3230, %v4059
      %v4083 = vmul.f32 %v3231, %v4059
      %v4084 = vmul.f32 %v3232, %v4059
      %v4085 = vmul.f32 %v3233, %v4059
      %v4086 = vmul.f32 %v3234, %v4059
      %v4087 = vmul.f32 %v3235, %v4059
      %v4088 = vmul.f32 %v3236, %v4059
      %v4089 = vmul.f32 %v3237, %v4059
      %v4090 = vmul.f32 %v3238, %v4059
      %v4091 = vmul.f32 %v3239, %v4059
      %v4092 = vmul.f32 %v3240, %v4059
      %v4093 = vmul.f32 %v3241, %v4059
      %v4094 = vmul.f32 %v3242, %v4059
      %v4095 = vmul.f32 %v3243, %v4059
      %v4096 = vmul.f32 %v3244, %v4059
      %v4097 = vmul.f32 %v3245, %v4059
      %v4098 = vmul.f32 %v3246, %v4059
      %v4099 = vmul.f32 %v3247, %v4059
      %v4100 = vmul.f32 %v3248, %v4059
      %v4101 = vmul.f32 %v3249, %v4059
      %v4102 = vmul.f32 %v3250, %v4059
      %v4103 = vmul.f32 %v3251, %v4059
      %v4104 = vmul.f32 %v3252, %v4059
      %v4105 = vmul.f32 %v3253, %v4059
      %v4106 = vmul.f32 %v3254, %v4059
      %v4107 = vmul.f32 %v3255, %v4059
      %v4156 = vrot.slane %v4060, 4
      %v4157 = vrot.slane %v4061, 4
      %v4158 = vsel %vm1965, %v4156, %v4157
      %v4159 = vrot.slane %v4062, 4
      %v4160 = vsel %vm1965, %v4157, %v4159
      %v4161 = vrot.slane %v4063, 4
      %v4162 = vrot.slane %v4064, 4
      %v4163 = vsel %vm1965, %v4161, %v4162
      %v4164 = vrot.slane %v4065, 4
      %v4165 = vsel %vm1965, %v4162, %v4164
      %v4166 = vrot.slane %v4066, 4
      %v4167 = vrot.slane %v4067, 4
      %v4168 = vsel %vm1965, %v4166, %v4167
      %v4169 = vrot.slane %v4068, 4
      %v4170 = vsel %vm1965, %v4167, %v4169
      %v4171 = vrot.slane %v4069, 4
      %v4172 = vrot.slane %v4070, 4
      %v4173 = vsel %vm1965, %v4171, %v4172
      %v4174 = vrot.slane %v4071, 4
      %v4175 = vsel %vm1965, %v4172, %v4174
      %v4176 = vrot.slane %v4072, 4
      %v4177 = vrot.slane %v4073, 4
      %v4178 = vsel %vm1965, %v4176, %v4177
      %v4179 = vrot.slane %v4074, 4
      %v4180 = vsel %vm1965, %v4177, %v4179
      %v4181 = vrot.slane %v4075, 4
      %v4182 = vrot.slane %v4076, 4
      %v4183 = vsel %vm1965, %v4181, %v4182
      %v4184 = vrot.slane %v4077, 4
      %v4185 = vsel %vm1965, %v4182, %v4184
      %v4186 = vrot.slane %v4078, 4
      %v4187 = vrot.slane %v4079, 4
      %v4188 = vsel %vm1965, %v4186, %v4187
      %v4189 = vrot.slane %v4080, 4
      %v4190 = vsel %vm1965, %v4187, %v4189
      %v4191 = vrot.slane %v4081, 4
      %v4192 = vrot.slane %v4082, 4
      %v4193 = vsel %vm1965, %v4191, %v4192
      %v4194 = vrot.slane %v4083, 4
      %v4195 = vsel %vm1965, %v4192, %v4194
      %v4196 = vrot.slane %v4084, 4
      %v4197 = vrot.slane %v4085, 4
      %v4198 = vsel %vm1965, %v4196, %v4197
      %v4199 = vrot.slane %v4086, 4
      %v4200 = vsel %vm1965, %v4197, %v4199
      %v4201 = vrot.slane %v4087, 4
      %v4202 = vrot.slane %v4088, 4
      %v4203 = vsel %vm1965, %v4201, %v4202
      %v4204 = vrot.slane %v4089, 4
      %v4205 = vsel %vm1965, %v4202, %v4204
      %v4206 = vrot.slane %v4090, 4
      %v4207 = vrot.slane %v4091, 4
      %v4208 = vsel %vm1965, %v4206, %v4207
      %v4209 = vrot.slane %v4092, 4
      %v4210 = vsel %vm1965, %v4207, %v4209
      %v4211 = vrot.slane %v4093, 4
      %v4212 = vrot.slane %v4094, 4
      %v4213 = vsel %vm1965, %v4211, %v4212
      %v4214 = vrot.slane %v4095, 4
      %v4215 = vsel %vm1965, %v4212, %v4214
      %v4216 = vrot.slane %v4096, 4
      %v4217 = vrot.slane %v4097, 4
      %v4218 = vsel %vm1965, %v4216, %v4217
      %v4219 = vrot.slane %v4098, 4
      %v4220 = vsel %vm1965, %v4217, %v4219
      %v4221 = vrot.slane %v4099, 4
      %v4222 = vrot.slane %v4100, 4
      %v4223 = vsel %vm1965, %v4221, %v4222
      %v4224 = vrot.slane %v4101, 4
      %v4225 = vsel %vm1965, %v4222, %v4224
      %v4226 = vrot.slane %v4102, 4
      %v4227 = vrot.slane %v4103, 4
      %v4228 = vsel %vm1965, %v4226, %v4227
      %v4229 = vrot.slane %v4104, 4
      %v4230 = vsel %vm1965, %v4227, %v4229
      %v4231 = vrot.slane %v4105, 4
      %v4232 = vrot.slane %v4106, 4
      %v4233 = vsel %vm1965, %v4231, %v4232
      %v4234 = vrot.slane %v4107, 4
      %v4235 = vsel %vm1965, %v4232, %v4234
      %v4268 = vadd.f32 %v4024, %v4158
      %v4269 = vadd.f32 %v4025, %v4160
      %v4270 = vadd.f32 %v4026, %v4163
      %v4271 = vadd.f32 %v4027, %v4165
      %v4272 = vadd.f32 %v4028, %v4168
      %v4273 = vadd.f32 %v4029, %v4170
      %v4274 = vadd.f32 %v4030, %v4173
      %v4275 = vadd.f32 %v4031, %v4175
      %v4276 = vadd.f32 %v4032, %v4178
      %v4277 = vadd.f32 %v4033, %v4180
      %v4278 = vadd.f32 %v4034, %v4183
      %v4279 = vadd.f32 %v4035, %v4185
      %v4280 = vadd.f32 %v4036, %v4188
      %v4281 = vadd.f32 %v4037, %v4190
      %v4282 = vadd.f32 %v4038, %v4193
      %v4283 = vadd.f32 %v4039, %v4195
      %v4284 = vadd.f32 %v4040, %v4198
      %v4285 = vadd.f32 %v4041, %v4200
      %v4286 = vadd.f32 %v4042, %v4203
      %v4287 = vadd.f32 %v4043, %v4205
      %v4288 = vadd.f32 %v4044, %v4208
      %v4289 = vadd.f32 %v4045, %v4210
      %v4290 = vadd.f32 %v4046, %v4213
      %v4291 = vadd.f32 %v4047, %v4215
      %v4292 = vadd.f32 %v4048, %v4218
      %v4293 = vadd.f32 %v4049, %v4220
      %v4294 = vadd.f32 %v4050, %v4223
      %v4295 = vadd.f32 %v4051, %v4225
      %v4296 = vadd.f32 %v4052, %v4228
      %v4297 = vadd.f32 %v4053, %v4230
      %v4298 = vadd.f32 %v4054, %v4233
      %v4299 = vadd.f32 %v4055, %v4235
      %s4300 = sadd.s32 0, 3
      %s4301 = smul.u32 %s4300, 24
      %s4302 = scalar_lea.vmem [#allocation2], %s4301
      %v4303 = vld [vmem:[%s4302] sm:$0xff]
      %v4304 = vld [vmem:[%s4302 + $0x8] sm:$0xff]
      %v4305 = vld [vmem:[%s4302 + $0x10] sm:$0xff]
      %v4306 = vld [vmem:[%s4302 + $0x18] sm:$0xff]
      %v4307 = vld [vmem:[%s4302 + $0x20] sm:$0xff]
      %v4308 = vld [vmem:[%s4302 + $0x28] sm:$0xff]
      %v4309 = vld [vmem:[%s4302 + $0x30] sm:$0xff]
      %v4310 = vld [vmem:[%s4302 + $0x38] sm:$0xff]
      %v4311 = vld [vmem:[%s4302 + $0x40] sm:$0xff]
      %v4312 = vld [vmem:[%s4302 + $0x48] sm:$0xff]
      %v4313 = vld [vmem:[%s4302 + $0x50] sm:$0xff]
      %v4314 = vld [vmem:[%s4302 + $0x58] sm:$0xff]
      %v4315 = vld [vmem:[%s4302 + $0x60] sm:$0xff]
      %v4316 = vld [vmem:[%s4302 + $0x68] sm:$0xff]
      %v4317 = vld [vmem:[%s4302 + $0x70] sm:$0xff]
      %v4318 = vld [vmem:[%s4302 + $0x78] sm:$0xff]
      %v4319 = vld [vmem:[%s4302 + $0x80] sm:$0xff]
      %v4320 = vld [vmem:[%s4302 + $0x88] sm:$0xff]
      %v4321 = vld [vmem:[%s4302 + $0x90] sm:$0xff]
      %v4322 = vld [vmem:[%s4302 + $0x98] sm:$0xff]
      %v4323 = vld [vmem:[%s4302 + $0xa0] sm:$0xff]
      %v4324 = vld [vmem:[%s4302 + $0xa8] sm:$0xff]
      %v4325 = vld [vmem:[%s4302 + $0xb0] sm:$0xff]
      %v4326 = vld [vmem:[%s4302 + $0xb8] sm:$0xff]
      %v4327 = vld [vmem:[%s4302 + $0xc0] sm:$0xff]
      %v4328 = vld [vmem:[%s4302 + $0xc8] sm:$0xff]
      %v4329 = vld [vmem:[%s4302 + $0xd0] sm:$0xff]
      %v4330 = vld [vmem:[%s4302 + $0xd8] sm:$0xff]
      %v4331 = vld [vmem:[%s4302 + $0xe0] sm:$0xff]
      %v4332 = vld [vmem:[%s4302 + $0xe8] sm:$0xff]
      %v4333 = vld [vmem:[%s4302 + $0xf0] sm:$0xff]
      %v4334 = vld [vmem:[%s4302 + $0xf8] sm:$0xff]
      %v4335 = vld [vmem:[%s4302 + $0x100] sm:$0xff]
      %v4336 = vld [vmem:[%s4302 + $0x108] sm:$0xff]
      %v4337 = vld [vmem:[%s4302 + $0x110] sm:$0xff]
      %v4338 = vld [vmem:[%s4302 + $0x118] sm:$0xff]
      %v4339 = vld [vmem:[%s4302 + $0x120] sm:$0xff]
      %v4340 = vld [vmem:[%s4302 + $0x128] sm:$0xff]
      %v4341 = vld [vmem:[%s4302 + $0x130] sm:$0xff]
      %v4342 = vld [vmem:[%s4302 + $0x138] sm:$0xff]
      %v4343 = vld [vmem:[%s4302 + $0x140] sm:$0xff]
      %v4344 = vld [vmem:[%s4302 + $0x148] sm:$0xff]
      %v4345 = vld [vmem:[%s4302 + $0x150] sm:$0xff]
      %v4346 = vld [vmem:[%s4302 + $0x158] sm:$0xff]
      %v4347 = vld [vmem:[%s4302 + $0x160] sm:$0xff]
      %v4348 = vld [vmem:[%s4302 + $0x168] sm:$0xff]
      %v4349 = vld [vmem:[%s4302 + $0x170] sm:$0xff]
      %v4350 = vld [vmem:[%s4302 + $0x178] sm:$0xff]
      %v4351 = vlaneseq
      %v4352 = vshrl.u32 %v4351, 7
      %v4353 = vsub.s32 7, %v4352
      %v4354 = vrot.slane %v1008, %v4353
      %v4355 = vmul.f32 %v4303, %v4354
      %v4356 = vmul.f32 %v4304, %v4354
      %v4357 = vmul.f32 %v4306, %v4354
      %v4358 = vmul.f32 %v4307, %v4354
      %v4359 = vmul.f32 %v4309, %v4354
      %v4360 = vmul.f32 %v4310, %v4354
      %v4361 = vmul.f32 %v4312, %v4354
      %v4362 = vmul.f32 %v4313, %v4354
      %v4363 = vmul.f32 %v4315, %v4354
      %v4364 = vmul.f32 %v4316, %v4354
      %v4365 = vmul.f32 %v4318, %v4354
      %v4366 = vmul.f32 %v4319, %v4354
      %v4367 = vmul.f32 %v4321, %v4354
      %v4368 = vmul.f32 %v4322, %v4354
      %v4369 = vmul.f32 %v4324, %v4354
      %v4370 = vmul.f32 %v4325, %v4354
      %v4371 = vmul.f32 %v4327, %v4354
      %v4372 = vmul.f32 %v4328, %v4354
      %v4373 = vmul.f32 %v4330, %v4354
      %v4374 = vmul.f32 %v4331, %v4354
      %v4375 = vmul.f32 %v4333, %v4354
      %v4376 = vmul.f32 %v4334, %v4354
      %v4377 = vmul.f32 %v4336, %v4354
      %v4378 = vmul.f32 %v4337, %v4354
      %v4379 = vmul.f32 %v4339, %v4354
      %v4380 = vmul.f32 %v4340, %v4354
      %v4381 = vmul.f32 %v4342, %v4354
      %v4382 = vmul.f32 %v4343, %v4354
      %v4383 = vmul.f32 %v4345, %v4354
      %v4384 = vmul.f32 %v4346, %v4354
      %v4385 = vmul.f32 %v4348, %v4354
      %v4386 = vmul.f32 %v4349, %v4354
      %v4387 = vadd.f32 %v4268, %v4355
      %v4388 = vadd.f32 %v4269, %v4356
      %v4389 = vadd.f32 %v4270, %v4357
      %v4390 = vadd.f32 %v4271, %v4358
      %v4391 = vadd.f32 %v4272, %v4359
      %v4392 = vadd.f32 %v4273, %v4360
      %v4393 = vadd.f32 %v4274, %v4361
      %v4394 = vadd.f32 %v4275, %v4362
      %v4395 = vadd.f32 %v4276, %v4363
      %v4396 = vadd.f32 %v4277, %v4364
      %v4397 = vadd.f32 %v4278, %v4365
      %v4398 = vadd.f32 %v4279, %v4366
      %v4399 = vadd.f32 %v4280, %v4367
      %v4400 = vadd.f32 %v4281, %v4368
      %v4401 = vadd.f32 %v4282, %v4369
      %v4402 = vadd.f32 %v4283, %v4370
      %v4403 = vadd.f32 %v4284, %v4371
      %v4404 = vadd.f32 %v4285, %v4372
      %v4405 = vadd.f32 %v4286, %v4373
      %v4406 = vadd.f32 %v4287, %v4374
      %v4407 = vadd.f32 %v4288, %v4375
      %v4408 = vadd.f32 %v4289, %v4376
      %v4409 = vadd.f32 %v4290, %v4377
      %v4410 = vadd.f32 %v4291, %v4378
      %v4411 = vadd.f32 %v4292, %v4379
      %v4412 = vadd.f32 %v4293, %v4380
      %v4413 = vadd.f32 %v4294, %v4381
      %v4414 = vadd.f32 %v4295, %v4382
      %v4415 = vadd.f32 %v4296, %v4383
      %v4416 = vadd.f32 %v4297, %v4384
      %v4417 = vadd.f32 %v4298, %v4385
      %v4418 = vadd.f32 %v4299, %v4386
      %v4419 = vlaneseq
      %v4420 = vshrl.u32 %v4419, 7
      %v4421 = vsub.s32 0, %v4420
      %v4422 = vrot.slane %v1009, %v4421
      %v4423 = vmul.f32 %v4303, %v4422
      %v4424 = vmul.f32 %v4304, %v4422
      %v4425 = vmul.f32 %v4305, %v4422
      %v4426 = vmul.f32 %v4306, %v4422
      %v4427 = vmul.f32 %v4307, %v4422
      %v4428 = vmul.f32 %v4308, %v4422
      %v4429 = vmul.f32 %v4309, %v4422
      %v4430 = vmul.f32 %v4310, %v4422
      %v4431 = vmul.f32 %v4311, %v4422
      %v4432 = vmul.f32 %v4312, %v4422
      %v4433 = vmul.f32 %v4313, %v4422
      %v4434 = vmul.f32 %v4314, %v4422
      %v4435 = vmul.f32 %v4315, %v4422
      %v4436 = vmul.f32 %v4316, %v4422
      %v4437 = vmul.f32 %v4317, %v4422
      %v4438 = vmul.f32 %v4318, %v4422
      %v4439 = vmul.f32 %v4319, %v4422
      %v4440 = vmul.f32 %v4320, %v4422
      %v4441 = vmul.f32 %v4321, %v4422
      %v4442 = vmul.f32 %v4322, %v4422
      %v4443 = vmul.f32 %v4323, %v4422
      %v4444 = vmul.f32 %v4324, %v4422
      %v4445 = vmul.f32 %v4325, %v4422
      %v4446 = vmul.f32 %v4326, %v4422
      %v4447 = vmul.f32 %v4327, %v4422
      %v4448 = vmul.f32 %v4328, %v4422
      %v4449 = vmul.f32 %v4329, %v4422
      %v4450 = vmul.f32 %v4330, %v4422
      %v4451 = vmul.f32 %v4331, %v4422
      %v4452 = vmul.f32 %v4332, %v4422
      %v4453 = vmul.f32 %v4333, %v4422
      %v4454 = vmul.f32 %v4334, %v4422
      %v4455 = vmul.f32 %v4335, %v4422
      %v4456 = vmul.f32 %v4336, %v4422
      %v4457 = vmul.f32 %v4337, %v4422
      %v4458 = vmul.f32 %v4338, %v4422
      %v4459 = vmul.f32 %v4339, %v4422
      %v4460 = vmul.f32 %v4340, %v4422
      %v4461 = vmul.f32 %v4341, %v4422
      %v4462 = vmul.f32 %v4342, %v4422
      %v4463 = vmul.f32 %v4343, %v4422
      %v4464 = vmul.f32 %v4344, %v4422
      %v4465 = vmul.f32 %v4345, %v4422
      %v4466 = vmul.f32 %v4346, %v4422
      %v4467 = vmul.f32 %v4347, %v4422
      %v4468 = vmul.f32 %v4348, %v4422
      %v4469 = vmul.f32 %v4349, %v4422
      %v4470 = vmul.f32 %v4350, %v4422
      %v4519 = vrot.slane %v4423, 1
      %v4520 = vrot.slane %v4424, 1
      %v4521 = vsel %vm1230, %v4519, %v4520
      %v4522 = vrot.slane %v4425, 1
      %v4523 = vsel %vm1230, %v4520, %v4522
      %v4524 = vrot.slane %v4426, 1
      %v4525 = vrot.slane %v4427, 1
      %v4526 = vsel %vm1230, %v4524, %v4525
      %v4527 = vrot.slane %v4428, 1
      %v4528 = vsel %vm1230, %v4525, %v4527
      %v4529 = vrot.slane %v4429, 1
      %v4530 = vrot.slane %v4430, 1
      %v4531 = vsel %vm1230, %v4529, %v4530
      %v4532 = vrot.slane %v4431, 1
      %v4533 = vsel %vm1230, %v4530, %v4532
      %v4534 = vrot.slane %v4432, 1
      %v4535 = vrot.slane %v4433, 1
      %v4536 = vsel %vm1230, %v4534, %v4535
      %v4537 = vrot.slane %v4434, 1
      %v4538 = vsel %vm1230, %v4535, %v4537
      %v4539 = vrot.slane %v4435, 1
      %v4540 = vrot.slane %v4436, 1
      %v4541 = vsel %vm1230, %v4539, %v4540
      %v4542 = vrot.slane %v4437, 1
      %v4543 = vsel %vm1230, %v4540, %v4542
      %v4544 = vrot.slane %v4438, 1
      %v4545 = vrot.slane %v4439, 1
      %v4546 = vsel %vm1230, %v4544, %v4545
      %v4547 = vrot.slane %v4440, 1
      %v4548 = vsel %vm1230, %v4545, %v4547
      %v4549 = vrot.slane %v4441, 1
      %v4550 = vrot.slane %v4442, 1
      %v4551 = vsel %vm1230, %v4549, %v4550
      %v4552 = vrot.slane %v4443, 1
      %v4553 = vsel %vm1230, %v4550, %v4552
      %v4554 = vrot.slane %v4444, 1
      %v4555 = vrot.slane %v4445, 1
      %v4556 = vsel %vm1230, %v4554, %v4555
      %v4557 = vrot.slane %v4446, 1
      %v4558 = vsel %vm1230, %v4555, %v4557
      %v4559 = vrot.slane %v4447, 1
      %v4560 = vrot.slane %v4448, 1
      %v4561 = vsel %vm1230, %v4559, %v4560
      %v4562 = vrot.slane %v4449, 1
      %v4563 = vsel %vm1230, %v4560, %v4562
      %v4564 = vrot.slane %v4450, 1
      %v4565 = vrot.slane %v4451, 1
      %v4566 = vsel %vm1230, %v4564, %v4565
      %v4567 = vrot.slane %v4452, 1
      %v4568 = vsel %vm1230, %v4565, %v4567
      %v4569 = vrot.slane %v4453, 1
      %v4570 = vrot.slane %v4454, 1
      %v4571 = vsel %vm1230, %v4569, %v4570
      %v4572 = vrot.slane %v4455, 1
      %v4573 = vsel %vm1230, %v4570, %v4572
      %v4574 = vrot.slane %v4456, 1
      %v4575 = vrot.slane %v4457, 1
      %v4576 = vsel %vm1230, %v4574, %v4575
      %v4577 = vrot.slane %v4458, 1
      %v4578 = vsel %vm1230, %v4575, %v4577
      %v4579 = vrot.slane %v4459, 1
      %v4580 = vrot.slane %v4460, 1
      %v4581 = vsel %vm1230, %v4579, %v4580
      %v4582 = vrot.slane %v4461, 1
      %v4583 = vsel %vm1230, %v4580, %v4582
      %v4584 = vrot.slane %v4462, 1
      %v4585 = vrot.slane %v4463, 1
      %v4586 = vsel %vm1230, %v4584, %v4585
      %v4587 = vrot.slane %v4464, 1
      %v4588 = vsel %vm1230, %v4585, %v4587
      %v4589 = vrot.slane %v4465, 1
      %v4590 = vrot.slane %v4466, 1
      %v4591 = vsel %vm1230, %v4589, %v4590
      %v4592 = vrot.slane %v4467, 1
      %v4593 = vsel %vm1230, %v4590, %v4592
      %v4594 = vrot.slane %v4468, 1
      %v4595 = vrot.slane %v4469, 1
      %v4596 = vsel %vm1230, %v4594, %v4595
      %v4597 = vrot.slane %v4470, 1
      %v4598 = vsel %vm1230, %v4595, %v4597
      %v4631 = vadd.f32 %v4387, %v4521
      %v4632 = vadd.f32 %v4388, %v4523
      %v4633 = vadd.f32 %v4389, %v4526
      %v4634 = vadd.f32 %v4390, %v4528
      %v4635 = vadd.f32 %v4391, %v4531
      %v4636 = vadd.f32 %v4392, %v4533
      %v4637 = vadd.f32 %v4393, %v4536
      %v4638 = vadd.f32 %v4394, %v4538
      %v4639 = vadd.f32 %v4395, %v4541
      %v4640 = vadd.f32 %v4396, %v4543
      %v4641 = vadd.f32 %v4397, %v4546
      %v4642 = vadd.f32 %v4398, %v4548
      %v4643 = vadd.f32 %v4399, %v4551
      %v4644 = vadd.f32 %v4400, %v4553
      %v4645 = vadd.f32 %v4401, %v4556
      %v4646 = vadd.f32 %v4402, %v4558
      %v4647 = vadd.f32 %v4403, %v4561
      %v4648 = vadd.f32 %v4404, %v4563
      %v4649 = vadd.f32 %v4405, %v4566
      %v4650 = vadd.f32 %v4406, %v4568
      %v4651 = vadd.f32 %v4407, %v4571
      %v4652 = vadd.f32 %v4408, %v4573
      %v4653 = vadd.f32 %v4409, %v4576
      %v4654 = vadd.f32 %v4410, %v4578
      %v4655 = vadd.f32 %v4411, %v4581
      %v4656 = vadd.f32 %v4412, %v4583
      %v4657 = vadd.f32 %v4413, %v4586
      %v4658 = vadd.f32 %v4414, %v4588
      %v4659 = vadd.f32 %v4415, %v4591
      %v4660 = vadd.f32 %v4416, %v4593
      %v4661 = vadd.f32 %v4417, %v4596
      %v4662 = vadd.f32 %v4418, %v4598
      %v4663 = vlaneseq
      %v4664 = vshrl.u32 %v4663, 7
      %v4665 = vsub.s32 1, %v4664
      %v4666 = vrot.slane %v1009, %v4665
      %v4667 = vmul.f32 %v4303, %v4666
      %v4668 = vmul.f32 %v4304, %v4666
      %v4669 = vmul.f32 %v4305, %v4666
      %v4670 = vmul.f32 %v4306, %v4666
      %v4671 = vmul.f32 %v4307, %v4666
      %v4672 = vmul.f32 %v4308, %v4666
      %v4673 = vmul.f32 %v4309, %v4666
      %v4674 = vmul.f32 %v4310, %v4666
      %v4675 = vmul.f32 %v4311, %v4666
      %v4676 = vmul.f32 %v4312, %v4666
      %v4677 = vmul.f32 %v4313, %v4666
      %v4678 = vmul.f32 %v4314, %v4666
      %v4679 = vmul.f32 %v4315, %v4666
      %v4680 = vmul.f32 %v4316, %v4666
      %v4681 = vmul.f32 %v4317, %v4666
      %v4682 = vmul.f32 %v4318, %v4666
      %v4683 = vmul.f32 %v4319, %v4666
      %v4684 = vmul.f32 %v4320, %v4666
      %v4685 = vmul.f32 %v4321, %v4666
      %v4686 = vmul.f32 %v4322, %v4666
      %v4687 = vmul.f32 %v4323, %v4666
      %v4688 = vmul.f32 %v4324, %v4666
      %v4689 = vmul.f32 %v4325, %v4666
      %v4690 = vmul.f32 %v4326, %v4666
      %v4691 = vmul.f32 %v4327, %v4666
      %v4692 = vmul.f32 %v4328, %v4666
      %v4693 = vmul.f32 %v4329, %v4666
      %v4694 = vmul.f32 %v4330, %v4666
      %v4695 = vmul.f32 %v4331, %v4666
      %v4696 = vmul.f32 %v4332, %v4666
      %v4697 = vmul.f32 %v4333, %v4666
      %v4698 = vmul.f32 %v4334, %v4666
      %v4699 = vmul.f32 %v4335, %v4666
      %v4700 = vmul.f32 %v4336, %v4666
      %v4701 = vmul.f32 %v4337, %v4666
      %v4702 = vmul.f32 %v4338, %v4666
      %v4703 = vmul.f32 %v4339, %v4666
      %v4704 = vmul.f32 %v4340, %v4666
      %v4705 = vmul.f32 %v4341, %v4666
      %v4706 = vmul.f32 %v4342, %v4666
      %v4707 = vmul.f32 %v4343, %v4666
      %v4708 = vmul.f32 %v4344, %v4666
      %v4709 = vmul.f32 %v4345, %v4666
      %v4710 = vmul.f32 %v4346, %v4666
      %v4711 = vmul.f32 %v4347, %v4666
      %v4712 = vmul.f32 %v4348, %v4666
      %v4713 = vmul.f32 %v4349, %v4666
      %v4714 = vmul.f32 %v4350, %v4666
      %v4763 = vrot.slane %v4667, 2
      %v4764 = vrot.slane %v4668, 2
      %v4765 = vsel %vm1475, %v4763, %v4764
      %v4766 = vrot.slane %v4669, 2
      %v4767 = vsel %vm1475, %v4764, %v4766
      %v4768 = vrot.slane %v4670, 2
      %v4769 = vrot.slane %v4671, 2
      %v4770 = vsel %vm1475, %v4768, %v4769
      %v4771 = vrot.slane %v4672, 2
      %v4772 = vsel %vm1475, %v4769, %v4771
      %v4773 = vrot.slane %v4673, 2
      %v4774 = vrot.slane %v4674, 2
      %v4775 = vsel %vm1475, %v4773, %v4774
      %v4776 = vrot.slane %v4675, 2
      %v4777 = vsel %vm1475, %v4774, %v4776
      %v4778 = vrot.slane %v4676, 2
      %v4779 = vrot.slane %v4677, 2
      %v4780 = vsel %vm1475, %v4778, %v4779
      %v4781 = vrot.slane %v4678, 2
      %v4782 = vsel %vm1475, %v4779, %v4781
      %v4783 = vrot.slane %v4679, 2
      %v4784 = vrot.slane %v4680, 2
      %v4785 = vsel %vm1475, %v4783, %v4784
      %v4786 = vrot.slane %v4681, 2
      %v4787 = vsel %vm1475, %v4784, %v4786
      %v4788 = vrot.slane %v4682, 2
      %v4789 = vrot.slane %v4683, 2
      %v4790 = vsel %vm1475, %v4788, %v4789
      %v4791 = vrot.slane %v4684, 2
      %v4792 = vsel %vm1475, %v4789, %v4791
      %v4793 = vrot.slane %v4685, 2
      %v4794 = vrot.slane %v4686, 2
      %v4795 = vsel %vm1475, %v4793, %v4794
      %v4796 = vrot.slane %v4687, 2
      %v4797 = vsel %vm1475, %v4794, %v4796
      %v4798 = vrot.slane %v4688, 2
      %v4799 = vrot.slane %v4689, 2
      %v4800 = vsel %vm1475, %v4798, %v4799
      %v4801 = vrot.slane %v4690, 2
      %v4802 = vsel %vm1475, %v4799, %v4801
      %v4803 = vrot.slane %v4691, 2
      %v4804 = vrot.slane %v4692, 2
      %v4805 = vsel %vm1475, %v4803, %v4804
      %v4806 = vrot.slane %v4693, 2
      %v4807 = vsel %vm1475, %v4804, %v4806
      %v4808 = vrot.slane %v4694, 2
      %v4809 = vrot.slane %v4695, 2
      %v4810 = vsel %vm1475, %v4808, %v4809
      %v4811 = vrot.slane %v4696, 2
      %v4812 = vsel %vm1475, %v4809, %v4811
      %v4813 = vrot.slane %v4697, 2
      %v4814 = vrot.slane %v4698, 2
      %v4815 = vsel %vm1475, %v4813, %v4814
      %v4816 = vrot.slane %v4699, 2
      %v4817 = vsel %vm1475, %v4814, %v4816
      %v4818 = vrot.slane %v4700, 2
      %v4819 = vrot.slane %v4701, 2
      %v4820 = vsel %vm1475, %v4818, %v4819
      %v4821 = vrot.slane %v4702, 2
      %v4822 = vsel %vm1475, %v4819, %v4821
      %v4823 = vrot.slane %v4703, 2
      %v4824 = vrot.slane %v4704, 2
      %v4825 = vsel %vm1475, %v4823, %v4824
      %v4826 = vrot.slane %v4705, 2
      %v4827 = vsel %vm1475, %v4824, %v4826
      %v4828 = vrot.slane %v4706, 2
      %v4829 = vrot.slane %v4707, 2
      %v4830 = vsel %vm1475, %v4828, %v4829
      %v4831 = vrot.slane %v4708, 2
      %v4832 = vsel %vm1475, %v4829, %v4831
      %v4833 = vrot.slane %v4709, 2
      %v4834 = vrot.slane %v4710, 2
      %v4835 = vsel %vm1475, %v4833, %v4834
      %v4836 = vrot.slane %v4711, 2
      %v4837 = vsel %vm1475, %v4834, %v4836
      %v4838 = vrot.slane %v4712, 2
      %v4839 = vrot.slane %v4713, 2
      %v4840 = vsel %vm1475, %v4838, %v4839
      %v4841 = vrot.slane %v4714, 2
      %v4842 = vsel %vm1475, %v4839, %v4841
      %v4875 = vadd.f32 %v4631, %v4765
      %v4876 = vadd.f32 %v4632, %v4767
      %v4877 = vadd.f32 %v4633, %v4770
      %v4878 = vadd.f32 %v4634, %v4772
      %v4879 = vadd.f32 %v4635, %v4775
      %v4880 = vadd.f32 %v4636, %v4777
      %v4881 = vadd.f32 %v4637, %v4780
      %v4882 = vadd.f32 %v4638, %v4782
      %v4883 = vadd.f32 %v4639, %v4785
      %v4884 = vadd.f32 %v4640, %v4787
      %v4885 = vadd.f32 %v4641, %v4790
      %v4886 = vadd.f32 %v4642, %v4792
      %v4887 = vadd.f32 %v4643, %v4795
      %v4888 = vadd.f32 %v4644, %v4797
      %v4889 = vadd.f32 %v4645, %v4800
      %v4890 = vadd.f32 %v4646, %v4802
      %v4891 = vadd.f32 %v4647, %v4805
      %v4892 = vadd.f32 %v4648, %v4807
      %v4893 = vadd.f32 %v4649, %v4810
      %v4894 = vadd.f32 %v4650, %v4812
      %v4895 = vadd.f32 %v4651, %v4815
      %v4896 = vadd.f32 %v4652, %v4817
      %v4897 = vadd.f32 %v4653, %v4820
      %v4898 = vadd.f32 %v4654, %v4822
      %v4899 = vadd.f32 %v4655, %v4825
      %v4900 = vadd.f32 %v4656, %v4827
      %v4901 = vadd.f32 %v4657, %v4830
      %v4902 = vadd.f32 %v4658, %v4832
      %v4903 = vadd.f32 %v4659, %v4835
      %v4904 = vadd.f32 %v4660, %v4837
      %v4905 = vadd.f32 %v4661, %v4840
      %v4906 = vadd.f32 %v4662, %v4842
      %v4907 = vlaneseq
      %v4908 = vshrl.u32 %v4907, 7
      %v4909 = vsub.s32 2, %v4908
      %v4910 = vrot.slane %v1009, %v4909
      %v4911 = vmul.f32 %v4303, %v4910
      %v4912 = vmul.f32 %v4304, %v4910
      %v4913 = vmul.f32 %v4305, %v4910
      %v4914 = vmul.f32 %v4306, %v4910
      %v4915 = vmul.f32 %v4307, %v4910
      %v4916 = vmul.f32 %v4308, %v4910
      %v4917 = vmul.f32 %v4309, %v4910
      %v4918 = vmul.f32 %v4310, %v4910
      %v4919 = vmul.f32 %v4311, %v4910
      %v4920 = vmul.f32 %v4312, %v4910
      %v4921 = vmul.f32 %v4313, %v4910
      %v4922 = vmul.f32 %v4314, %v4910
      %v4923 = vmul.f32 %v4315, %v4910
      %v4924 = vmul.f32 %v4316, %v4910
      %v4925 = vmul.f32 %v4317, %v4910
      %v4926 = vmul.f32 %v4318, %v4910
      %v4927 = vmul.f32 %v4319, %v4910
      %v4928 = vmul.f32 %v4320, %v4910
      %v4929 = vmul.f32 %v4321, %v4910
      %v4930 = vmul.f32 %v4322, %v4910
      %v4931 = vmul.f32 %v4323, %v4910
      %v4932 = vmul.f32 %v4324, %v4910
      %v4933 = vmul.f32 %v4325, %v4910
      %v4934 = vmul.f32 %v4326, %v4910
      %v4935 = vmul.f32 %v4327, %v4910
      %v4936 = vmul.f32 %v4328, %v4910
      %v4937 = vmul.f32 %v4329, %v4910
      %v4938 = vmul.f32 %v4330, %v4910
      %v4939 = vmul.f32 %v4331, %v4910
      %v4940 = vmul.f32 %v4332, %v4910
      %v4941 = vmul.f32 %v4333, %v4910
      %v4942 = vmul.f32 %v4334, %v4910
      %v4943 = vmul.f32 %v4335, %v4910
      %v4944 = vmul.f32 %v4336, %v4910
      %v4945 = vmul.f32 %v4337, %v4910
      %v4946 = vmul.f32 %v4338, %v4910
      %v4947 = vmul.f32 %v4339, %v4910
      %v4948 = vmul.f32 %v4340, %v4910
      %v4949 = vmul.f32 %v4341, %v4910
      %v4950 = vmul.f32 %v4342, %v4910
      %v4951 = vmul.f32 %v4343, %v4910
      %v4952 = vmul.f32 %v4344, %v4910
      %v4953 = vmul.f32 %v4345, %v4910
      %v4954 = vmul.f32 %v4346, %v4910
      %v4955 = vmul.f32 %v4347, %v4910
      %v4956 = vmul.f32 %v4348, %v4910
      %v4957 = vmul.f32 %v4349, %v4910
      %v4958 = vmul.f32 %v4350, %v4910
      %v5007 = vrot.slane %v4911, 3
      %v5008 = vrot.slane %v4912, 3
      %v5009 = vsel %vm1720, %v5007, %v5008
      %v5010 = vrot.slane %v4913, 3
      %v5011 = vsel %vm1720, %v5008, %v5010
      %v5012 = vrot.slane %v4914, 3
      %v5013 = vrot.slane %v4915, 3
      %v5014 = vsel %vm1720, %v5012, %v5013
      %v5015 = vrot.slane %v4916, 3
      %v5016 = vsel %vm1720, %v5013, %v5015
      %v5017 = vrot.slane %v4917, 3
      %v5018 = vrot.slane %v4918, 3
      %v5019 = vsel %vm1720, %v5017, %v5018
      %v5020 = vrot.slane %v4919, 3
      %v5021 = vsel %vm1720, %v5018, %v5020
      %v5022 = vrot.slane %v4920, 3
      %v5023 = vrot.slane %v4921, 3
      %v5024 = vsel %vm1720, %v5022, %v5023
      %v5025 = vrot.slane %v4922, 3
      %v5026 = vsel %vm1720, %v5023, %v5025
      %v5027 = vrot.slane %v4923, 3
      %v5028 = vrot.slane %v4924, 3
      %v5029 = vsel %vm1720, %v5027, %v5028
      %v5030 = vrot.slane %v4925, 3
      %v5031 = vsel %vm1720, %v5028, %v5030
      %v5032 = vrot.slane %v4926, 3
      %v5033 = vrot.slane %v4927, 3
      %v5034 = vsel %vm1720, %v5032, %v5033
      %v5035 = vrot.slane %v4928, 3
      %v5036 = vsel %vm1720, %v5033, %v5035
      %v5037 = vrot.slane %v4929, 3
      %v5038 = vrot.slane %v4930, 3
      %v5039 = vsel %vm1720, %v5037, %v5038
      %v5040 = vrot.slane %v4931, 3
      %v5041 = vsel %vm1720, %v5038, %v5040
      %v5042 = vrot.slane %v4932, 3
      %v5043 = vrot.slane %v4933, 3
      %v5044 = vsel %vm1720, %v5042, %v5043
      %v5045 = vrot.slane %v4934, 3
      %v5046 = vsel %vm1720, %v5043, %v5045
      %v5047 = vrot.slane %v4935, 3
      %v5048 = vrot.slane %v4936, 3
      %v5049 = vsel %vm1720, %v5047, %v5048
      %v5050 = vrot.slane %v4937, 3
      %v5051 = vsel %vm1720, %v5048, %v5050
      %v5052 = vrot.slane %v4938, 3
      %v5053 = vrot.slane %v4939, 3
      %v5054 = vsel %vm1720, %v5052, %v5053
      %v5055 = vrot.slane %v4940, 3
      %v5056 = vsel %vm1720, %v5053, %v5055
      %v5057 = vrot.slane %v4941, 3
      %v5058 = vrot.slane %v4942, 3
      %v5059 = vsel %vm1720, %v5057, %v5058
      %v5060 = vrot.slane %v4943, 3
      %v5061 = vsel %vm1720, %v5058, %v5060
      %v5062 = vrot.slane %v4944, 3
      %v5063 = vrot.slane %v4945, 3
      %v5064 = vsel %vm1720, %v5062, %v5063
      %v5065 = vrot.slane %v4946, 3
      %v5066 = vsel %vm1720, %v5063, %v5065
      %v5067 = vrot.slane %v4947, 3
      %v5068 = vrot.slane %v4948, 3
      %v5069 = vsel %vm1720, %v5067, %v5068
      %v5070 = vrot.slane %v4949, 3
      %v5071 = vsel %vm1720, %v5068, %v5070
      %v5072 = vrot.slane %v4950, 3
      %v5073 = vrot.slane %v4951, 3
      %v5074 = vsel %vm1720, %v5072, %v5073
      %v5075 = vrot.slane %v4952, 3
      %v5076 = vsel %vm1720, %v5073, %v5075
      %v5077 = vrot.slane %v4953, 3
      %v5078 = vrot.slane %v4954, 3
      %v5079 = vsel %vm1720, %v5077, %v5078
      %v5080 = vrot.slane %v4955, 3
      %v5081 = vsel %vm1720, %v5078, %v5080
      %v5082 = vrot.slane %v4956, 3
      %v5083 = vrot.slane %v4957, 3
      %v5084 = vsel %vm1720, %v5082, %v5083
      %v5085 = vrot.slane %v4958, 3
      %v5086 = vsel %vm1720, %v5083, %v5085
      %v5119 = vadd.f32 %v4875, %v5009
      %v5120 = vadd.f32 %v4876, %v5011
      %v5121 = vadd.f32 %v4877, %v5014
      %v5122 = vadd.f32 %v4878, %v5016
      %v5123 = vadd.f32 %v4879, %v5019
      %v5124 = vadd.f32 %v4880, %v5021
      %v5125 = vadd.f32 %v4881, %v5024
      %v5126 = vadd.f32 %v4882, %v5026
      %v5127 = vadd.f32 %v4883, %v5029
      %v5128 = vadd.f32 %v4884, %v5031
      %v5129 = vadd.f32 %v4885, %v5034
      %v5130 = vadd.f32 %v4886, %v5036
      %v5131 = vadd.f32 %v4887, %v5039
      %v5132 = vadd.f32 %v4888, %v5041
      %v5133 = vadd.f32 %v4889, %v5044
      %v5134 = vadd.f32 %v4890, %v5046
      %v5135 = vadd.f32 %v4891, %v5049
      %v5136 = vadd.f32 %v4892, %v5051
      %v5137 = vadd.f32 %v4893, %v5054
      %v5138 = vadd.f32 %v4894, %v5056
      %v5139 = vadd.f32 %v4895, %v5059
      %v5140 = vadd.f32 %v4896, %v5061
      %v5141 = vadd.f32 %v4897, %v5064
      %v5142 = vadd.f32 %v4898, %v5066
      %v5143 = vadd.f32 %v4899, %v5069
      %v5144 = vadd.f32 %v4900, %v5071
      %v5145 = vadd.f32 %v4901, %v5074
      %v5146 = vadd.f32 %v4902, %v5076
      %v5147 = vadd.f32 %v4903, %v5079
      %v5148 = vadd.f32 %v4904, %v5081
      %v5149 = vadd.f32 %v4905, %v5084
      %v5150 = vadd.f32 %v4906, %v5086
      %v5151 = vlaneseq
      %v5152 = vshrl.u32 %v5151, 7
      %v5153 = vsub.s32 3, %v5152
      %v5154 = vrot.slane %v1009, %v5153
      %v5155 = vmul.f32 %v4303, %v5154
      %v5156 = vmul.f32 %v4304, %v5154
      %v5157 = vmul.f32 %v4305, %v5154
      %v5158 = vmul.f32 %v4306, %v5154
      %v5159 = vmul.f32 %v4307, %v5154
      %v5160 = vmul.f32 %v4308, %v5154
      %v5161 = vmul.f32 %v4309, %v5154
      %v5162 = vmul.f32 %v4310, %v5154
      %v5163 = vmul.f32 %v4311, %v5154
      %v5164 = vmul.f32 %v4312, %v5154
      %v5165 = vmul.f32 %v4313, %v5154
      %v5166 = vmul.f32 %v4314, %v5154
      %v5167 = vmul.f32 %v4315, %v5154
      %v5168 = vmul.f32 %v4316, %v5154
      %v5169 = vmul.f32 %v4317, %v5154
      %v5170 = vmul.f32 %v4318, %v5154
      %v5171 = vmul.f32 %v4319, %v5154
      %v5172 = vmul.f32 %v4320, %v5154
      %v5173 = vmul.f32 %v4321, %v5154
      %v5174 = vmul.f32 %v4322, %v5154
      %v5175 = vmul.f32 %v4323, %v5154
      %v5176 = vmul.f32 %v4324, %v5154
      %v5177 = vmul.f32 %v4325, %v5154
      %v5178 = vmul.f32 %v4326, %v5154
      %v5179 = vmul.f32 %v4327, %v5154
      %v5180 = vmul.f32 %v4328, %v5154
      %v5181 = vmul.f32 %v4329, %v5154
      %v5182 = vmul.f32 %v4330, %v5154
      %v5183 = vmul.f32 %v4331, %v5154
      %v5184 = vmul.f32 %v4332, %v5154
      %v5185 = vmul.f32 %v4333, %v5154
      %v5186 = vmul.f32 %v4334, %v5154
      %v5187 = vmul.f32 %v4335, %v5154
      %v5188 = vmul.f32 %v4336, %v5154
      %v5189 = vmul.f32 %v4337, %v5154
      %v5190 = vmul.f32 %v4338, %v5154
      %v5191 = vmul.f32 %v4339, %v5154
      %v5192 = vmul.f32 %v4340, %v5154
      %v5193 = vmul.f32 %v4341, %v5154
      %v5194 = vmul.f32 %v4342, %v5154
      %v5195 = vmul.f32 %v4343, %v5154
      %v5196 = vmul.f32 %v4344, %v5154
      %v5197 = vmul.f32 %v4345, %v5154
      %v5198 = vmul.f32 %v4346, %v5154
      %v5199 = vmul.f32 %v4347, %v5154
      %v5200 = vmul.f32 %v4348, %v5154
      %v5201 = vmul.f32 %v4349, %v5154
      %v5202 = vmul.f32 %v4350, %v5154
      %v5251 = vrot.slane %v5155, 4
      %v5252 = vrot.slane %v5156, 4
      %v5253 = vsel %vm1965, %v5251, %v5252
      %v5254 = vrot.slane %v5157, 4
      %v5255 = vsel %vm1965, %v5252, %v5254
      %v5256 = vrot.slane %v5158, 4
      %v5257 = vrot.slane %v5159, 4
      %v5258 = vsel %vm1965, %v5256, %v5257
      %v5259 = vrot.slane %v5160, 4
      %v5260 = vsel %vm1965, %v5257, %v5259
      %v5261 = vrot.slane %v5161, 4
      %v5262 = vrot.slane %v5162, 4
      %v5263 = vsel %vm1965, %v5261, %v5262
      %v5264 = vrot.slane %v5163, 4
      %v5265 = vsel %vm1965, %v5262, %v5264
      %v5266 = vrot.slane %v5164, 4
      %v5267 = vrot.slane %v5165, 4
      %v5268 = vsel %vm1965, %v5266, %v5267
      %v5269 = vrot.slane %v5166, 4
      %v5270 = vsel %vm1965, %v5267, %v5269
      %v5271 = vrot.slane %v5167, 4
      %v5272 = vrot.slane %v5168, 4
      %v5273 = vsel %vm1965, %v5271, %v5272
      %v5274 = vrot.slane %v5169, 4
      %v5275 = vsel %vm1965, %v5272, %v5274
      %v5276 = vrot.slane %v5170, 4
      %v5277 = vrot.slane %v5171, 4
      %v5278 = vsel %vm1965, %v5276, %v5277
      %v5279 = vrot.slane %v5172, 4
      %v5280 = vsel %vm1965, %v5277, %v5279
      %v5281 = vrot.slane %v5173, 4
      %v5282 = vrot.slane %v5174, 4
      %v5283 = vsel %vm1965, %v5281, %v5282
      %v5284 = vrot.slane %v5175, 4
      %v5285 = vsel %vm1965, %v5282, %v5284
      %v5286 = vrot.slane %v5176, 4
      %v5287 = vrot.slane %v5177, 4
      %v5288 = vsel %vm1965, %v5286, %v5287
      %v5289 = vrot.slane %v5178, 4
      %v5290 = vsel %vm1965, %v5287, %v5289
      %v5291 = vrot.slane %v5179, 4
      %v5292 = vrot.slane %v5180, 4
      %v5293 = vsel %vm1965, %v5291, %v5292
      %v5294 = vrot.slane %v5181, 4
      %v5295 = vsel %vm1965, %v5292, %v5294
      %v5296 = vrot.slane %v5182, 4
      %v5297 = vrot.slane %v5183, 4
      %v5298 = vsel %vm1965, %v5296, %v5297
      %v5299 = vrot.slane %v5184, 4
      %v5300 = vsel %vm1965, %v5297, %v5299
      %v5301 = vrot.slane %v5185, 4
      %v5302 = vrot.slane %v5186, 4
      %v5303 = vsel %vm1965, %v5301, %v5302
      %v5304 = vrot.slane %v5187, 4
      %v5305 = vsel %vm1965, %v5302, %v5304
      %v5306 = vrot.slane %v5188, 4
      %v5307 = vrot.slane %v5189, 4
      %v5308 = vsel %vm1965, %v5306, %v5307
      %v5309 = vrot.slane %v5190, 4
      %v5310 = vsel %vm1965, %v5307, %v5309
      %v5311 = vrot.slane %v5191, 4
      %v5312 = vrot.slane %v5192, 4
      %v5313 = vsel %vm1965, %v5311, %v5312
      %v5314 = vrot.slane %v5193, 4
      %v5315 = vsel %vm1965, %v5312, %v5314
      %v5316 = vrot.slane %v5194, 4
      %v5317 = vrot.slane %v5195, 4
      %v5318 = vsel %vm1965, %v5316, %v5317
      %v5319 = vrot.slane %v5196, 4
      %v5320 = vsel %vm1965, %v5317, %v5319
      %v5321 = vrot.slane %v5197, 4
      %v5322 = vrot.slane %v5198, 4
      %v5323 = vsel %vm1965, %v5321, %v5322
      %v5324 = vrot.slane %v5199, 4
      %v5325 = vsel %vm1965, %v5322, %v5324
      %v5326 = vrot.slane %v5200, 4
      %v5327 = vrot.slane %v5201, 4
      %v5328 = vsel %vm1965, %v5326, %v5327
      %v5329 = vrot.slane %v5202, 4
      %v5330 = vsel %vm1965, %v5327, %v5329
      %v5363 = vadd.f32 %v5119, %v5253
      %v5364 = vadd.f32 %v5120, %v5255
      %v5365 = vadd.f32 %v5121, %v5258
      %v5366 = vadd.f32 %v5122, %v5260
      %v5367 = vadd.f32 %v5123, %v5263
      %v5368 = vadd.f32 %v5124, %v5265
      %v5369 = vadd.f32 %v5125, %v5268
      %v5370 = vadd.f32 %v5126, %v5270
      %v5371 = vadd.f32 %v5127, %v5273
      %v5372 = vadd.f32 %v5128, %v5275
      %v5373 = vadd.f32 %v5129, %v5278
      %v5374 = vadd.f32 %v5130, %v5280
      %v5375 = vadd.f32 %v5131, %v5283
      %v5376 = vadd.f32 %v5132, %v5285
      %v5377 = vadd.f32 %v5133, %v5288
      %v5378 = vadd.f32 %v5134, %v5290
      %v5379 = vadd.f32 %v5135, %v5293
      %v5380 = vadd.f32 %v5136, %v5295
      %v5381 = vadd.f32 %v5137, %v5298
      %v5382 = vadd.f32 %v5138, %v5300
      %v5383 = vadd.f32 %v5139, %v5303
      %v5384 = vadd.f32 %v5140, %v5305
      %v5385 = vadd.f32 %v5141, %v5308
      %v5386 = vadd.f32 %v5142, %v5310
      %v5387 = vadd.f32 %v5143, %v5313
      %v5388 = vadd.f32 %v5144, %v5315
      %v5389 = vadd.f32 %v5145, %v5318
      %v5390 = vadd.f32 %v5146, %v5320
      %v5391 = vadd.f32 %v5147, %v5323
      %v5392 = vadd.f32 %v5148, %v5325
      %v5393 = vadd.f32 %v5149, %v5328
      %v5394 = vadd.f32 %v5150, %v5330
      %s5395 = sadd.s32 0, 4
      %s5396 = smul.u32 %s5395, 24
      %s5397 = scalar_lea.vmem [#allocation2], %s5396
      %v5398 = vld [vmem:[%s5397] sm:$0xff]
      %v5399 = vld [vmem:[%s5397 + $0x8] sm:$0xff]
      %v5400 = vld [vmem:[%s5397 + $0x10] sm:$0xff]
      %v5401 = vld [vmem:[%s5397 + $0x18] sm:$0xff]
      %v5402 = vld [vmem:[%s5397 + $0x20] sm:$0xff]
      %v5403 = vld [vmem:[%s5397 + $0x28] sm:$0xff]
      %v5404 = vld [vmem:[%s5397 + $0x30] sm:$0xff]
      %v5405 = vld [vmem:[%s5397 + $0x38] sm:$0xff]
      %v5406 = vld [vmem:[%s5397 + $0x40] sm:$0xff]
      %v5407 = vld [vmem:[%s5397 + $0x48] sm:$0xff]
      %v5408 = vld [vmem:[%s5397 + $0x50] sm:$0xff]
      %v5409 = vld [vmem:[%s5397 + $0x58] sm:$0xff]
      %v5410 = vld [vmem:[%s5397 + $0x60] sm:$0xff]
      %v5411 = vld [vmem:[%s5397 + $0x68] sm:$0xff]
      %v5412 = vld [vmem:[%s5397 + $0x70] sm:$0xff]
      %v5413 = vld [vmem:[%s5397 + $0x78] sm:$0xff]
      %v5414 = vld [vmem:[%s5397 + $0x80] sm:$0xff]
      %v5415 = vld [vmem:[%s5397 + $0x88] sm:$0xff]
      %v5416 = vld [vmem:[%s5397 + $0x90] sm:$0xff]
      %v5417 = vld [vmem:[%s5397 + $0x98] sm:$0xff]
      %v5418 = vld [vmem:[%s5397 + $0xa0] sm:$0xff]
      %v5419 = vld [vmem:[%s5397 + $0xa8] sm:$0xff]
      %v5420 = vld [vmem:[%s5397 + $0xb0] sm:$0xff]
      %v5421 = vld [vmem:[%s5397 + $0xb8] sm:$0xff]
      %v5422 = vld [vmem:[%s5397 + $0xc0] sm:$0xff]
      %v5423 = vld [vmem:[%s5397 + $0xc8] sm:$0xff]
      %v5424 = vld [vmem:[%s5397 + $0xd0] sm:$0xff]
      %v5425 = vld [vmem:[%s5397 + $0xd8] sm:$0xff]
      %v5426 = vld [vmem:[%s5397 + $0xe0] sm:$0xff]
      %v5427 = vld [vmem:[%s5397 + $0xe8] sm:$0xff]
      %v5428 = vld [vmem:[%s5397 + $0xf0] sm:$0xff]
      %v5429 = vld [vmem:[%s5397 + $0xf8] sm:$0xff]
      %v5430 = vld [vmem:[%s5397 + $0x100] sm:$0xff]
      %v5431 = vld [vmem:[%s5397 + $0x108] sm:$0xff]
      %v5432 = vld [vmem:[%s5397 + $0x110] sm:$0xff]
      %v5433 = vld [vmem:[%s5397 + $0x118] sm:$0xff]
      %v5434 = vld [vmem:[%s5397 + $0x120] sm:$0xff]
      %v5435 = vld [vmem:[%s5397 + $0x128] sm:$0xff]
      %v5436 = vld [vmem:[%s5397 + $0x130] sm:$0xff]
      %v5437 = vld [vmem:[%s5397 + $0x138] sm:$0xff]
      %v5438 = vld [vmem:[%s5397 + $0x140] sm:$0xff]
      %v5439 = vld [vmem:[%s5397 + $0x148] sm:$0xff]
      %v5440 = vld [vmem:[%s5397 + $0x150] sm:$0xff]
      %v5441 = vld [vmem:[%s5397 + $0x158] sm:$0xff]
      %v5442 = vld [vmem:[%s5397 + $0x160] sm:$0xff]
      %v5443 = vld [vmem:[%s5397 + $0x168] sm:$0xff]
      %v5444 = vld [vmem:[%s5397 + $0x170] sm:$0xff]
      %v5445 = vld [vmem:[%s5397 + $0x178] sm:$0xff]
      %v5446 = vlaneseq
      %v5447 = vshrl.u32 %v5446, 7
      %v5448 = vsub.s32 4, %v5447
      %v5449 = vrot.slane %v1009, %v5448
      %v5450 = vmul.f32 %v5398, %v5449
      %v5451 = vmul.f32 %v5399, %v5449
      %v5452 = vmul.f32 %v5401, %v5449
      %v5453 = vmul.f32 %v5402, %v5449
      %v5454 = vmul.f32 %v5404, %v5449
      %v5455 = vmul.f32 %v5405, %v5449
      %v5456 = vmul.f32 %v5407, %v5449
      %v5457 = vmul.f32 %v5408, %v5449
      %v5458 = vmul.f32 %v5410, %v5449
      %v5459 = vmul.f32 %v5411, %v5449
      %v5460 = vmul.f32 %v5413, %v5449
      %v5461 = vmul.f32 %v5414, %v5449
      %v5462 = vmul.f32 %v5416, %v5449
      %v5463 = vmul.f32 %v5417, %v5449
      %v5464 = vmul.f32 %v5419, %v5449
      %v5465 = vmul.f32 %v5420, %v5449
      %v5466 = vmul.f32 %v5422, %v5449
      %v5467 = vmul.f32 %v5423, %v5449
      %v5468 = vmul.f32 %v5425, %v5449
      %v5469 = vmul.f32 %v5426, %v5449
      %v5470 = vmul.f32 %v5428, %v5449
      %v5471 = vmul.f32 %v5429, %v5449
      %v5472 = vmul.f32 %v5431, %v5449
      %v5473 = vmul.f32 %v5432, %v5449
      %v5474 = vmul.f32 %v5434, %v5449
      %v5475 = vmul.f32 %v5435, %v5449
      %v5476 = vmul.f32 %v5437, %v5449
      %v5477 = vmul.f32 %v5438, %v5449
      %v5478 = vmul.f32 %v5440, %v5449
      %v5479 = vmul.f32 %v5441, %v5449
      %v5480 = vmul.f32 %v5443, %v5449
      %v5481 = vmul.f32 %v5444, %v5449
      %v5482 = vadd.f32 %v5363, %v5450
      %v5483 = vadd.f32 %v5364, %v5451
      %v5484 = vadd.f32 %v5365, %v5452
      %v5485 = vadd.f32 %v5366, %v5453
      %v5486 = vadd.f32 %v5367, %v5454
      %v5487 = vadd.f32 %v5368, %v5455
      %v5488 = vadd.f32 %v5369, %v5456
      %v5489 = vadd.f32 %v5370, %v5457
      %v5490 = vadd.f32 %v5371, %v5458
      %v5491 = vadd.f32 %v5372, %v5459
      %v5492 = vadd.f32 %v5373, %v5460
      %v5493 = vadd.f32 %v5374, %v5461
      %v5494 = vadd.f32 %v5375, %v5462
      %v5495 = vadd.f32 %v5376, %v5463
      %v5496 = vadd.f32 %v5377, %v5464
      %v5497 = vadd.f32 %v5378, %v5465
      %v5498 = vadd.f32 %v5379, %v5466
      %v5499 = vadd.f32 %v5380, %v5467
      %v5500 = vadd.f32 %v5381, %v5468
      %v5501 = vadd.f32 %v5382, %v5469
      %v5502 = vadd.f32 %v5383, %v5470
      %v5503 = vadd.f32 %v5384, %v5471
      %v5504 = vadd.f32 %v5385, %v5472
      %v5505 = vadd.f32 %v5386, %v5473
      %v5506 = vadd.f32 %v5387, %v5474
      %v5507 = vadd.f32 %v5388, %v5475
      %v5508 = vadd.f32 %v5389, %v5476
      %v5509 = vadd.f32 %v5390, %v5477
      %v5510 = vadd.f32 %v5391, %v5478
      %v5511 = vadd.f32 %v5392, %v5479
      %v5512 = vadd.f32 %v5393, %v5480
      %v5513 = vadd.f32 %v5394, %v5481
      %v5514 = vlaneseq
      %v5515 = vshrl.u32 %v5514, 7
      %v5516 = vsub.s32 5, %v5515
      %v5517 = vrot.slane %v1009, %v5516
      %v5518 = vmul.f32 %v5398, %v5517
      %v5519 = vmul.f32 %v5399, %v5517
      %v5520 = vmul.f32 %v5400, %v5517
      %v5521 = vmul.f32 %v5401, %v5517
      %v5522 = vmul.f32 %v5402, %v5517
      %v5523 = vmul.f32 %v5403, %v5517
      %v5524 = vmul.f32 %v5404, %v5517
      %v5525 = vmul.f32 %v5405, %v5517
      %v5526 = vmul.f32 %v5406, %v5517
      %v5527 = vmul.f32 %v5407, %v5517
      %v5528 = vmul.f32 %v5408, %v5517
      %v5529 = vmul.f32 %v5409, %v5517
      %v5530 = vmul.f32 %v5410, %v5517
      %v5531 = vmul.f32 %v5411, %v5517
      %v5532 = vmul.f32 %v5412, %v5517
      %v5533 = vmul.f32 %v5413, %v5517
      %v5534 = vmul.f32 %v5414, %v5517
      %v5535 = vmul.f32 %v5415, %v5517
      %v5536 = vmul.f32 %v5416, %v5517
      %v5537 = vmul.f32 %v5417, %v5517
      %v5538 = vmul.f32 %v5418, %v5517
      %v5539 = vmul.f32 %v5419, %v5517
      %v5540 = vmul.f32 %v5420, %v5517
      %v5541 = vmul.f32 %v5421, %v5517
      %v5542 = vmul.f32 %v5422, %v5517
      %v5543 = vmul.f32 %v5423, %v5517
      %v5544 = vmul.f32 %v5424, %v5517
      %v5545 = vmul.f32 %v5425, %v5517
      %v5546 = vmul.f32 %v5426, %v5517
      %v5547 = vmul.f32 %v5427, %v5517
      %v5548 = vmul.f32 %v5428, %v5517
      %v5549 = vmul.f32 %v5429, %v5517
      %v5550 = vmul.f32 %v5430, %v5517
      %v5551 = vmul.f32 %v5431, %v5517
      %v5552 = vmul.f32 %v5432, %v5517
      %v5553 = vmul.f32 %v5433, %v5517
      %v5554 = vmul.f32 %v5434, %v5517
      %v5555 = vmul.f32 %v5435, %v5517
      %v5556 = vmul.f32 %v5436, %v5517
      %v5557 = vmul.f32 %v5437, %v5517
      %v5558 = vmul.f32 %v5438, %v5517
      %v5559 = vmul.f32 %v5439, %v5517
      %v5560 = vmul.f32 %v5440, %v5517
      %v5561 = vmul.f32 %v5441, %v5517
      %v5562 = vmul.f32 %v5442, %v5517
      %v5563 = vmul.f32 %v5443, %v5517
      %v5564 = vmul.f32 %v5444, %v5517
      %v5565 = vmul.f32 %v5445, %v5517
      %v5614 = vrot.slane %v5518, 1
      %v5615 = vrot.slane %v5519, 1
      %v5616 = vsel %vm1230, %v5614, %v5615
      %v5617 = vrot.slane %v5520, 1
      %v5618 = vsel %vm1230, %v5615, %v5617
      %v5619 = vrot.slane %v5521, 1
      %v5620 = vrot.slane %v5522, 1
      %v5621 = vsel %vm1230, %v5619, %v5620
      %v5622 = vrot.slane %v5523, 1
      %v5623 = vsel %vm1230, %v5620, %v5622
      %v5624 = vrot.slane %v5524, 1
      %v5625 = vrot.slane %v5525, 1
      %v5626 = vsel %vm1230, %v5624, %v5625
      %v5627 = vrot.slane %v5526, 1
      %v5628 = vsel %vm1230, %v5625, %v5627
      %v5629 = vrot.slane %v5527, 1
      %v5630 = vrot.slane %v5528, 1
      %v5631 = vsel %vm1230, %v5629, %v5630
      %v5632 = vrot.slane %v5529, 1
      %v5633 = vsel %vm1230, %v5630, %v5632
      %v5634 = vrot.slane %v5530, 1
      %v5635 = vrot.slane %v5531, 1
      %v5636 = vsel %vm1230, %v5634, %v5635
      %v5637 = vrot.slane %v5532, 1
      %v5638 = vsel %vm1230, %v5635, %v5637
      %v5639 = vrot.slane %v5533, 1
      %v5640 = vrot.slane %v5534, 1
      %v5641 = vsel %vm1230, %v5639, %v5640
      %v5642 = vrot.slane %v5535, 1
      %v5643 = vsel %vm1230, %v5640, %v5642
      %v5644 = vrot.slane %v5536, 1
      %v5645 = vrot.slane %v5537, 1
      %v5646 = vsel %vm1230, %v5644, %v5645
      %v5647 = vrot.slane %v5538, 1
      %v5648 = vsel %vm1230, %v5645, %v5647
      %v5649 = vrot.slane %v5539, 1
      %v5650 = vrot.slane %v5540, 1
      %v5651 = vsel %vm1230, %v5649, %v5650
      %v5652 = vrot.slane %v5541, 1
      %v5653 = vsel %vm1230, %v5650, %v5652
      %v5654 = vrot.slane %v5542, 1
      %v5655 = vrot.slane %v5543, 1
      %v5656 = vsel %vm1230, %v5654, %v5655
      %v5657 = vrot.slane %v5544, 1
      %v5658 = vsel %vm1230, %v5655, %v5657
      %v5659 = vrot.slane %v5545, 1
      %v5660 = vrot.slane %v5546, 1
      %v5661 = vsel %vm1230, %v5659, %v5660
      %v5662 = vrot.slane %v5547, 1
      %v5663 = vsel %vm1230, %v5660, %v5662
      %v5664 = vrot.slane %v5548, 1
      %v5665 = vrot.slane %v5549, 1
      %v5666 = vsel %vm1230, %v5664, %v5665
      %v5667 = vrot.slane %v5550, 1
      %v5668 = vsel %vm1230, %v5665, %v5667
      %v5669 = vrot.slane %v5551, 1
      %v5670 = vrot.slane %v5552, 1
      %v5671 = vsel %vm1230, %v5669, %v5670
      %v5672 = vrot.slane %v5553, 1
      %v5673 = vsel %vm1230, %v5670, %v5672
      %v5674 = vrot.slane %v5554, 1
      %v5675 = vrot.slane %v5555, 1
      %v5676 = vsel %vm1230, %v5674, %v5675
      %v5677 = vrot.slane %v5556, 1
      %v5678 = vsel %vm1230, %v5675, %v5677
      %v5679 = vrot.slane %v5557, 1
      %v5680 = vrot.slane %v5558, 1
      %v5681 = vsel %vm1230, %v5679, %v5680
      %v5682 = vrot.slane %v5559, 1
      %v5683 = vsel %vm1230, %v5680, %v5682
      %v5684 = vrot.slane %v5560, 1
      %v5685 = vrot.slane %v5561, 1
      %v5686 = vsel %vm1230, %v5684, %v5685
      %v5687 = vrot.slane %v5562, 1
      %v5688 = vsel %vm1230, %v5685, %v5687
      %v5689 = vrot.slane %v5563, 1
      %v5690 = vrot.slane %v5564, 1
      %v5691 = vsel %vm1230, %v5689, %v5690
      %v5692 = vrot.slane %v5565, 1
      %v5693 = vsel %vm1230, %v5690, %v5692
      %v5726 = vadd.f32 %v5482, %v5616
      %v5727 = vadd.f32 %v5483, %v5618
      %v5728 = vadd.f32 %v5484, %v5621
      %v5729 = vadd.f32 %v5485, %v5623
      %v5730 = vadd.f32 %v5486, %v5626
      %v5731 = vadd.f32 %v5487, %v5628
      %v5732 = vadd.f32 %v5488, %v5631
      %v5733 = vadd.f32 %v5489, %v5633
      %v5734 = vadd.f32 %v5490, %v5636
      %v5735 = vadd.f32 %v5491, %v5638
      %v5736 = vadd.f32 %v5492, %v5641
      %v5737 = vadd.f32 %v5493, %v5643
      %v5738 = vadd.f32 %v5494, %v5646
      %v5739 = vadd.f32 %v5495, %v5648
      %v5740 = vadd.f32 %v5496, %v5651
      %v5741 = vadd.f32 %v5497, %v5653
      %v5742 = vadd.f32 %v5498, %v5656
      %v5743 = vadd.f32 %v5499, %v5658
      %v5744 = vadd.f32 %v5500, %v5661
      %v5745 = vadd.f32 %v5501, %v5663
      %v5746 = vadd.f32 %v5502, %v5666
      %v5747 = vadd.f32 %v5503, %v5668
      %v5748 = vadd.f32 %v5504, %v5671
      %v5749 = vadd.f32 %v5505, %v5673
      %v5750 = vadd.f32 %v5506, %v5676
      %v5751 = vadd.f32 %v5507, %v5678
      %v5752 = vadd.f32 %v5508, %v5681
      %v5753 = vadd.f32 %v5509, %v5683
      %v5754 = vadd.f32 %v5510, %v5686
      %v5755 = vadd.f32 %v5511, %v5688
      %v5756 = vadd.f32 %v5512, %v5691
      %v5757 = vadd.f32 %v5513, %v5693
      %v5758 = vlaneseq
      %v5759 = vshrl.u32 %v5758, 7
      %v5760 = vsub.s32 6, %v5759
      %v5761 = vrot.slane %v1009, %v5760
      %v5762 = vmul.f32 %v5398, %v5761
      %v5763 = vmul.f32 %v5399, %v5761
      %v5764 = vmul.f32 %v5400, %v5761
      %v5765 = vmul.f32 %v5401, %v5761
      %v5766 = vmul.f32 %v5402, %v5761
      %v5767 = vmul.f32 %v5403, %v5761
      %v5768 = vmul.f32 %v5404, %v5761
      %v5769 = vmul.f32 %v5405, %v5761
      %v5770 = vmul.f32 %v5406, %v5761
      %v5771 = vmul.f32 %v5407, %v5761
      %v5772 = vmul.f32 %v5408, %v5761
      %v5773 = vmul.f32 %v5409, %v5761
      %v5774 = vmul.f32 %v5410, %v5761
      %v5775 = vmul.f32 %v5411, %v5761
      %v5776 = vmul.f32 %v5412, %v5761
      %v5777 = vmul.f32 %v5413, %v5761
      %v5778 = vmul.f32 %v5414, %v5761
      %v5779 = vmul.f32 %v5415, %v5761
      %v5780 = vmul.f32 %v5416, %v5761
      %v5781 = vmul.f32 %v5417, %v5761
      %v5782 = vmul.f32 %v5418, %v5761
      %v5783 = vmul.f32 %v5419, %v5761
      %v5784 = vmul.f32 %v5420, %v5761
      %v5785 = vmul.f32 %v5421, %v5761
      %v5786 = vmul.f32 %v5422, %v5761
      %v5787 = vmul.f32 %v5423, %v5761
      %v5788 = vmul.f32 %v5424, %v5761
      %v5789 = vmul.f32 %v5425, %v5761
      %v5790 = vmul.f32 %v5426, %v5761
      %v5791 = vmul.f32 %v5427, %v5761
      %v5792 = vmul.f32 %v5428, %v5761
      %v5793 = vmul.f32 %v5429, %v5761
      %v5794 = vmul.f32 %v5430, %v5761
      %v5795 = vmul.f32 %v5431, %v5761
      %v5796 = vmul.f32 %v5432, %v5761
      %v5797 = vmul.f32 %v5433, %v5761
      %v5798 = vmul.f32 %v5434, %v5761
      %v5799 = vmul.f32 %v5435, %v5761
      %v5800 = vmul.f32 %v5436, %v5761
      %v5801 = vmul.f32 %v5437, %v5761
      %v5802 = vmul.f32 %v5438, %v5761
      %v5803 = vmul.f32 %v5439, %v5761
      %v5804 = vmul.f32 %v5440, %v5761
      %v5805 = vmul.f32 %v5441, %v5761
      %v5806 = vmul.f32 %v5442, %v5761
      %v5807 = vmul.f32 %v5443, %v5761
      %v5808 = vmul.f32 %v5444, %v5761
      %v5809 = vmul.f32 %v5445, %v5761
      %v5858 = vrot.slane %v5762, 2
      %v5859 = vrot.slane %v5763, 2
      %v5860 = vsel %vm1475, %v5858, %v5859
      %v5861 = vrot.slane %v5764, 2
      %v5862 = vsel %vm1475, %v5859, %v5861
      %v5863 = vrot.slane %v5765, 2
      %v5864 = vrot.slane %v5766, 2
      %v5865 = vsel %vm1475, %v5863, %v5864
      %v5866 = vrot.slane %v5767, 2
      %v5867 = vsel %vm1475, %v5864, %v5866
      %v5868 = vrot.slane %v5768, 2
      %v5869 = vrot.slane %v5769, 2
      %v5870 = vsel %vm1475, %v5868, %v5869
      %v5871 = vrot.slane %v5770, 2
      %v5872 = vsel %vm1475, %v5869, %v5871
      %v5873 = vrot.slane %v5771, 2
      %v5874 = vrot.slane %v5772, 2
      %v5875 = vsel %vm1475, %v5873, %v5874
      %v5876 = vrot.slane %v5773, 2
      %v5877 = vsel %vm1475, %v5874, %v5876
      %v5878 = vrot.slane %v5774, 2
      %v5879 = vrot.slane %v5775, 2
      %v5880 = vsel %vm1475, %v5878, %v5879
      %v5881 = vrot.slane %v5776, 2
      %v5882 = vsel %vm1475, %v5879, %v5881
      %v5883 = vrot.slane %v5777, 2
      %v5884 = vrot.slane %v5778, 2
      %v5885 = vsel %vm1475, %v5883, %v5884
      %v5886 = vrot.slane %v5779, 2
      %v5887 = vsel %vm1475, %v5884, %v5886
      %v5888 = vrot.slane %v5780, 2
      %v5889 = vrot.slane %v5781, 2
      %v5890 = vsel %vm1475, %v5888, %v5889
      %v5891 = vrot.slane %v5782, 2
      %v5892 = vsel %vm1475, %v5889, %v5891
      %v5893 = vrot.slane %v5783, 2
      %v5894 = vrot.slane %v5784, 2
      %v5895 = vsel %vm1475, %v5893, %v5894
      %v5896 = vrot.slane %v5785, 2
      %v5897 = vsel %vm1475, %v5894, %v5896
      %v5898 = vrot.slane %v5786, 2
      %v5899 = vrot.slane %v5787, 2
      %v5900 = vsel %vm1475, %v5898, %v5899
      %v5901 = vrot.slane %v5788, 2
      %v5902 = vsel %vm1475, %v5899, %v5901
      %v5903 = vrot.slane %v5789, 2
      %v5904 = vrot.slane %v5790, 2
      %v5905 = vsel %vm1475, %v5903, %v5904
      %v5906 = vrot.slane %v5791, 2
      %v5907 = vsel %vm1475, %v5904, %v5906
      %v5908 = vrot.slane %v5792, 2
      %v5909 = vrot.slane %v5793, 2
      %v5910 = vsel %vm1475, %v5908, %v5909
      %v5911 = vrot.slane %v5794, 2
      %v5912 = vsel %vm1475, %v5909, %v5911
      %v5913 = vrot.slane %v5795, 2
      %v5914 = vrot.slane %v5796, 2
      %v5915 = vsel %vm1475, %v5913, %v5914
      %v5916 = vrot.slane %v5797, 2
      %v5917 = vsel %vm1475, %v5914, %v5916
      %v5918 = vrot.slane %v5798, 2
      %v5919 = vrot.slane %v5799, 2
      %v5920 = vsel %vm1475, %v5918, %v5919
      %v5921 = vrot.slane %v5800, 2
      %v5922 = vsel %vm1475, %v5919, %v5921
      %v5923 = vrot.slane %v5801, 2
      %v5924 = vrot.slane %v5802, 2
      %v5925 = vsel %vm1475, %v5923, %v5924
      %v5926 = vrot.slane %v5803, 2
      %v5927 = vsel %vm1475, %v5924, %v5926
      %v5928 = vrot.slane %v5804, 2
      %v5929 = vrot.slane %v5805, 2
      %v5930 = vsel %vm1475, %v5928, %v5929
      %v5931 = vrot.slane %v5806, 2
      %v5932 = vsel %vm1475, %v5929, %v5931
      %v5933 = vrot.slane %v5807, 2
      %v5934 = vrot.slane %v5808, 2
      %v5935 = vsel %vm1475, %v5933, %v5934
      %v5936 = vrot.slane %v5809, 2
      %v5937 = vsel %vm1475, %v5934, %v5936
      %v5970 = vadd.f32 %v5726, %v5860
      %v5971 = vadd.f32 %v5727, %v5862
      %v5972 = vadd.f32 %v5728, %v5865
      %v5973 = vadd.f32 %v5729, %v5867
      %v5974 = vadd.f32 %v5730, %v5870
      %v5975 = vadd.f32 %v5731, %v5872
      %v5976 = vadd.f32 %v5732, %v5875
      %v5977 = vadd.f32 %v5733, %v5877
      %v5978 = vadd.f32 %v5734, %v5880
      %v5979 = vadd.f32 %v5735, %v5882
      %v5980 = vadd.f32 %v5736, %v5885
      %v5981 = vadd.f32 %v5737, %v5887
      %v5982 = vadd.f32 %v5738, %v5890
      %v5983 = vadd.f32 %v5739, %v5892
      %v5984 = vadd.f32 %v5740, %v5895
      %v5985 = vadd.f32 %v5741, %v5897
      %v5986 = vadd.f32 %v5742, %v5900
      %v5987 = vadd.f32 %v5743, %v5902
      %v5988 = vadd.f32 %v5744, %v5905
      %v5989 = vadd.f32 %v5745, %v5907
      %v5990 = vadd.f32 %v5746, %v5910
      %v5991 = vadd.f32 %v5747, %v5912
      %v5992 = vadd.f32 %v5748, %v5915
      %v5993 = vadd.f32 %v5749, %v5917
      %v5994 = vadd.f32 %v5750, %v5920
      %v5995 = vadd.f32 %v5751, %v5922
      %v5996 = vadd.f32 %v5752, %v5925
      %v5997 = vadd.f32 %v5753, %v5927
      %v5998 = vadd.f32 %v5754, %v5930
      %v5999 = vadd.f32 %v5755, %v5932
      %v6000 = vadd.f32 %v5756, %v5935
      %v6001 = vadd.f32 %v5757, %v5937
      %v6002 = vlaneseq
      %v6003 = vshrl.u32 %v6002, 7
      %v6004 = vsub.s32 7, %v6003
      %v6005 = vrot.slane %v1009, %v6004
      %v6006 = vmul.f32 %v5398, %v6005
      %v6007 = vmul.f32 %v5399, %v6005
      %v6008 = vmul.f32 %v5400, %v6005
      %v6009 = vmul.f32 %v5401, %v6005
      %v6010 = vmul.f32 %v5402, %v6005
      %v6011 = vmul.f32 %v5403, %v6005
      %v6012 = vmul.f32 %v5404, %v6005
      %v6013 = vmul.f32 %v5405, %v6005
      %v6014 = vmul.f32 %v5406, %v6005
      %v6015 = vmul.f32 %v5407, %v6005
      %v6016 = vmul.f32 %v5408, %v6005
      %v6017 = vmul.f32 %v5409, %v6005
      %v6018 = vmul.f32 %v5410, %v6005
      %v6019 = vmul.f32 %v5411, %v6005
      %v6020 = vmul.f32 %v5412, %v6005
      %v6021 = vmul.f32 %v5413, %v6005
      %v6022 = vmul.f32 %v5414, %v6005
      %v6023 = vmul.f32 %v5415, %v6005
      %v6024 = vmul.f32 %v5416, %v6005
      %v6025 = vmul.f32 %v5417, %v6005
      %v6026 = vmul.f32 %v5418, %v6005
      %v6027 = vmul.f32 %v5419, %v6005
      %v6028 = vmul.f32 %v5420, %v6005
      %v6029 = vmul.f32 %v5421, %v6005
      %v6030 = vmul.f32 %v5422, %v6005
      %v6031 = vmul.f32 %v5423, %v6005
      %v6032 = vmul.f32 %v5424, %v6005
      %v6033 = vmul.f32 %v5425, %v6005
      %v6034 = vmul.f32 %v5426, %v6005
      %v6035 = vmul.f32 %v5427, %v6005
      %v6036 = vmul.f32 %v5428, %v6005
      %v6037 = vmul.f32 %v5429, %v6005
      %v6038 = vmul.f32 %v5430, %v6005
      %v6039 = vmul.f32 %v5431, %v6005
      %v6040 = vmul.f32 %v5432, %v6005
      %v6041 = vmul.f32 %v5433, %v6005
      %v6042 = vmul.f32 %v5434, %v6005
      %v6043 = vmul.f32 %v5435, %v6005
      %v6044 = vmul.f32 %v5436, %v6005
      %v6045 = vmul.f32 %v5437, %v6005
      %v6046 = vmul.f32 %v5438, %v6005
      %v6047 = vmul.f32 %v5439, %v6005
      %v6048 = vmul.f32 %v5440, %v6005
      %v6049 = vmul.f32 %v5441, %v6005
      %v6050 = vmul.f32 %v5442, %v6005
      %v6051 = vmul.f32 %v5443, %v6005
      %v6052 = vmul.f32 %v5444, %v6005
      %v6053 = vmul.f32 %v5445, %v6005
      %v6102 = vrot.slane %v6006, 3
      %v6103 = vrot.slane %v6007, 3
      %v6104 = vsel %vm1720, %v6102, %v6103
      %v6105 = vrot.slane %v6008, 3
      %v6106 = vsel %vm1720, %v6103, %v6105
      %v6107 = vrot.slane %v6009, 3
      %v6108 = vrot.slane %v6010, 3
      %v6109 = vsel %vm1720, %v6107, %v6108
      %v6110 = vrot.slane %v6011, 3
      %v6111 = vsel %vm1720, %v6108, %v6110
      %v6112 = vrot.slane %v6012, 3
      %v6113 = vrot.slane %v6013, 3
      %v6114 = vsel %vm1720, %v6112, %v6113
      %v6115 = vrot.slane %v6014, 3
      %v6116 = vsel %vm1720, %v6113, %v6115
      %v6117 = vrot.slane %v6015, 3
      %v6118 = vrot.slane %v6016, 3
      %v6119 = vsel %vm1720, %v6117, %v6118
      %v6120 = vrot.slane %v6017, 3
      %v6121 = vsel %vm1720, %v6118, %v6120
      %v6122 = vrot.slane %v6018, 3
      %v6123 = vrot.slane %v6019, 3
      %v6124 = vsel %vm1720, %v6122, %v6123
      %v6125 = vrot.slane %v6020, 3
      %v6126 = vsel %vm1720, %v6123, %v6125
      %v6127 = vrot.slane %v6021, 3
      %v6128 = vrot.slane %v6022, 3
      %v6129 = vsel %vm1720, %v6127, %v6128
      %v6130 = vrot.slane %v6023, 3
      %v6131 = vsel %vm1720, %v6128, %v6130
      %v6132 = vrot.slane %v6024, 3
      %v6133 = vrot.slane %v6025, 3
      %v6134 = vsel %vm1720, %v6132, %v6133
      %v6135 = vrot.slane %v6026, 3
      %v6136 = vsel %vm1720, %v6133, %v6135
      %v6137 = vrot.slane %v6027, 3
      %v6138 = vrot.slane %v6028, 3
      %v6139 = vsel %vm1720, %v6137, %v6138
      %v6140 = vrot.slane %v6029, 3
      %v6141 = vsel %vm1720, %v6138, %v6140
      %v6142 = vrot.slane %v6030, 3
      %v6143 = vrot.slane %v6031, 3
      %v6144 = vsel %vm1720, %v6142, %v6143
      %v6145 = vrot.slane %v6032, 3
      %v6146 = vsel %vm1720, %v6143, %v6145
      %v6147 = vrot.slane %v6033, 3
      %v6148 = vrot.slane %v6034, 3
      %v6149 = vsel %vm1720, %v6147, %v6148
      %v6150 = vrot.slane %v6035, 3
      %v6151 = vsel %vm1720, %v6148, %v6150
      %v6152 = vrot.slane %v6036, 3
      %v6153 = vrot.slane %v6037, 3
      %v6154 = vsel %vm1720, %v6152, %v6153
      %v6155 = vrot.slane %v6038, 3
      %v6156 = vsel %vm1720, %v6153, %v6155
      %v6157 = vrot.slane %v6039, 3
      %v6158 = vrot.slane %v6040, 3
      %v6159 = vsel %vm1720, %v6157, %v6158
      %v6160 = vrot.slane %v6041, 3
      %v6161 = vsel %vm1720, %v6158, %v6160
      %v6162 = vrot.slane %v6042, 3
      %v6163 = vrot.slane %v6043, 3
      %v6164 = vsel %vm1720, %v6162, %v6163
      %v6165 = vrot.slane %v6044, 3
      %v6166 = vsel %vm1720, %v6163, %v6165
      %v6167 = vrot.slane %v6045, 3
      %v6168 = vrot.slane %v6046, 3
      %v6169 = vsel %vm1720, %v6167, %v6168
      %v6170 = vrot.slane %v6047, 3
      %v6171 = vsel %vm1720, %v6168, %v6170
      %v6172 = vrot.slane %v6048, 3
      %v6173 = vrot.slane %v6049, 3
      %v6174 = vsel %vm1720, %v6172, %v6173
      %v6175 = vrot.slane %v6050, 3
      %v6176 = vsel %vm1720, %v6173, %v6175
      %v6177 = vrot.slane %v6051, 3
      %v6178 = vrot.slane %v6052, 3
      %v6179 = vsel %vm1720, %v6177, %v6178
      %v6180 = vrot.slane %v6053, 3
      %v6181 = vsel %vm1720, %v6178, %v6180
      %v6214 = vadd.f32 %v5970, %v6104
      %v6215 = vadd.f32 %v5971, %v6106
      %v6216 = vadd.f32 %v5972, %v6109
      %v6217 = vadd.f32 %v5973, %v6111
      %v6218 = vadd.f32 %v5974, %v6114
      %v6219 = vadd.f32 %v5975, %v6116
      %v6220 = vadd.f32 %v5976, %v6119
      %v6221 = vadd.f32 %v5977, %v6121
      %v6222 = vadd.f32 %v5978, %v6124
      %v6223 = vadd.f32 %v5979, %v6126
      %v6224 = vadd.f32 %v5980, %v6129
      %v6225 = vadd.f32 %v5981, %v6131
      %v6226 = vadd.f32 %v5982, %v6134
      %v6227 = vadd.f32 %v5983, %v6136
      %v6228 = vadd.f32 %v5984, %v6139
      %v6229 = vadd.f32 %v5985, %v6141
      %v6230 = vadd.f32 %v5986, %v6144
      %v6231 = vadd.f32 %v5987, %v6146
      %v6232 = vadd.f32 %v5988, %v6149
      %v6233 = vadd.f32 %v5989, %v6151
      %v6234 = vadd.f32 %v5990, %v6154
      %v6235 = vadd.f32 %v5991, %v6156
      %v6236 = vadd.f32 %v5992, %v6159
      %v6237 = vadd.f32 %v5993, %v6161
      %v6238 = vadd.f32 %v5994, %v6164
      %v6239 = vadd.f32 %v5995, %v6166
      %v6240 = vadd.f32 %v5996, %v6169
      %v6241 = vadd.f32 %v5997, %v6171
      %v6242 = vadd.f32 %v5998, %v6174
      %v6243 = vadd.f32 %v5999, %v6176
      %v6244 = vadd.f32 %v6000, %v6179
      %v6245 = vadd.f32 %v6001, %v6181
      %v6246 = vlaneseq
      %v6247 = vshrl.u32 %v6246, 7
      %v6248 = vsub.s32 0, %v6247
      %v6249 = vrot.slane %v1010, %v6248
      %v6250 = vmul.f32 %v5398, %v6249
      %v6251 = vmul.f32 %v5399, %v6249
      %v6252 = vmul.f32 %v5400, %v6249
      %v6253 = vmul.f32 %v5401, %v6249
      %v6254 = vmul.f32 %v5402, %v6249
      %v6255 = vmul.f32 %v5403, %v6249
      %v6256 = vmul.f32 %v5404, %v6249
      %v6257 = vmul.f32 %v5405, %v6249
      %v6258 = vmul.f32 %v5406, %v6249
      %v6259 = vmul.f32 %v5407, %v6249
      %v6260 = vmul.f32 %v5408, %v6249
      %v6261 = vmul.f32 %v5409, %v6249
      %v6262 = vmul.f32 %v5410, %v6249
      %v6263 = vmul.f32 %v5411, %v6249
      %v6264 = vmul.f32 %v5412, %v6249
      %v6265 = vmul.f32 %v5413, %v6249
      %v6266 = vmul.f32 %v5414, %v6249
      %v6267 = vmul.f32 %v5415, %v6249
      %v6268 = vmul.f32 %v5416, %v6249
      %v6269 = vmul.f32 %v5417, %v6249
      %v6270 = vmul.f32 %v5418, %v6249
      %v6271 = vmul.f32 %v5419, %v6249
      %v6272 = vmul.f32 %v5420, %v6249
      %v6273 = vmul.f32 %v5421, %v6249
      %v6274 = vmul.f32 %v5422, %v6249
      %v6275 = vmul.f32 %v5423, %v6249
      %v6276 = vmul.f32 %v5424, %v6249
      %v6277 = vmul.f32 %v5425, %v6249
      %v6278 = vmul.f32 %v5426, %v6249
      %v6279 = vmul.f32 %v5427, %v6249
      %v6280 = vmul.f32 %v5428, %v6249
      %v6281 = vmul.f32 %v5429, %v6249
      %v6282 = vmul.f32 %v5430, %v6249
      %v6283 = vmul.f32 %v5431, %v6249
      %v6284 = vmul.f32 %v5432, %v6249
      %v6285 = vmul.f32 %v5433, %v6249
      %v6286 = vmul.f32 %v5434, %v6249
      %v6287 = vmul.f32 %v5435, %v6249
      %v6288 = vmul.f32 %v5436, %v6249
      %v6289 = vmul.f32 %v5437, %v6249
      %v6290 = vmul.f32 %v5438, %v6249
      %v6291 = vmul.f32 %v5439, %v6249
      %v6292 = vmul.f32 %v5440, %v6249
      %v6293 = vmul.f32 %v5441, %v6249
      %v6294 = vmul.f32 %v5442, %v6249
      %v6295 = vmul.f32 %v5443, %v6249
      %v6296 = vmul.f32 %v5444, %v6249
      %v6297 = vmul.f32 %v5445, %v6249
      %v6346 = vrot.slane %v6250, 4
      %v6347 = vrot.slane %v6251, 4
      %v6348 = vsel %vm1965, %v6346, %v6347
      %v6349 = vrot.slane %v6252, 4
      %v6350 = vsel %vm1965, %v6347, %v6349
      %v6351 = vrot.slane %v6253, 4
      %v6352 = vrot.slane %v6254, 4
      %v6353 = vsel %vm1965, %v6351, %v6352
      %v6354 = vrot.slane %v6255, 4
      %v6355 = vsel %vm1965, %v6352, %v6354
      %v6356 = vrot.slane %v6256, 4
      %v6357 = vrot.slane %v6257, 4
      %v6358 = vsel %vm1965, %v6356, %v6357
      %v6359 = vrot.slane %v6258, 4
      %v6360 = vsel %vm1965, %v6357, %v6359
      %v6361 = vrot.slane %v6259, 4
      %v6362 = vrot.slane %v6260, 4
      %v6363 = vsel %vm1965, %v6361, %v6362
      %v6364 = vrot.slane %v6261, 4
      %v6365 = vsel %vm1965, %v6362, %v6364
      %v6366 = vrot.slane %v6262, 4
      %v6367 = vrot.slane %v6263, 4
      %v6368 = vsel %vm1965, %v6366, %v6367
      %v6369 = vrot.slane %v6264, 4
      %v6370 = vsel %vm1965, %v6367, %v6369
      %v6371 = vrot.slane %v6265, 4
      %v6372 = vrot.slane %v6266, 4
      %v6373 = vsel %vm1965, %v6371, %v6372
      %v6374 = vrot.slane %v6267, 4
      %v6375 = vsel %vm1965, %v6372, %v6374
      %v6376 = vrot.slane %v6268, 4
      %v6377 = vrot.slane %v6269, 4
      %v6378 = vsel %vm1965, %v6376, %v6377
      %v6379 = vrot.slane %v6270, 4
      %v6380 = vsel %vm1965, %v6377, %v6379
      %v6381 = vrot.slane %v6271, 4
      %v6382 = vrot.slane %v6272, 4
      %v6383 = vsel %vm1965, %v6381, %v6382
      %v6384 = vrot.slane %v6273, 4
      %v6385 = vsel %vm1965, %v6382, %v6384
      %v6386 = vrot.slane %v6274, 4
      %v6387 = vrot.slane %v6275, 4
      %v6388 = vsel %vm1965, %v6386, %v6387
      %v6389 = vrot.slane %v6276, 4
      %v6390 = vsel %vm1965, %v6387, %v6389
      %v6391 = vrot.slane %v6277, 4
      %v6392 = vrot.slane %v6278, 4
      %v6393 = vsel %vm1965, %v6391, %v6392
      %v6394 = vrot.slane %v6279, 4
      %v6395 = vsel %vm1965, %v6392, %v6394
      %v6396 = vrot.slane %v6280, 4
      %v6397 = vrot.slane %v6281, 4
      %v6398 = vsel %vm1965, %v6396, %v6397
      %v6399 = vrot.slane %v6282, 4
      %v6400 = vsel %vm1965, %v6397, %v6399
      %v6401 = vrot.slane %v6283, 4
      %v6402 = vrot.slane %v6284, 4
      %v6403 = vsel %vm1965, %v6401, %v6402
      %v6404 = vrot.slane %v6285, 4
      %v6405 = vsel %vm1965, %v6402, %v6404
      %v6406 = vrot.slane %v6286, 4
      %v6407 = vrot.slane %v6287, 4
      %v6408 = vsel %vm1965, %v6406, %v6407
      %v6409 = vrot.slane %v6288, 4
      %v6410 = vsel %vm1965, %v6407, %v6409
      %v6411 = vrot.slane %v6289, 4
      %v6412 = vrot.slane %v6290, 4
      %v6413 = vsel %vm1965, %v6411, %v6412
      %v6414 = vrot.slane %v6291, 4
      %v6415 = vsel %vm1965, %v6412, %v6414
      %v6416 = vrot.slane %v6292, 4
      %v6417 = vrot.slane %v6293, 4
      %v6418 = vsel %vm1965, %v6416, %v6417
      %v6419 = vrot.slane %v6294, 4
      %v6420 = vsel %vm1965, %v6417, %v6419
      %v6421 = vrot.slane %v6295, 4
      %v6422 = vrot.slane %v6296, 4
      %v6423 = vsel %vm1965, %v6421, %v6422
      %v6424 = vrot.slane %v6297, 4
      %v6425 = vsel %vm1965, %v6422, %v6424
      %v6458 = vadd.f32 %v6214, %v6348
      %v6459 = vadd.f32 %v6215, %v6350
      %v6460 = vadd.f32 %v6216, %v6353
      %v6461 = vadd.f32 %v6217, %v6355
      %v6462 = vadd.f32 %v6218, %v6358
      %v6463 = vadd.f32 %v6219, %v6360
      %v6464 = vadd.f32 %v6220, %v6363
      %v6465 = vadd.f32 %v6221, %v6365
      %v6466 = vadd.f32 %v6222, %v6368
      %v6467 = vadd.f32 %v6223, %v6370
      %v6468 = vadd.f32 %v6224, %v6373
      %v6469 = vadd.f32 %v6225, %v6375
      %v6470 = vadd.f32 %v6226, %v6378
      %v6471 = vadd.f32 %v6227, %v6380
      %v6472 = vadd.f32 %v6228, %v6383
      %v6473 = vadd.f32 %v6229, %v6385
      %v6474 = vadd.f32 %v6230, %v6388
      %v6475 = vadd.f32 %v6231, %v6390
      %v6476 = vadd.f32 %v6232, %v6393
      %v6477 = vadd.f32 %v6233, %v6395
      %v6478 = vadd.f32 %v6234, %v6398
      %v6479 = vadd.f32 %v6235, %v6400
      %v6480 = vadd.f32 %v6236, %v6403
      %v6481 = vadd.f32 %v6237, %v6405
      %v6482 = vadd.f32 %v6238, %v6408
      %v6483 = vadd.f32 %v6239, %v6410
      %v6484 = vadd.f32 %v6240, %v6413
      %v6485 = vadd.f32 %v6241, %v6415
      %v6486 = vadd.f32 %v6242, %v6418
      %v6487 = vadd.f32 %v6243, %v6420
      %v6488 = vadd.f32 %v6244, %v6423
      %v6489 = vadd.f32 %v6245, %v6425
      %v6491 = vlaneseq
      %v6492 = vshrl.u32 %v6491, 7
      %v6493 = vsub.s32 0, %v6492
      %v6494 = vrot.slane %v1011, %v6493
      %v6496 = vadd.f32 %v6458, %v6494
      %v6497 = vadd.f32 %v6459, %v6494
      %v6498 = vadd.f32 %v6460, %v6494
      %v6499 = vadd.f32 %v6461, %v6494
      %v6500 = vadd.f32 %v6462, %v6494
      %v6501 = vadd.f32 %v6463, %v6494
      %v6502 = vadd.f32 %v6464, %v6494
      %v6503 = vadd.f32 %v6465, %v6494
      %v6504 = vadd.f32 %v6466, %v6494
      %v6505 = vadd.f32 %v6467, %v6494
      %v6506 = vadd.f32 %v6468, %v6494
      %v6507 = vadd.f32 %v6469, %v6494
      %v6508 = vadd.f32 %v6470, %v6494
      %v6509 = vadd.f32 %v6471, %v6494
      %v6510 = vadd.f32 %v6472, %v6494
      %v6511 = vadd.f32 %v6473, %v6494
      %v6512 = vadd.f32 %v6474, %v6494
      %v6513 = vadd.f32 %v6475, %v6494
      %v6514 = vadd.f32 %v6476, %v6494
      %v6515 = vadd.f32 %v6477, %v6494
      %v6516 = vadd.f32 %v6478, %v6494
      %v6517 = vadd.f32 %v6479, %v6494
      %v6518 = vadd.f32 %v6480, %v6494
      %v6519 = vadd.f32 %v6481, %v6494
      %v6520 = vadd.f32 %v6482, %v6494
      %v6521 = vadd.f32 %v6483, %v6494
      %v6522 = vadd.f32 %v6484, %v6494
      %v6523 = vadd.f32 %v6485, %v6494
      %v6524 = vadd.f32 %v6486, %v6494
      %v6525 = vadd.f32 %v6487, %v6494
      %v6526 = vadd.f32 %v6488, %v6494
      %v6527 = vadd.f32 %v6489, %v6494
      %v6528 = vsub.f32 0.0, %v6496
      %v6529 = vsub.f32 0.0, %v6497
      %v6530 = vsub.f32 0.0, %v6498
      %v6531 = vsub.f32 0.0, %v6499
      %v6532 = vsub.f32 0.0, %v6500
      %v6533 = vsub.f32 0.0, %v6501
      %v6534 = vsub.f32 0.0, %v6502
      %v6535 = vsub.f32 0.0, %v6503
      %v6536 = vsub.f32 0.0, %v6504
      %v6537 = vsub.f32 0.0, %v6505
      %v6538 = vsub.f32 0.0, %v6506
      %v6539 = vsub.f32 0.0, %v6507
      %v6540 = vsub.f32 0.0, %v6508
      %v6541 = vsub.f32 0.0, %v6509
      %v6542 = vsub.f32 0.0, %v6510
      %v6543 = vsub.f32 0.0, %v6511
      %v6544 = vsub.f32 0.0, %v6512
      %v6545 = vsub.f32 0.0, %v6513
      %v6546 = vsub.f32 0.0, %v6514
      %v6547 = vsub.f32 0.0, %v6515
      %v6548 = vsub.f32 0.0, %v6516
      %v6549 = vsub.f32 0.0, %v6517
      %v6550 = vsub.f32 0.0, %v6518
      %v6551 = vsub.f32 0.0, %v6519
      %v6552 = vsub.f32 0.0, %v6520
      %v6553 = vsub.f32 0.0, %v6521
      %v6554 = vsub.f32 0.0, %v6522
      %v6555 = vsub.f32 0.0, %v6523
      %v6556 = vsub.f32 0.0, %v6524
      %v6557 = vsub.f32 0.0, %v6525
      %v6558 = vsub.f32 0.0, %v6526
      %v6559 = vsub.f32 0.0, %v6527
      %v6560 = vmul.f32 %v6528, 1.442695
      %v6561 = vpow.pop %v6560
      %v6562 = vmul.f32 %v6529, 1.442695
      %v6563 = vpow.pop %v6562
      %v6564 = vmul.f32 %v6530, 1.442695
      %v6565 = vpow.pop %v6564
      %v6566 = vmul.f32 %v6531, 1.442695
      %v6567 = vpow.pop %v6566
      %v6568 = vmul.f32 %v6532, 1.442695
      %v6569 = vpow.pop %v6568
      %v6570 = vmul.f32 %v6533, 1.442695
      %v6571 = vpow.pop %v6570
      %v6572 = vmul.f32 %v6534, 1.442695
      %v6573 = vpow.pop %v6572
      %v6574 = vmul.f32 %v6535, 1.442695
      %v6575 = vpow.pop %v6574
      %v6576 = vmul.f32 %v6536, 1.442695
      %v6577 = vpow.pop %v6576
      %v6578 = vmul.f32 %v6537, 1.442695
      %v6579 = vpow.pop %v6578
      %v6580 = vmul.f32 %v6538, 1.442695
      %v6581 = vpow.pop %v6580
      %v6582 = vmul.f32 %v6539, 1.442695
      %v6583 = vpow.pop %v6582
      %v6584 = vmul.f32 %v6540, 1.442695
      %v6585 = vpow.pop %v6584
      %v6586 = vmul.f32 %v6541, 1.442695
      %v6587 = vpow.pop %v6586
      %v6588 = vmul.f32 %v6542, 1.442695
      %v6589 = vpow.pop %v6588
      %v6590 = vmul.f32 %v6543, 1.442695
      %v6591 = vpow.pop %v6590
      %v6592 = vmul.f32 %v6544, 1.442695
      %v6593 = vpow.pop %v6592
      %v6594 = vmul.f32 %v6545, 1.442695
      %v6595 = vpow.pop %v6594
      %v6596 = vmul.f32 %v6546, 1.442695
      %v6597 = vpow.pop %v6596
      %v6598 = vmul.f32 %v6547, 1.442695
      %v6599 = vpow.pop %v6598
      %v6600 = vmul.f32 %v6548, 1.442695
      %v6601 = vpow.pop %v6600
      %v6602 = vmul.f32 %v6549, 1.442695
      %v6603 = vpow.pop %v6602
      %v6604 = vmul.f32 %v6550, 1.442695
      %v6605 = vpow.pop %v6604
      %v6606 = vmul.f32 %v6551, 1.442695
      %v6607 = vpow.pop %v6606
      %v6608 = vmul.f32 %v6552, 1.442695
      %v6609 = vpow.pop %v6608
      %v6610 = vmul.f32 %v6553, 1.442695
      %v6611 = vpow.pop %v6610
      %v6612 = vmul.f32 %v6554, 1.442695
      %v6613 = vpow.pop %v6612
      %v6614 = vmul.f32 %v6555, 1.442695
      %v6615 = vpow.pop %v6614
      %v6616 = vmul.f32 %v6556, 1.442695
      %v6617 = vpow.pop %v6616
      %v6618 = vmul.f32 %v6557, 1.442695
      %v6619 = vpow.pop %v6618
      %v6620 = vmul.f32 %v6558, 1.442695
      %v6621 = vpow.pop %v6620
      %v6622 = vmul.f32 %v6559, 1.442695
      %v6623 = vpow.pop %v6622
      %v6624 = vadd.f32 %v6561, 1.0
      %v6625 = vadd.f32 %v6563, 1.0
      %v6626 = vadd.f32 %v6565, 1.0
      %v6627 = vadd.f32 %v6567, 1.0
      %v6628 = vadd.f32 %v6569, 1.0
      %v6629 = vadd.f32 %v6571, 1.0
      %v6630 = vadd.f32 %v6573, 1.0
      %v6631 = vadd.f32 %v6575, 1.0
      %v6632 = vadd.f32 %v6577, 1.0
      %v6633 = vadd.f32 %v6579, 1.0
      %v6634 = vadd.f32 %v6581, 1.0
      %v6635 = vadd.f32 %v6583, 1.0
      %v6636 = vadd.f32 %v6585, 1.0
      %v6637 = vadd.f32 %v6587, 1.0
      %v6638 = vadd.f32 %v6589, 1.0
      %v6639 = vadd.f32 %v6591, 1.0
      %v6640 = vadd.f32 %v6593, 1.0
      %v6641 = vadd.f32 %v6595, 1.0
      %v6642 = vadd.f32 %v6597, 1.0
      %v6643 = vadd.f32 %v6599, 1.0
      %v6644 = vadd.f32 %v6601, 1.0
      %v6645 = vadd.f32 %v6603, 1.0
      %v6646 = vadd.f32 %v6605, 1.0
      %v6647 = vadd.f32 %v6607, 1.0
      %v6648 = vadd.f32 %v6609, 1.0
      %v6649 = vadd.f32 %v6611, 1.0
      %v6650 = vadd.f32 %v6613, 1.0
      %v6651 = vadd.f32 %v6615, 1.0
      %v6652 = vadd.f32 %v6617, 1.0
      %v6653 = vadd.f32 %v6619, 1.0
      %v6654 = vadd.f32 %v6621, 1.0
      %v6655 = vadd.f32 %v6623, 1.0
      %v6656 = vrcp.pop %v6624
      %v6657 = vrcp.pop %v6625
      %v6658 = vrcp.pop %v6626
      %v6659 = vrcp.pop %v6627
      %v6660 = vrcp.pop %v6628
      %v6661 = vrcp.pop %v6629
      %v6662 = vrcp.pop %v6630
      %v6663 = vrcp.pop %v6631
      %v6664 = vrcp.pop %v6632
      %v6665 = vrcp.pop %v6633
      %v6666 = vrcp.pop %v6634
      %v6667 = vrcp.pop %v6635
      %v6668 = vrcp.pop %v6636
      %v6669 = vrcp.pop %v6637
      %v6670 = vrcp.pop %v6638
      %v6671 = vrcp.pop %v6639
      %v6672 = vrcp.pop %v6640
      %v6673 = vrcp.pop %v6641
      %v6674 = vrcp.pop %v6642
      %v6675 = vrcp.pop %v6643
      %v6676 = vrcp.pop %v6644
      %v6677 = vrcp.pop %v6645
      %v6678 = vrcp.pop %v6646
      %v6679 = vrcp.pop %v6647
      %v6680 = vrcp.pop %v6648
      %v6681 = vrcp.pop %v6649
      %v6682 = vrcp.pop %v6650
      %v6683 = vrcp.pop %v6651
      %v6684 = vrcp.pop %v6652
      %v6685 = vrcp.pop %v6653
      %v6686 = vrcp.pop %v6654
      %v6687 = vrcp.pop %v6655
      %v6688 = vmul.f32 %v6496, %v6656
      %v6689 = vmul.f32 %v6497, %v6657
      %v6690 = vmul.f32 %v6498, %v6658
      %v6691 = vmul.f32 %v6499, %v6659
      %v6692 = vmul.f32 %v6500, %v6660
      %v6693 = vmul.f32 %v6501, %v6661
      %v6694 = vmul.f32 %v6502, %v6662
      %v6695 = vmul.f32 %v6503, %v6663
      %v6696 = vmul.f32 %v6504, %v6664
      %v6697 = vmul.f32 %v6505, %v6665
      %v6698 = vmul.f32 %v6506, %v6666
      %v6699 = vmul.f32 %v6507, %v6667
      %v6700 = vmul.f32 %v6508, %v6668
      %v6701 = vmul.f32 %v6509, %v6669
      %v6702 = vmul.f32 %v6510, %v6670
      %v6703 = vmul.f32 %v6511, %v6671
      %v6704 = vmul.f32 %v6512, %v6672
      %v6705 = vmul.f32 %v6513, %v6673
      %v6706 = vmul.f32 %v6514, %v6674
      %v6707 = vmul.f32 %v6515, %v6675
      %v6708 = vmul.f32 %v6516, %v6676
      %v6709 = vmul.f32 %v6517, %v6677
      %v6710 = vmul.f32 %v6518, %v6678
      %v6711 = vmul.f32 %v6519, %v6679
      %v6712 = vmul.f32 %v6520, %v6680
      %v6713 = vmul.f32 %v6521, %v6681
      %v6714 = vmul.f32 %v6522, %v6682
      %v6715 = vmul.f32 %v6523, %v6683
      %v6716 = vmul.f32 %v6524, %v6684
      %v6717 = vmul.f32 %v6525, %v6685
      %v6718 = vmul.f32 %v6526, %v6686
      %v6719 = vmul.f32 %v6527, %v6687
      %v6720 = vld [vmem:[%s3207 + $0x2] sm:$0xff]
      %v6721 = vld [vmem:[%s3207 + $0xa] sm:$0xff]
      %v6722 = vld [vmem:[%s3207 + $0x1a] sm:$0xff]
      %v6723 = vld [vmem:[%s3207 + $0x22] sm:$0xff]
      %v6724 = vld [vmem:[%s3207 + $0x32] sm:$0xff]
      %v6725 = vld [vmem:[%s3207 + $0x3a] sm:$0xff]
      %v6726 = vld [vmem:[%s3207 + $0x4a] sm:$0xff]
      %v6727 = vld [vmem:[%s3207 + $0x52] sm:$0xff]
      %v6728 = vld [vmem:[%s3207 + $0x62] sm:$0xff]
      %v6729 = vld [vmem:[%s3207 + $0x6a] sm:$0xff]
      %v6730 = vld [vmem:[%s3207 + $0x7a] sm:$0xff]
      %v6731 = vld [vmem:[%s3207 + $0x82] sm:$0xff]
      %v6732 = vld [vmem:[%s3207 + $0x92] sm:$0xff]
      %v6733 = vld [vmem:[%s3207 + $0x9a] sm:$0xff]
      %v6734 = vld [vmem:[%s3207 + $0xaa] sm:$0xff]
      %v6735 = vld [vmem:[%s3207 + $0xb2] sm:$0xff]
      %v6736 = vld [vmem:[%s3207 + $0xc2] sm:$0xff]
      %v6737 = vld [vmem:[%s3207 + $0xca] sm:$0xff]
      %v6738 = vld [vmem:[%s3207 + $0xda] sm:$0xff]
      %v6739 = vld [vmem:[%s3207 + $0xe2] sm:$0xff]
      %v6740 = vld [vmem:[%s3207 + $0xf2] sm:$0xff]
      %v6741 = vld [vmem:[%s3207 + $0xfa] sm:$0xff]
      %v6742 = vld [vmem:[%s3207 + $0x10a] sm:$0xff]
      %v6743 = vld [vmem:[%s3207 + $0x112] sm:$0xff]
      %v6744 = vld [vmem:[%s3207 + $0x122] sm:$0xff]
      %v6745 = vld [vmem:[%s3207 + $0x12a] sm:$0xff]
      %v6746 = vld [vmem:[%s3207 + $0x13a] sm:$0xff]
      %v6747 = vld [vmem:[%s3207 + $0x142] sm:$0xff]
      %v6748 = vld [vmem:[%s3207 + $0x152] sm:$0xff]
      %v6749 = vld [vmem:[%s3207 + $0x15a] sm:$0xff]
      %v6750 = vld [vmem:[%s3207 + $0x16a] sm:$0xff]
      %v6751 = vld [vmem:[%s3207 + $0x172] sm:$0xff]
      %6784 = vrot.lane.b32.xlu0 %v6688, 4
      %v6785 = vpop.permute.xlu0 %6784
      %6786 = vrot.lane.b32.xlu0 %v6689, 4
      %v6787 = vpop.permute.xlu0 %6786
      %6788 = vrot.lane.b32.xlu0 %v6690, 4
      %v6789 = vpop.permute.xlu0 %6788
      %6790 = vrot.lane.b32.xlu0 %v6691, 4
      %v6791 = vpop.permute.xlu0 %6790
      %6792 = vrot.lane.b32.xlu0 %v6692, 4
      %v6793 = vpop.permute.xlu0 %6792
      %6794 = vrot.lane.b32.xlu0 %v6693, 4
      %v6795 = vpop.permute.xlu0 %6794
      %6796 = vrot.lane.b32.xlu0 %v6694, 4
      %v6797 = vpop.permute.xlu0 %6796
      %6798 = vrot.lane.b32.xlu0 %v6695, 4
      %v6799 = vpop.permute.xlu0 %6798
      %6800 = vrot.lane.b32.xlu0 %v6696, 4
      %v6801 = vpop.permute.xlu0 %6800
      %6802 = vrot.lane.b32.xlu0 %v6697, 4
      %v6803 = vpop.permute.xlu0 %6802
      %6804 = vrot.lane.b32.xlu0 %v6698, 4
      %v6805 = vpop.permute.xlu0 %6804
      %6806 = vrot.lane.b32.xlu0 %v6699, 4
      %v6807 = vpop.permute.xlu0 %6806
      %6808 = vrot.lane.b32.xlu0 %v6700, 4
      %v6809 = vpop.permute.xlu0 %6808
      %6810 = vrot.lane.b32.xlu0 %v6701, 4
      %v6811 = vpop.permute.xlu0 %6810
      %6812 = vrot.lane.b32.xlu0 %v6702, 4
      %v6813 = vpop.permute.xlu0 %6812
      %6814 = vrot.lane.b32.xlu0 %v6703, 4
      %v6815 = vpop.permute.xlu0 %6814
      %6816 = vrot.lane.b32.xlu0 %v6704, 4
      %v6817 = vpop.permute.xlu0 %6816
      %6818 = vrot.lane.b32.xlu0 %v6705, 4
      %v6819 = vpop.permute.xlu0 %6818
      %6820 = vrot.lane.b32.xlu0 %v6706, 4
      %v6821 = vpop.permute.xlu0 %6820
      %6822 = vrot.lane.b32.xlu0 %v6707, 4
      %v6823 = vpop.permute.xlu0 %6822
      %6824 = vrot.lane.b32.xlu0 %v6708, 4
      %v6825 = vpop.permute.xlu0 %6824
      %6826 = vrot.lane.b32.xlu0 %v6709, 4
      %v6827 = vpop.permute.xlu0 %6826
      %6828 = vrot.lane.b32.xlu0 %v6710, 4
      %v6829 = vpop.permute.xlu0 %6828
      %6830 = vrot.lane.b32.xlu0 %v6711, 4
      %v6831 = vpop.permute.xlu0 %6830
      %6832 = vrot.lane.b32.xlu0 %v6712, 4
      %v6833 = vpop.permute.xlu0 %6832
      %6834 = vrot.lane.b32.xlu0 %v6713, 4
      %v6835 = vpop.permute.xlu0 %6834
      %6836 = vrot.lane.b32.xlu0 %v6714, 4
      %v6837 = vpop.permute.xlu0 %6836
      %6838 = vrot.lane.b32.xlu0 %v6715, 4
      %v6839 = vpop.permute.xlu0 %6838
      %6840 = vrot.lane.b32.xlu0 %v6716, 4
      %v6841 = vpop.permute.xlu0 %6840
      %6842 = vrot.lane.b32.xlu0 %v6717, 4
      %v6843 = vpop.permute.xlu0 %6842
      %6844 = vrot.lane.b32.xlu0 %v6718, 4
      %v6845 = vpop.permute.xlu0 %6844
      %6846 = vrot.lane.b32.xlu0 %v6719, 4
      %v6847 = vpop.permute.xlu0 %6846
      %6912 = vrot.lane.b32.xlu0 %v6720, 4
      %v6913 = vpop.permute.xlu0 %6912
      %6914 = vrot.lane.b32.xlu0 %v6721, 4
      %v6915 = vpop.permute.xlu0 %6914
      %6916 = vrot.lane.b32.xlu0 %v6722, 4
      %v6917 = vpop.permute.xlu0 %6916
      %6918 = vrot.lane.b32.xlu0 %v6723, 4
      %v6919 = vpop.permute.xlu0 %6918
      %6920 = vrot.lane.b32.xlu0 %v6724, 4
      %v6921 = vpop.permute.xlu0 %6920
      %6922 = vrot.lane.b32.xlu0 %v6725, 4
      %v6923 = vpop.permute.xlu0 %6922
      %6924 = vrot.lane.b32.xlu0 %v6726, 4
      %v6925 = vpop.permute.xlu0 %6924
      %6926 = vrot.lane.b32.xlu0 %v6727, 4
      %v6927 = vpop.permute.xlu0 %6926
      %6928 = vrot.lane.b32.xlu0 %v6728, 4
      %v6929 = vpop.permute.xlu0 %6928
      %6930 = vrot.lane.b32.xlu0 %v6729, 4
      %v6931 = vpop.permute.xlu0 %6930
      %6932 = vrot.lane.b32.xlu0 %v6730, 4
      %v6933 = vpop.permute.xlu0 %6932
      %6934 = vrot.lane.b32.xlu0 %v6731, 4
      %v6935 = vpop.permute.xlu0 %6934
      %6936 = vrot.lane.b32.xlu0 %v6732, 4
      %v6937 = vpop.permute.xlu0 %6936
      %6938 = vrot.lane.b32.xlu0 %v6733, 4
      %v6939 = vpop.permute.xlu0 %6938
      %6940 = vrot.lane.b32.xlu0 %v6734, 4
      %v6941 = vpop.permute.xlu0 %6940
      %6942 = vrot.lane.b32.xlu0 %v6735, 4
      %v6943 = vpop.permute.xlu0 %6942
      %6944 = vrot.lane.b32.xlu0 %v6736, 4
      %v6945 = vpop.permute.xlu0 %6944
      %6946 = vrot.lane.b32.xlu0 %v6737, 4
      %v6947 = vpop.permute.xlu0 %6946
      %6948 = vrot.lane.b32.xlu0 %v6738, 4
      %v6949 = vpop.permute.xlu0 %6948
      %6950 = vrot.lane.b32.xlu0 %v6739, 4
      %v6951 = vpop.permute.xlu0 %6950
      %6952 = vrot.lane.b32.xlu0 %v6740, 4
      %v6953 = vpop.permute.xlu0 %6952
      %6954 = vrot.lane.b32.xlu0 %v6741, 4
      %v6955 = vpop.permute.xlu0 %6954
      %6956 = vrot.lane.b32.xlu0 %v6742, 4
      %v6957 = vpop.permute.xlu0 %6956
      %6958 = vrot.lane.b32.xlu0 %v6743, 4
      %v6959 = vpop.permute.xlu0 %6958
      %6960 = vrot.lane.b32.xlu0 %v6744, 4
      %v6961 = vpop.permute.xlu0 %6960
      %6962 = vrot.lane.b32.xlu0 %v6745, 4
      %v6963 = vpop.permute.xlu0 %6962
      %6964 = vrot.lane.b32.xlu0 %v6746, 4
      %v6965 = vpop.permute.xlu0 %6964
      %6966 = vrot.lane.b32.xlu0 %v6747, 4
      %v6967 = vpop.permute.xlu0 %6966
      %6968 = vrot.lane.b32.xlu0 %v6748, 4
      %v6969 = vpop.permute.xlu0 %6968
      %6970 = vrot.lane.b32.xlu0 %v6749, 4
      %v6971 = vpop.permute.xlu0 %6970
      %6972 = vrot.lane.b32.xlu0 %v6750, 4
      %v6973 = vpop.permute.xlu0 %6972
      %6974 = vrot.lane.b32.xlu0 %v6751, 4
      %v6975 = vpop.permute.xlu0 %6974
      %7008 = vrot.lane.b32.xlu0 %v6688, 8
      %v7009 = vpop.permute.xlu0 %7008
      %7010 = vrot.lane.b32.xlu0 %v6689, 8
      %v7011 = vpop.permute.xlu0 %7010
      %7012 = vrot.lane.b32.xlu0 %v6690, 8
      %v7013 = vpop.permute.xlu0 %7012
      %7014 = vrot.lane.b32.xlu0 %v6691, 8
      %v7015 = vpop.permute.xlu0 %7014
      %7016 = vrot.lane.b32.xlu0 %v6692, 8
      %v7017 = vpop.permute.xlu0 %7016
      %7018 = vrot.lane.b32.xlu0 %v6693, 8
      %v7019 = vpop.permute.xlu0 %7018
      %7020 = vrot.lane.b32.xlu0 %v6694, 8
      %v7021 = vpop.permute.xlu0 %7020
      %7022 = vrot.lane.b32.xlu0 %v6695, 8
      %v7023 = vpop.permute.xlu0 %7022
      %7024 = vrot.lane.b32.xlu0 %v6696, 8
      %v7025 = vpop.permute.xlu0 %7024
      %7026 = vrot.lane.b32.xlu0 %v6697, 8
      %v7027 = vpop.permute.xlu0 %7026
      %7028 = vrot.lane.b32.xlu0 %v6698, 8
      %v7029 = vpop.permute.xlu0 %7028
      %7030 = vrot.lane.b32.xlu0 %v6699, 8
      %v7031 = vpop.permute.xlu0 %7030
      %7032 = vrot.lane.b32.xlu0 %v6700, 8
      %v7033 = vpop.permute.xlu0 %7032
      %7034 = vrot.lane.b32.xlu0 %v6701, 8
      %v7035 = vpop.permute.xlu0 %7034
      %7036 = vrot.lane.b32.xlu0 %v6702, 8
      %v7037 = vpop.permute.xlu0 %7036
      %7038 = vrot.lane.b32.xlu0 %v6703, 8
      %v7039 = vpop.permute.xlu0 %7038
      %7040 = vrot.lane.b32.xlu0 %v6704, 8
      %v7041 = vpop.permute.xlu0 %7040
      %7042 = vrot.lane.b32.xlu0 %v6705, 8
      %v7043 = vpop.permute.xlu0 %7042
      %7044 = vrot.lane.b32.xlu0 %v6706, 8
      %v7045 = vpop.permute.xlu0 %7044
      %7046 = vrot.lane.b32.xlu0 %v6707, 8
      %v7047 = vpop.permute.xlu0 %7046
      %7048 = vrot.lane.b32.xlu0 %v6708, 8
      %v7049 = vpop.permute.xlu0 %7048
      %7050 = vrot.lane.b32.xlu0 %v6709, 8
      %v7051 = vpop.permute.xlu0 %7050
      %7052 = vrot.lane.b32.xlu0 %v6710, 8
      %v7053 = vpop.permute.xlu0 %7052
      %7054 = vrot.lane.b32.xlu0 %v6711, 8
      %v7055 = vpop.permute.xlu0 %7054
      %7056 = vrot.lane.b32.xlu0 %v6712, 8
      %v7057 = vpop.permute.xlu0 %7056
      %7058 = vrot.lane.b32.xlu0 %v6713, 8
      %v7059 = vpop.permute.xlu0 %7058
      %7060 = vrot.lane.b32.xlu0 %v6714, 8
      %v7061 = vpop.permute.xlu0 %7060
      %7062 = vrot.lane.b32.xlu0 %v6715, 8
      %v7063 = vpop.permute.xlu0 %7062
      %7064 = vrot.lane.b32.xlu0 %v6716, 8
      %v7065 = vpop.permute.xlu0 %7064
      %7066 = vrot.lane.b32.xlu0 %v6717, 8
      %v7067 = vpop.permute.xlu0 %7066
      %7068 = vrot.lane.b32.xlu0 %v6718, 8
      %v7069 = vpop.permute.xlu0 %7068
      %7070 = vrot.lane.b32.xlu0 %v6719, 8
      %v7071 = vpop.permute.xlu0 %7070
      %v7104 = vsel %vm413, %v6720, %v6785
      %v7105 = vsel %vm413, %v6721, %v6787
      %v7106 = vsel %vm413, %v6722, %v6789
      %v7107 = vsel %vm413, %v6723, %v6791
      %v7108 = vsel %vm413, %v6724, %v6793
      %v7109 = vsel %vm413, %v6725, %v6795
      %v7110 = vsel %vm413, %v6726, %v6797
      %v7111 = vsel %vm413, %v6727, %v6799
      %v7112 = vsel %vm413, %v6728, %v6801
      %v7113 = vsel %vm413, %v6729, %v6803
      %v7114 = vsel %vm413, %v6730, %v6805
      %v7115 = vsel %vm413, %v6731, %v6807
      %v7116 = vsel %vm413, %v6732, %v6809
      %v7117 = vsel %vm413, %v6733, %v6811
      %v7118 = vsel %vm413, %v6734, %v6813
      %v7119 = vsel %vm413, %v6735, %v6815
      %v7120 = vsel %vm413, %v6736, %v6817
      %v7121 = vsel %vm413, %v6737, %v6819
      %v7122 = vsel %vm413, %v6738, %v6821
      %v7123 = vsel %vm413, %v6739, %v6823
      %v7124 = vsel %vm413, %v6740, %v6825
      %v7125 = vsel %vm413, %v6741, %v6827
      %v7126 = vsel %vm413, %v6742, %v6829
      %v7127 = vsel %vm413, %v6743, %v6831
      %v7128 = vsel %vm413, %v6744, %v6833
      %v7129 = vsel %vm413, %v6745, %v6835
      %v7130 = vsel %vm413, %v6746, %v6837
      %v7131 = vsel %vm413, %v6747, %v6839
      %v7132 = vsel %vm413, %v6748, %v6841
      %v7133 = vsel %vm413, %v6749, %v6843
      %v7134 = vsel %vm413, %v6750, %v6845
      %v7135 = vsel %vm413, %v6751, %v6847
      %v7136 = vsel %vm953, %v7104, %v6913
      %v7137 = vsel %vm953, %v7105, %v6915
      %v7138 = vsel %vm953, %v7106, %v6917
      %v7139 = vsel %vm953, %v7107, %v6919
      %v7140 = vsel %vm953, %v7108, %v6921
      %v7141 = vsel %vm953, %v7109, %v6923
      %v7142 = vsel %vm953, %v7110, %v6925
      %v7143 = vsel %vm953, %v7111, %v6927
      %v7144 = vsel %vm953, %v7112, %v6929
      %v7145 = vsel %vm953, %v7113, %v6931
      %v7146 = vsel %vm953, %v7114, %v6933
      %v7147 = vsel %vm953, %v7115, %v6935
      %v7148 = vsel %vm953, %v7116, %v6937
      %v7149 = vsel %vm953, %v7117, %v6939
      %v7150 = vsel %vm953, %v7118, %v6941
      %v7151 = vsel %vm953, %v7119, %v6943
      %v7152 = vsel %vm953, %v7120, %v6945
      %v7153 = vsel %vm953, %v7121, %v6947
      %v7154 = vsel %vm953, %v7122, %v6949
      %v7155 = vsel %vm953, %v7123, %v6951
      %v7156 = vsel %vm953, %v7124, %v6953
      %v7157 = vsel %vm953, %v7125, %v6955
      %v7158 = vsel %vm953, %v7126, %v6957
      %v7159 = vsel %vm953, %v7127, %v6959
      %v7160 = vsel %vm953, %v7128, %v6961
      %v7161 = vsel %vm953, %v7129, %v6963
      %v7162 = vsel %vm953, %v7130, %v6965
      %v7163 = vsel %vm953, %v7131, %v6967
      %v7164 = vsel %vm953, %v7132, %v6969
      %v7165 = vsel %vm953, %v7133, %v6971
      %v7166 = vsel %vm953, %v7134, %v6973
      %v7167 = vsel %vm953, %v7135, %v6975
      %vm7168 = vcmask 97280
      %v7169 = vsel %vm7168, %v7136, %v7009
      %v7170 = vsel %vm7168, %v7137, %v7011
      %v7171 = vsel %vm7168, %v7138, %v7013
      %v7172 = vsel %vm7168, %v7139, %v7015
      %v7173 = vsel %vm7168, %v7140, %v7017
      %v7174 = vsel %vm7168, %v7141, %v7019
      %v7175 = vsel %vm7168, %v7142, %v7021
      %v7176 = vsel %vm7168, %v7143, %v7023
      %v7177 = vsel %vm7168, %v7144, %v7025
      %v7178 = vsel %vm7168, %v7145, %v7027
      %v7179 = vsel %vm7168, %v7146, %v7029
      %v7180 = vsel %vm7168, %v7147, %v7031
      %v7181 = vsel %vm7168, %v7148, %v7033
      %v7182 = vsel %vm7168, %v7149, %v7035
      %v7183 = vsel %vm7168, %v7150, %v7037
      %v7184 = vsel %vm7168, %v7151, %v7039
      %v7185 = vsel %vm7168, %v7152, %v7041
      %v7186 = vsel %vm7168, %v7153, %v7043
      %v7187 = vsel %vm7168, %v7154, %v7045
      %v7188 = vsel %vm7168, %v7155, %v7047
      %v7189 = vsel %vm7168, %v7156, %v7049
      %v7190 = vsel %vm7168, %v7157, %v7051
      %v7191 = vsel %vm7168, %v7158, %v7053
      %v7192 = vsel %vm7168, %v7159, %v7055
      %v7193 = vsel %vm7168, %v7160, %v7057
      %v7194 = vsel %vm7168, %v7161, %v7059
      %v7195 = vsel %vm7168, %v7162, %v7061
      %v7196 = vsel %vm7168, %v7163, %v7063
      %v7197 = vsel %vm7168, %v7164, %v7065
      %v7198 = vsel %vm7168, %v7165, %v7067
      %v7199 = vsel %vm7168, %v7166, %v7069
      %v7200 = vsel %vm7168, %v7167, %v7071
      %v7201 = vpack.c.bf16 %v7170, %v7169
      %v7202 = vpack.c.bf16 %v7172, %v7171
      %v7203 = vpack.c.bf16 %v7174, %v7173
      %v7204 = vpack.c.bf16 %v7176, %v7175
      %v7205 = vpack.c.bf16 %v7178, %v7177
      %v7206 = vpack.c.bf16 %v7180, %v7179
      %v7207 = vpack.c.bf16 %v7182, %v7181
      %v7208 = vpack.c.bf16 %v7184, %v7183
      %v7209 = vpack.c.bf16 %v7186, %v7185
      %v7210 = vpack.c.bf16 %v7188, %v7187
      %v7211 = vpack.c.bf16 %v7190, %v7189
      %v7212 = vpack.c.bf16 %v7192, %v7191
      %v7213 = vpack.c.bf16 %v7194, %v7193
      %v7214 = vpack.c.bf16 %v7196, %v7195
      %v7215 = vpack.c.bf16 %v7198, %v7197
      %v7216 = vpack.c.bf16 %v7200, %v7199
      %v7233 = vunpack.c.l.b16 %v7201
      %v7234 = vunpack.c.h.b16 %v7201
      %v7235 = vunpack.c.l.b16 %v7202
      %v7236 = vunpack.c.h.b16 %v7202
      %v7237 = vunpack.c.l.b16 %v7203
      %v7238 = vunpack.c.h.b16 %v7203
      %v7239 = vunpack.c.l.b16 %v7204
      %v7240 = vunpack.c.h.b16 %v7204
      %v7241 = vunpack.c.l.b16 %v7205
      %v7242 = vunpack.c.h.b16 %v7205
      %v7243 = vunpack.c.l.b16 %v7206
      %v7244 = vunpack.c.h.b16 %v7206
      %v7245 = vunpack.c.l.b16 %v7207
      %v7246 = vunpack.c.h.b16 %v7207
      %v7247 = vunpack.c.l.b16 %v7208
      %v7248 = vunpack.c.h.b16 %v7208
      %v7249 = vunpack.c.l.b16 %v7209
      %v7250 = vunpack.c.h.b16 %v7209
      %v7251 = vunpack.c.l.b16 %v7210
      %v7252 = vunpack.c.h.b16 %v7210
      %v7253 = vunpack.c.l.b16 %v7211
      %v7254 = vunpack.c.h.b16 %v7211
      %v7255 = vunpack.c.l.b16 %v7212
      %v7256 = vunpack.c.h.b16 %v7212
      %v7257 = vunpack.c.l.b16 %v7213
      %v7258 = vunpack.c.h.b16 %v7213
      %v7259 = vunpack.c.l.b16 %v7214
      %v7260 = vunpack.c.h.b16 %v7214
      %v7261 = vunpack.c.l.b16 %v7215
      %v7262 = vunpack.c.h.b16 %v7215
      %v7263 = vunpack.c.l.b16 %v7216
      %v7264 = vunpack.c.h.b16 %v7216
      %v7265 = vpack.c.b16 %v7233, %v7233
      %v7266 = vpack.c.b16 %v7234, %v7234
      %v7267 = vpack.c.b16 %v7235, %v7235
      %v7268 = vpack.c.b16 %v7236, %v7236
      %v7269 = vpack.c.b16 %v7237, %v7237
      %v7270 = vpack.c.b16 %v7238, %v7238
      %v7271 = vpack.c.b16 %v7239, %v7239
      %v7272 = vpack.c.b16 %v7240, %v7240
      %v7273 = vpack.c.b16 %v7241, %v7241
      %v7274 = vpack.c.b16 %v7242, %v7242
      %v7275 = vpack.c.b16 %v7243, %v7243
      %v7276 = vpack.c.b16 %v7244, %v7244
      %v7277 = vpack.c.b16 %v7245, %v7245
      %v7278 = vpack.c.b16 %v7246, %v7246
      %v7279 = vpack.c.b16 %v7247, %v7247
      %v7280 = vpack.c.b16 %v7248, %v7248
      %v7281 = vpack.c.b16 %v7249, %v7249
      %v7282 = vpack.c.b16 %v7250, %v7250
      %v7283 = vpack.c.b16 %v7251, %v7251
      %v7284 = vpack.c.b16 %v7252, %v7252
      %v7285 = vpack.c.b16 %v7253, %v7253
      %v7286 = vpack.c.b16 %v7254, %v7254
      %v7287 = vpack.c.b16 %v7255, %v7255
      %v7288 = vpack.c.b16 %v7256, %v7256
      %v7289 = vpack.c.b16 %v7257, %v7257
      %v7290 = vpack.c.b16 %v7258, %v7258
      %v7291 = vpack.c.b16 %v7259, %v7259
      %v7292 = vpack.c.b16 %v7260, %v7260
      %v7293 = vpack.c.b16 %v7261, %v7261
      %v7294 = vpack.c.b16 %v7262, %v7262
      %v7295 = vpack.c.b16 %v7263, %v7263
      %v7296 = vpack.c.b16 %v7264, %v7264
      %s7329 = smul.u32 0, 2
      %s7330 = smul.addr %s7329, 4
      %s7331 = scalar_lea.vmem %s262, %s7330
      %vm7332 = vcmask 125952
      %7333 = vst.msk [vmem:[%s7331] sm:$0xf] %vm7332, %v7265
      %7334 = vst.msk [vmem:[%s7331 + $0x4] sm:$0xf] %vm7332, %v7266
      %7335 = vst.msk [vmem:[%s7331 + $0x8] sm:$0xf] %vm7332, %v7267
      %7336 = vst.msk [vmem:[%s7331 + $0xc] sm:$0xf] %vm7332, %v7268
      %7337 = vst.msk [vmem:[%s7331 + $0x10] sm:$0xf] %vm7332, %v7269
      %7338 = vst.msk [vmem:[%s7331 + $0x14] sm:$0xf] %vm7332, %v7270
      %7339 = vst.msk [vmem:[%s7331 + $0x18] sm:$0xf] %vm7332, %v7271
      %7340 = vst.msk [vmem:[%s7331 + $0x1c] sm:$0xf] %vm7332, %v7272
      %7341 = vst.msk [vmem:[%s7331 + $0x20] sm:$0xf] %vm7332, %v7273
      %7342 = vst.msk [vmem:[%s7331 + $0x24] sm:$0xf] %vm7332, %v7274
      %7343 = vst.msk [vmem:[%s7331 + $0x28] sm:$0xf] %vm7332, %v7275
      %7344 = vst.msk [vmem:[%s7331 + $0x2c] sm:$0xf] %vm7332, %v7276
      %7345 = vst.msk [vmem:[%s7331 + $0x30] sm:$0xf] %vm7332, %v7277
      %7346 = vst.msk [vmem:[%s7331 + $0x34] sm:$0xf] %vm7332, %v7278
      %7347 = vst.msk [vmem:[%s7331 + $0x38] sm:$0xf] %vm7332, %v7279
      %7348 = vst.msk [vmem:[%s7331 + $0x3c] sm:$0xf] %vm7332, %v7280
      %7349 = vst.msk [vmem:[%s7331 + $0x40] sm:$0xf] %vm7332, %v7281
      %7350 = vst.msk [vmem:[%s7331 + $0x44] sm:$0xf] %vm7332, %v7282
      %7351 = vst.msk [vmem:[%s7331 + $0x48] sm:$0xf] %vm7332, %v7283
      %7352 = vst.msk [vmem:[%s7331 + $0x4c] sm:$0xf] %vm7332, %v7284
      %7353 = vst.msk [vmem:[%s7331 + $0x50] sm:$0xf] %vm7332, %v7285
      %7354 = vst.msk [vmem:[%s7331 + $0x54] sm:$0xf] %vm7332, %v7286
      %7355 = vst.msk [vmem:[%s7331 + $0x58] sm:$0xf] %vm7332, %v7287
      %7356 = vst.msk [vmem:[%s7331 + $0x5c] sm:$0xf] %vm7332, %v7288
      %7357 = vst.msk [vmem:[%s7331 + $0x60] sm:$0xf] %vm7332, %v7289
      %7358 = vst.msk [vmem:[%s7331 + $0x64] sm:$0xf] %vm7332, %v7290
      %7359 = vst.msk [vmem:[%s7331 + $0x68] sm:$0xf] %vm7332, %v7291
      %7360 = vst.msk [vmem:[%s7331 + $0x6c] sm:$0xf] %vm7332, %v7292
      %7361 = vst.msk [vmem:[%s7331 + $0x70] sm:$0xf] %vm7332, %v7293
      %7362 = vst.msk [vmem:[%s7331 + $0x74] sm:$0xf] %vm7332, %v7294
      %7363 = vst.msk [vmem:[%s7331 + $0x78] sm:$0xf] %vm7332, %v7295
      %7364 = vst.msk [vmem:[%s7331 + $0x7c] sm:$0xf] %vm7332, %v7296
      %s7365 = smul.u32 16, %s21
      %p7366 = scmp.lt.s32.totalorder %s20, 1
      %s7367 = scalar_select %p7366, %s20, 1
      %p7368 = scmp.lt.s32.totalorder %s7365, 15
      %s7369 = scalar_select %p7368, %s7365, 15
      %s7370 = smul.addr %s7369, 2
      %s7371 = smul.addr %s7367, 32
      %s7372 = sadd.s32 %s7370, %s7371
      %s7373 = smul.addr %s7372, 4
      %s7374 = scalar_lea.vmem %s5, %s7373
      // Predicated region
      $region45: #{gsconv_forward.1} parent=39 // pred_check
        %p7375 = pneg %p160
      $region46: #{gsconv_forward.1} parent=39 // pred_check_branch
        %7377 = sbr.rel (%p7375) target = $region48
      $region47: #{gsconv_forward.1} parent=39 // pred_region
        %s7378 = smul.u32 16, %s21
      $region48: #{gsconv_forward.1} parent=39 // pred_fallthru
        _
    $region40: #{gsconv_forward.1} parent=5 // pred_fallthru
      _
    %p7379 = scmp.le.s32.totalorder 2, %s11
    // Predicated region
    $region49: #{gsconv_forward.1} parent=5 // pred_check
      %p7380 = pneg %p7379
    $region50: #{gsconv_forward.1} parent=5 // pred_check_branch
      %7382 = sbr.rel (%p7380) target = $region52
    $region51: #{gsconv_forward.1} parent=5 // pred_region
      %s7383 = ssub.s32 %s11, 2
      // Predicated region
      $region53: #{gsconv_forward.1} parent=51 // pred_check
        %p7384 = pneg %p166
      $region54: #{gsconv_forward.1} parent=51 // pred_check_branch
        %7386 = sbr.rel (%p7384) target = $region56
      $region55: #{gsconv_forward.1} parent=51 // pred_region
        %s7387 = smul.u32 16, %s23
        %p7388 = scmp.lt.s32.totalorder %s22, 1
        %s7389 = scalar_select %p7388, %s22, 1
        %p7390 = scmp.lt.s32.totalorder %s7387, 15
        %s7391 = scalar_select %p7390, %s7387, 15
        %s7392 = smul.addr %s7391, 2
        %s7393 = smul.addr %s7389, 32
        %s7394 = sadd.s32 %s7392, %s7393
        %s7395 = smul.addr %s7394, 4
        %s7396 = scalar_lea.vmem %s5, %s7395
      $region56: #{gsconv_forward.1} parent=51 // pred_fallthru
        _
    $region52: #{gsconv_forward.1} parent=5 // pred_fallthru
      _
  $region6: #{gsconv_forward.1} parent=0 // loop_footer
    %s15 = sadd.s32 1, %s11
  $region7: #{gsconv_forward.1} parent=0 // loop_footer_branch
    %10 = sbr.rel target = $region3
  $region8: #{gsconv_forward.1} parent=0 // loop_exit
    _

</llo_original>
